<compile_context>
chip_gen: v5e
topology: v5e:2x2
jax: 0.10.0
libtpu: 0.0.40
codegen_flags: <defaults>
</compile_context>

<pallas_src>
import math

import jax
import jax.numpy as jnp
from jax import lax
from jax.experimental import pallas as pl
from jax.experimental.pallas import tpu as pltpu

NEG = -1e9          # additive mask value (stand-in for torch.finfo(float32).min)
LN_EPS = 1e-5       # GPT2Config.layer_norm_epsilon
N_HEAD = 4


def _full_spec(shape):
    # Full-extent block (grid=(1,)), so the (8,128) divisibility rule does not apply.
    return pl.BlockSpec(shape, lambda *_: (0,) * len(shape))


def _layernorm(x, g, b):
    mu = jnp.mean(x, axis=-1, keepdims=True)
    var = jnp.mean((x - mu) ** 2, axis=-1, keepdims=True)
    return (x - mu) * lax.rsqrt(var + LN_EPS) * g + b


def _gelu_new(x):
    # HF GPT-2 "gelu_new" activation.
    return 0.5 * x * (1.0 + jnp.tanh(0.7978845608028654 * (x + 0.044715 * x * x * x)))


# --------------------------- single fused forward kernel ---------------------------
def fused_forward_kernel(lens_ref,                       # SMEM scalar-prefetch: [B] int32
                         img_ref, fix_ref, mask_ref,
                         map_w, map_b, fix_w, fix_b, wpe_ref,
                         ln1w, ln1b, attnw, attnb, projw, projb,
                         ln2w, ln2b, fcw, fcb, fc2w, fc2b,
                         lnfw, lnfb, sw, sb,
                         o_ref, h_ref):
    B = o_ref.shape[0]
    BSP, H = h_ref.shape
    SP = BSP // B                      # padded sequence length (multiple of 8)
    L = attnw.shape[0]                 # number of transformer layers
    T = fix_ref.shape[0] // B          # number of fixation tokens
    S = T + 1                          # real sequence length
    hd = H // N_HEAD
    scale = 1.0 / math.sqrt(hd)

    # --- prefix projections: fused linear + tanh, batch-flattened (one MXU pass each) ---
    img_pref = jnp.tanh(jnp.dot(img_ref[...], map_w[...],
                                preferred_element_type=jnp.float32) + map_b[...])   # [B, H]
    fix_pref = jnp.tanh(jnp.dot(fix_ref[...], fix_w[...],
                                preferred_element_type=jnp.float32) + fix_b[...])   # [B*T, H]

    # --- assemble padded hidden slab [B*SP, H]; pad rows zero (finite -> safe masked keys) ---
    wpe = wpe_ref[...]                                                               # [SP, H]
    pad = jnp.zeros((SP - S, H), jnp.float32)
    pieces = []
    for b in range(B):
        pieces.append(img_pref[b:b + 1, :])
        pieces.append(fix_pref[b * T:(b + 1) * T, :])
        pieces.append(pad)
    x = jnp.concatenate(pieces, axis=0) + jnp.concatenate([wpe] * B, axis=0)

    # --- additive attention bias (causal + padding) built in-kernel, shared by all layers ---
    rows = lax.broadcasted_iota(jnp.int32, (SP, SP), 0)
    cols = lax.broadcasted_iota(jnp.int32, (SP, SP), 1)
    causal = cols <= rows
    mask = mask_ref[...]                                                             # [B, SP]
    bias = [jnp.where(causal & (mask[b:b + 1, :] > 0.5), 0.0, NEG) for b in range(B)]

    # --- transformer blocks (python-unrolled); token-wise ops on the full [B*SP, H] slab ---
    for l in range(L):
        xn = _layernorm(x, ln1w[l], ln1b[l])
        qkv = jnp.dot(xn, attnw[l], preferred_element_type=jnp.float32) + attnb[l]
        q, k, v = qkv[:, :H], qkv[:, H:2 * H], qkv[:, 2 * H:]
        pw = projw[l]                                                                # [H, H]
        attn_pieces = []
        for b in range(B):                                   # only scores/softmax is per-batch
            qb = q[b * SP:(b + 1) * SP, :]
            kb = k[b * SP:(b + 1) * SP, :]
            vb = v[b * SP:(b + 1) * SP, :]
            acc = jnp.zeros((SP, H), jnp.float32)
            for hh in range(N_HEAD):
                sl = slice(hh * hd, (hh + 1) * hd)
                scores = lax.dot_general(qb[:, sl], kb[:, sl], (((1,), (1,)), ((), ())),
                                         preferred_element_type=jnp.float32)
                p = jax.nn.softmax(scores * scale + bias[b], axis=-1)
                head_out = jnp.dot(p, vb[:, sl], preferred_element_type=jnp.float32)
                # fold the head-concat into the output projection (MXU accumulate,
                # avoids lane-axis concatenation of 8-lane-wide head outputs)
                acc = acc + jnp.dot(head_out, pw[sl, :], preferred_element_type=jnp.float32)
            attn_pieces.append(acc)
        x = x + jnp.concatenate(attn_pieces, axis=0) + projb[l]          # residual 1
        xn2 = _layernorm(x, ln2w[l], ln2b[l])
        ff = jnp.dot(xn2, fcw[l], preferred_element_type=jnp.float32) + fcb[l]
        ff = _gelu_new(ff)
        ff = jnp.dot(ff, fc2w[l], preferred_element_type=jnp.float32) + fc2b[l]
        x = x + ff                                                       # residual 2

    # --- head: VMEM-resident hidden, dynamic-slice gather, ln_f, linear_single, ReLU ---
    h_ref[...] = x
    gathered = []
    for b in range(B):
        idx = jnp.clip(lens_ref[b], 0, S - 1)                 # guard out-of-range index
        gathered.append(h_ref[pl.ds(b * SP + idx, 1), :])     # [1, H] dynamic sublane slice
    g = _layernorm(jnp.concatenate(gathered, axis=0), lnfw[...], lnfb[...])   # [B, H]
    logits = jnp.dot(g, sw[...], preferred_element_type=jnp.float32) + sb[...]
    o_ref[...] = jnp.maximum(logits, 0.0).astype(o_ref.dtype)


# --------------------------------- parameters / forward --------------------------------
def init_params(key, img_dim, hidden_dim, fix_dim, no_layers, max_pos):
    H = hidden_dim
    L = no_layers
    keys = jax.random.split(key, 4 + no_layers)
    params = {
        # custom linears: weight ~ U(-0.1, 0.1), bias = 0  (matches init_weights)
        'map_w': jax.random.uniform(keys[0], (img_dim, H), jnp.float32, -0.1, 0.1),
        'map_b': jnp.zeros((1, H), jnp.float32),
        'fix_w': jax.random.uniform(keys[1], (fix_dim, H), jnp.float32, -0.1, 0.1),
        'fix_b': jnp.zeros((1, H), jnp.float32),
        'single_w': jax.random.uniform(keys[2], (H, 1), jnp.float32, -0.1, 0.1),
        'single_b': jnp.zeros((1, 1), jnp.float32),
        # GPT-2 params: N(0, 0.02) weights, zero biases, unit/zero LayerNorm
        'wpe': 0.02 * jax.random.normal(keys[3], (max_pos, H), jnp.float32),
        'lnf_w': jnp.ones((1, H), jnp.float32),
        'lnf_b': jnp.zeros((1, H), jnp.float32),
    }
    attn_w, proj_w, fc_w, fc2_w = [], [], [], []
    for l in range(L):
        lk = jax.random.split(keys[4 + l], 4)
        attn_w.append(0.02 * jax.random.normal(lk[0], (H, 3 * H), jnp.float32))
        proj_w.append(0.02 * jax.random.normal(lk[1], (H, H), jnp.float32))
        fc_w.append(0.02 * jax.random.normal(lk[2], (H, 4 * H), jnp.float32))
        fc2_w.append(0.02 * jax.random.normal(lk[3], (4 * H, H), jnp.float32))
    # per-layer weights stacked along a leading layer axis (single kernel input each)
    params.update({
        'ln1_w': jnp.ones((L, 1, H), jnp.float32),
        'ln1_b': jnp.zeros((L, 1, H), jnp.float32),
        'attn_w': jnp.stack(attn_w),
        'attn_b': jnp.zeros((L, 1, 3 * H), jnp.float32),
        'attn_proj_w': jnp.stack(proj_w),
        'attn_proj_b': jnp.zeros((L, 1, H), jnp.float32),
        'ln2_w': jnp.ones((L, 1, H), jnp.float32),
        'ln2_b': jnp.zeros((L, 1, H), jnp.float32),
        'fc_w': jnp.stack(fc_w),
        'fc_b': jnp.zeros((L, 1, 4 * H), jnp.float32),
        'mlp_proj_w': jnp.stack(fc2_w),
        'mlp_proj_b': jnp.zeros((L, 1, H), jnp.float32),
    })
    return params


def forward(params, attention_mask, img_vectors, fix_vectors, scanpath_lens):
    B, T, FD = fix_vectors.shape
    H = params['map_w'].shape[1]
    S = T + 1
    SP = ((S + 7) // 8) * 8                      # pad sequence to a sublane multiple (9 -> 16)

    # pad attention mask [B, S] -> [B, SP] with zeros (padded keys masked out in-kernel)
    mask = jnp.zeros((B, SP), jnp.float32).at[:, :S].set(attention_mask.astype(jnp.float32))
    wpe = params['wpe'][:SP, :]
    fix_flat = fix_vectors.reshape(B * T, FD)

    args = (img_vectors, fix_flat, mask,
            params['map_w'], params['map_b'], params['fix_w'], params['fix_b'], wpe,
            params['ln1_w'], params['ln1_b'], params['attn_w'], params['attn_b'],
            params['attn_proj_w'], params['attn_proj_b'],
            params['ln2_w'], params['ln2_b'], params['fc_w'], params['fc_b'],
            params['mlp_proj_w'], params['mlp_proj_b'],
            params['lnf_w'], params['lnf_b'], params['single_w'], params['single_b'])

    grid_spec = pltpu.PrefetchScalarGridSpec(
        num_scalar_prefetch=1,
        grid=(1,),
        in_specs=[_full_spec(a.shape) for a in args],
        out_specs=_full_spec((B, 1)),
        scratch_shapes=[pltpu.VMEM((B * SP, H), jnp.float32)],   # hidden state, VMEM-resident
    )
    logits = pl.pallas_call(
        fused_forward_kernel,
        out_shape=jax.ShapeDtypeStruct((B, 1), jnp.float32),
        grid_spec=grid_spec,
        compiler_params=pltpu.CompilerParams(dimension_semantics=("arbitrary",)),
    )(jnp.asarray(scanpath_lens, jnp.int32), *args)
    return {'logits': logits}


if __name__ == "__main__":
    B, T = 2, 8
    IMG_DIM, FIX_DIM, HID = 16, 6, 32
    N_LAYER = 2
    S = T + 1

    key = jax.random.PRNGKey(0)
    kp, k1, k2 = jax.random.split(key, 3)

    params = init_params(kp, IMG_DIM, HID, FIX_DIM, N_LAYER, max_pos=64)

    img_vectors = jax.random.normal(k1, (B, IMG_DIM), jnp.float32)
    fix_vectors = jax.random.normal(k2, (B, T, FIX_DIM), jnp.float32)
    scanpath_lens = jnp.array([5, 8], jnp.int32)                       # index of last fixation token
    attention_mask = (jnp.arange(S)[None, :] <= scanpath_lens[:, None]).astype(jnp.float32)

    out = forward(params, attention_mask, img_vectors, fix_vectors, scanpath_lens)
    logits = jax.block_until_ready(out['logits'])
    assert logits.shape == (B, 1)
    assert bool(jnp.all(jnp.isfinite(logits)))
    assert bool(jnp.all(logits >= 0.0))   # ReLU output
    print("KERNEL_OK")
</pallas_src>

<mosaic_0001>
module attributes {stable_mosaic.version = 11 : i64} {
  func.func @fused_forward_kernel(%arg0: i32, %arg1: memref<2xi32, #tpu.memory_space<smem>>, %arg2: memref<2x16xf32, #tpu.memory_space<vmem>>, %arg3: memref<16x6xf32, #tpu.memory_space<vmem>>, %arg4: memref<2x16xf32, #tpu.memory_space<vmem>>, %arg5: memref<16x32xf32, #tpu.memory_space<vmem>>, %arg6: memref<1x32xf32, #tpu.memory_space<vmem>>, %arg7: memref<6x32xf32, #tpu.memory_space<vmem>>, %arg8: memref<1x32xf32, #tpu.memory_space<vmem>>, %arg9: memref<16x32xf32, #tpu.memory_space<vmem>>, %arg10: memref<2x1x32xf32, #tpu.memory_space<vmem>>, %arg11: memref<2x1x32xf32, #tpu.memory_space<vmem>>, %arg12: memref<2x32x96xf32, #tpu.memory_space<vmem>>, %arg13: memref<2x1x96xf32, #tpu.memory_space<vmem>>, %arg14: memref<2x32x32xf32, #tpu.memory_space<vmem>>, %arg15: memref<2x1x32xf32, #tpu.memory_space<vmem>>, %arg16: memref<2x1x32xf32, #tpu.memory_space<vmem>>, %arg17: memref<2x1x32xf32, #tpu.memory_space<vmem>>, %arg18: memref<2x32x128xf32, #tpu.memory_space<vmem>>, %arg19: memref<2x1x128xf32, #tpu.memory_space<vmem>>, %arg20: memref<2x128x32xf32, #tpu.memory_space<vmem>>, %arg21: memref<2x1x32xf32, #tpu.memory_space<vmem>>, %arg22: memref<1x32xf32, #tpu.memory_space<vmem>>, %arg23: memref<1x32xf32, #tpu.memory_space<vmem>>, %arg24: memref<32x1xf32, #tpu.memory_space<vmem>>, %arg25: memref<1x1xf32, #tpu.memory_space<vmem>>, %arg26: memref<2x1xf32, #tpu.memory_space<vmem>>, %arg27: memref<32x32xf32, #tpu.memory_space<vmem>>) attributes {dimension_semantics = [#tpu.dimension_semantics<arbitrary>], iteration_bounds = array<i64: 1>, scalar_prefetch = 1 : i64, scratch_operands = 1 : i64, tpu.core_type = #tpu.core_type<tc>, window_params = [{pipeline_mode = #tpu.pipeline_mode<synchronous>, transform_indices = @transform_0, window_bounds = array<i64: 2, 16>}, {pipeline_mode = #tpu.pipeline_mode<synchronous>, transform_indices = @transform_1, window_bounds = array<i64: 16, 6>}, {pipeline_mode = #tpu.pipeline_mode<synchronous>, transform_indices = @transform_2, window_bounds = array<i64: 2, 16>}, {pipeline_mode = #tpu.pipeline_mode<synchronous>, transform_indices = @transform_3, window_bounds = array<i64: 16, 32>}, {pipeline_mode = #tpu.pipeline_mode<synchronous>, transform_indices = @transform_4, window_bounds = array<i64: 1, 32>}, {pipeline_mode = #tpu.pipeline_mode<synchronous>, transform_indices = @transform_5, window_bounds = array<i64: 6, 32>}, {pipeline_mode = #tpu.pipeline_mode<synchronous>, transform_indices = @transform_6, window_bounds = array<i64: 1, 32>}, {pipeline_mode = #tpu.pipeline_mode<synchronous>, transform_indices = @transform_7, window_bounds = array<i64: 16, 32>}, {pipeline_mode = #tpu.pipeline_mode<synchronous>, transform_indices = @transform_8, window_bounds = array<i64: 2, 1, 32>}, {pipeline_mode = #tpu.pipeline_mode<synchronous>, transform_indices = @transform_9, window_bounds = array<i64: 2, 1, 32>}, {pipeline_mode = #tpu.pipeline_mode<synchronous>, transform_indices = @transform_10, window_bounds = array<i64: 2, 32, 96>}, {pipeline_mode = #tpu.pipeline_mode<synchronous>, transform_indices = @transform_11, window_bounds = array<i64: 2, 1, 96>}, {pipeline_mode = #tpu.pipeline_mode<synchronous>, transform_indices = @transform_12, window_bounds = array<i64: 2, 32, 32>}, {pipeline_mode = #tpu.pipeline_mode<synchronous>, transform_indices = @transform_13, window_bounds = array<i64: 2, 1, 32>}, {pipeline_mode = #tpu.pipeline_mode<synchronous>, transform_indices = @transform_14, window_bounds = array<i64: 2, 1, 32>}, {pipeline_mode = #tpu.pipeline_mode<synchronous>, transform_indices = @transform_15, window_bounds = array<i64: 2, 1, 32>}, {pipeline_mode = #tpu.pipeline_mode<synchronous>, transform_indices = @transform_16, window_bounds = array<i64: 2, 32, 128>}, {pipeline_mode = #tpu.pipeline_mode<synchronous>, transform_indices = @transform_17, window_bounds = array<i64: 2, 1, 128>}, {pipeline_mode = #tpu.pipeline_mode<synchronous>, transform_indices = @transform_18, window_bounds = array<i64: 2, 128, 32>}, {pipeline_mode = #tpu.pipeline_mode<synchronous>, transform_indices = @transform_19, window_bounds = array<i64: 2, 1, 32>}, {pipeline_mode = #tpu.pipeline_mode<synchronous>, transform_indices = @transform_20, window_bounds = array<i64: 1, 32>}, {pipeline_mode = #tpu.pipeline_mode<synchronous>, transform_indices = @transform_21, window_bounds = array<i64: 1, 32>}, {pipeline_mode = #tpu.pipeline_mode<synchronous>, transform_indices = @transform_22, window_bounds = array<i64: 32, 1>}, {pipeline_mode = #tpu.pipeline_mode<synchronous>, transform_indices = @transform_23, window_bounds = array<i64: 1, 1>}, {pipeline_mode = #tpu.pipeline_mode<synchronous>, transform_indices = @transform_24, window_bounds = array<i64: 2, 1>}]} {
    %c0 = arith.constant 0 : index
    %c0_0 = arith.constant 0 : index
    %0 = vector.load %arg2[%c0, %c0_0] : memref<2x16xf32, #tpu.memory_space<vmem>>, vector<2x16xf32>
    %c0_1 = arith.constant 0 : index
    %c0_2 = arith.constant 0 : index
    %1 = vector.load %arg5[%c0_1, %c0_2] : memref<16x32xf32, #tpu.memory_space<vmem>>, vector<16x32xf32>
    %cst = arith.constant dense<0.000000e+00> : vector<2x32xf32>
    %2 = tpu.matmul %0, %1, %cst {dimension_numbers = #tpu.dot_dimension_numbers<[1], [0], [0], [1], [0, 0, 1, 1], [], []>} : vector<2x16xf32>, vector<16x32xf32>, vector<2x32xf32> -> vector<2x32xf32>
    %c0_3 = arith.constant 0 : index
    %c0_4 = arith.constant 0 : index
    %3 = vector.load %arg6[%c0_3, %c0_4] : memref<1x32xf32, #tpu.memory_space<vmem>>, vector<1x32xf32>
    %4 = vector.broadcast %3 : vector<1x32xf32> to vector<2x32xf32>
    %5 = arith.addf %2, %4 : vector<2x32xf32>
    %6 = math.tanh %5 : vector<2x32xf32>
    %c0_5 = arith.constant 0 : index
    %c0_6 = arith.constant 0 : index
    %7 = vector.load %arg3[%c0_5, %c0_6] : memref<16x6xf32, #tpu.memory_space<vmem>>, vector<16x6xf32>
    %c0_7 = arith.constant 0 : index
    %c0_8 = arith.constant 0 : index
    %8 = vector.load %arg7[%c0_7, %c0_8] : memref<6x32xf32, #tpu.memory_space<vmem>>, vector<6x32xf32>
    %cst_9 = arith.constant dense<0.000000e+00> : vector<16x32xf32>
    %9 = tpu.matmul %7, %8, %cst_9 {dimension_numbers = #tpu.dot_dimension_numbers<[1], [0], [0], [1], [0, 0, 1, 1], [], []>} : vector<16x6xf32>, vector<6x32xf32>, vector<16x32xf32> -> vector<16x32xf32>
    %c0_10 = arith.constant 0 : index
    %c0_11 = arith.constant 0 : index
    %10 = vector.load %arg8[%c0_10, %c0_11] : memref<1x32xf32, #tpu.memory_space<vmem>>, vector<1x32xf32>
    %11 = vector.broadcast %10 : vector<1x32xf32> to vector<16x32xf32>
    %12 = arith.addf %9, %11 : vector<16x32xf32>
    %13 = math.tanh %12 : vector<16x32xf32>
    %c0_12 = arith.constant 0 : index
    %c0_13 = arith.constant 0 : index
    %14 = vector.load %arg9[%c0_12, %c0_13] : memref<16x32xf32, #tpu.memory_space<vmem>>, vector<16x32xf32>
    %cst_14 = arith.constant 0.000000e+00 : f32
    %15 = vector.broadcast %cst_14 : f32 to vector<7x32xf32>
    %16 = vector.extract_strided_slice %6 {offsets = [0, 0], sizes = [1, 32], strides = [1, 1]} : vector<2x32xf32> to vector<1x32xf32>
    %17 = vector.extract_strided_slice %13 {offsets = [0, 0], sizes = [8, 32], strides = [1, 1]} : vector<16x32xf32> to vector<8x32xf32>
    %18 = vector.extract_strided_slice %6 {offsets = [1, 0], sizes = [1, 32], strides = [1, 1]} : vector<2x32xf32> to vector<1x32xf32>
    %19 = vector.extract_strided_slice %13 {offsets = [8, 0], sizes = [8, 32], strides = [1, 1]} : vector<16x32xf32> to vector<8x32xf32>
    %20 = tpu.concatenate %16, %17, %15, %18, %19, %15 in 0 : vector<1x32xf32>, vector<8x32xf32>, vector<7x32xf32>, vector<1x32xf32>, vector<8x32xf32>, vector<7x32xf32> -> vector<32x32xf32>
    %21 = tpu.concatenate %14, %14 in 0 : vector<16x32xf32>, vector<16x32xf32> -> vector<32x32xf32>
    %22 = arith.addf %20, %21 : vector<32x32xf32>
    %23 = tpu.iota {dimensions = array<i32: 0>} : vector<16x16xi32>
    %24 = tpu.iota {dimensions = array<i32: 1>} : vector<16x16xi32>
    %25 = arith.cmpi sle, %24, %23 : vector<16x16xi32>
    %c0_15 = arith.constant 0 : index
    %c0_16 = arith.constant 0 : index
    %26 = vector.load %arg4[%c0_15, %c0_16] : memref<2x16xf32, #tpu.memory_space<vmem>>, vector<2x16xf32>
    %27 = vector.extract_strided_slice %26 {offsets = [0, 0], sizes = [1, 16], strides = [1, 1]} : vector<2x16xf32> to vector<1x16xf32>
    %cst_17 = arith.constant 5.000000e-01 : f32
    %28 = vector.broadcast %cst_17 : f32 to vector<1x16xf32>
    %29 = arith.cmpf ogt, %27, %28 : vector<1x16xf32>
    %30 = vector.broadcast %29 : vector<1x16xi1> to vector<16x16xi1>
    %31 = arith.andi %25, %30 : vector<16x16xi1>
    %cst_18 = arith.constant 0.000000e+00 : f32
    %cst_19 = arith.constant -1.000000e+09 : f32
    %32 = vector.broadcast %cst_18 : f32 to vector<16x16xf32>
    %33 = vector.broadcast %cst_19 : f32 to vector<16x16xf32>
    %34 = arith.select %31, %32, %33 : vector<16x16xi1>, vector<16x16xf32>
    %35 = vector.extract_strided_slice %26 {offsets = [1, 0], sizes = [1, 16], strides = [1, 1]} : vector<2x16xf32> to vector<1x16xf32>
    %cst_20 = arith.constant 5.000000e-01 : f32
    %36 = vector.broadcast %cst_20 : f32 to vector<1x16xf32>
    %37 = arith.cmpf ogt, %35, %36 : vector<1x16xf32>
    %38 = vector.broadcast %37 : vector<1x16xi1> to vector<16x16xi1>
    %39 = arith.andi %25, %38 : vector<16x16xi1>
    %cst_21 = arith.constant 0.000000e+00 : f32
    %cst_22 = arith.constant -1.000000e+09 : f32
    %40 = vector.broadcast %cst_21 : f32 to vector<16x16xf32>
    %41 = vector.broadcast %cst_22 : f32 to vector<16x16xf32>
    %42 = arith.select %39, %40, %41 : vector<16x16xi1>, vector<16x16xf32>
    %c0_23 = arith.constant 0 : index
    %c0_24 = arith.constant 0 : index
    %c0_25 = arith.constant 0 : index
    %43 = vector.load %arg10[%c0_23, %c0_24, %c0_25] : memref<2x1x32xf32, #tpu.memory_space<vmem>>, vector<1x1x32xf32>
    %44 = vector.shape_cast %43 : vector<1x1x32xf32> to vector<1x32xf32>
    %c0_26 = arith.constant 0 : index
    %c0_27 = arith.constant 0 : index
    %c0_28 = arith.constant 0 : index
    %45 = vector.load %arg11[%c0_26, %c0_27, %c0_28] : memref<2x1x32xf32, #tpu.memory_space<vmem>>, vector<1x1x32xf32>
    %46 = vector.shape_cast %45 : vector<1x1x32xf32> to vector<1x32xf32>
    %cst_29 = arith.constant dense<0.000000e+00> : vector<32xf32>
    %47 = vector.multi_reduction <add>, %22, %cst_29 [1] : vector<32x32xf32> to vector<32xf32>
    %48 = vector.shape_cast %47 : vector<32xf32> to vector<32x1xf32>
    %cst_30 = arith.constant 3.200000e+01 : f32
    %49 = vector.broadcast %cst_30 : f32 to vector<32x1xf32>
    %50 = arith.divf %48, %49 : vector<32x1xf32>
    %51 = vector.broadcast %50 : vector<32x1xf32> to vector<32x32xf32>
    %52 = arith.subf %22, %51 : vector<32x32xf32>
    %53 = arith.mulf %52, %52 : vector<32x32xf32>
    %cst_31 = arith.constant dense<0.000000e+00> : vector<32xf32>
    %54 = vector.multi_reduction <add>, %53, %cst_31 [1] : vector<32x32xf32> to vector<32xf32>
    %55 = vector.shape_cast %54 : vector<32xf32> to vector<32x1xf32>
    %cst_32 = arith.constant 3.200000e+01 : f32
    %56 = vector.broadcast %cst_32 : f32 to vector<32x1xf32>
    %57 = arith.divf %55, %56 : vector<32x1xf32>
    %58 = vector.broadcast %50 : vector<32x1xf32> to vector<32x32xf32>
    %59 = arith.subf %22, %58 : vector<32x32xf32>
    %cst_33 = arith.constant 9.99999974E-6 : f32
    %60 = vector.broadcast %cst_33 : f32 to vector<32x1xf32>
    %61 = arith.addf %57, %60 : vector<32x1xf32>
    %62 = math.rsqrt %61 : vector<32x1xf32>
    %63 = vector.broadcast %62 : vector<32x1xf32> to vector<32x32xf32>
    %64 = arith.mulf %59, %63 : vector<32x32xf32>
    %65 = vector.broadcast %44 : vector<1x32xf32> to vector<32x32xf32>
    %66 = arith.mulf %64, %65 : vector<32x32xf32>
    %67 = vector.broadcast %46 : vector<1x32xf32> to vector<32x32xf32>
    %68 = arith.addf %66, %67 : vector<32x32xf32>
    %c0_34 = arith.constant 0 : index
    %c0_35 = arith.constant 0 : index
    %c0_36 = arith.constant 0 : index
    %69 = vector.load %arg12[%c0_34, %c0_35, %c0_36] : memref<2x32x96xf32, #tpu.memory_space<vmem>>, vector<1x32x96xf32>
    %70 = vector.shape_cast %69 : vector<1x32x96xf32> to vector<32x96xf32>
    %cst_37 = arith.constant dense<0.000000e+00> : vector<32x96xf32>
    %71 = tpu.matmul %68, %70, %cst_37 {dimension_numbers = #tpu.dot_dimension_numbers<[1], [0], [0], [1], [0, 0, 1, 1], [], []>} : vector<32x32xf32>, vector<32x96xf32>, vector<32x96xf32> -> vector<32x96xf32>
    %c0_38 = arith.constant 0 : index
    %c0_39 = arith.constant 0 : index
    %c0_40 = arith.constant 0 : index
    %72 = vector.load %arg13[%c0_38, %c0_39, %c0_40] : memref<2x1x96xf32, #tpu.memory_space<vmem>>, vector<1x1x96xf32>
    %73 = vector.shape_cast %72 : vector<1x1x96xf32> to vector<1x96xf32>
    %74 = vector.broadcast %73 : vector<1x96xf32> to vector<32x96xf32>
    %75 = arith.addf %71, %74 : vector<32x96xf32>
    %76 = vector.extract_strided_slice %75 {offsets = [0, 0], sizes = [32, 32], strides = [1, 1]} : vector<32x96xf32> to vector<32x32xf32>
    %77 = vector.extract_strided_slice %75 {offsets = [0, 32], sizes = [32, 32], strides = [1, 1]} : vector<32x96xf32> to vector<32x32xf32>
    %78 = vector.extract_strided_slice %75 {offsets = [0, 64], sizes = [32, 32], strides = [1, 1]} : vector<32x96xf32> to vector<32x32xf32>
    %c0_41 = arith.constant 0 : index
    %c0_42 = arith.constant 0 : index
    %c0_43 = arith.constant 0 : index
    %79 = vector.load %arg14[%c0_41, %c0_42, %c0_43] : memref<2x32x32xf32, #tpu.memory_space<vmem>>, vector<1x32x32xf32>
    %80 = vector.shape_cast %79 : vector<1x32x32xf32> to vector<32x32xf32>
    %81 = vector.extract_strided_slice %76 {offsets = [0, 0], sizes = [16, 32], strides = [1, 1]} : vector<32x32xf32> to vector<16x32xf32>
    %82 = vector.extract_strided_slice %77 {offsets = [0, 0], sizes = [16, 32], strides = [1, 1]} : vector<32x32xf32> to vector<16x32xf32>
    %83 = vector.extract_strided_slice %78 {offsets = [0, 0], sizes = [16, 32], strides = [1, 1]} : vector<32x32xf32> to vector<16x32xf32>
    %cst_44 = arith.constant 0.000000e+00 : f32
    %84 = vector.broadcast %cst_44 : f32 to vector<16x32xf32>
    %85 = vector.extract_strided_slice %81 {offsets = [0, 0], sizes = [16, 8], strides = [1, 1]} : vector<16x32xf32> to vector<16x8xf32>
    %86 = vector.extract_strided_slice %82 {offsets = [0, 0], sizes = [16, 8], strides = [1, 1]} : vector<16x32xf32> to vector<16x8xf32>
    %cst_45 = arith.constant dense<0.000000e+00> : vector<16x16xf32>
    %87 = tpu.matmul %85, %86, %cst_45 {dimension_numbers = #tpu.dot_dimension_numbers<[1], [1], [0], [0], [0, 0, 1, 0], [], []>} : vector<16x8xf32>, vector<16x8xf32>, vector<16x16xf32> -> vector<16x16xf32>
    %cst_46 = arith.constant 0.353553385 : f32
    %88 = vector.broadcast %cst_46 : f32 to vector<16x16xf32>
    %89 = arith.mulf %87, %88 : vector<16x16xf32>
    %90 = arith.addf %89, %34 : vector<16x16xf32>
    %cst_47 = arith.constant dense<0xFF800000> : vector<16xf32>
    %91 = vector.multi_reduction <maximumf>, %90, %cst_47 [1] : vector<16x16xf32> to vector<16xf32>
    %cst_48 = arith.constant 0xFF800000 : f32
    %92 = vector.broadcast %cst_48 : f32 to vector<16xf32>
    %93 = arith.maximumf %92, %91 : vector<16xf32>
    %94 = vector.shape_cast %93 : vector<16xf32> to vector<16x1xf32>
    %95 = vector.broadcast %94 : vector<16x1xf32> to vector<16x16xf32>
    %96 = arith.subf %90, %95 : vector<16x16xf32>
    %97 = math.exp %96 : vector<16x16xf32>
    %cst_49 = arith.constant dense<0.000000e+00> : vector<16xf32>
    %98 = vector.multi_reduction <add>, %97, %cst_49 [1] : vector<16x16xf32> to vector<16xf32>
    %99 = vector.shape_cast %98 : vector<16xf32> to vector<16x1xf32>
    %100 = vector.broadcast %99 : vector<16x1xf32> to vector<16x16xf32>
    %101 = arith.divf %97, %100 : vector<16x16xf32>
    %102 = vector.extract_strided_slice %83 {offsets = [0, 0], sizes = [16, 8], strides = [1, 1]} : vector<16x32xf32> to vector<16x8xf32>
    %cst_50 = arith.constant dense<0.000000e+00> : vector<16x8xf32>
    %103 = tpu.matmul %101, %102, %cst_50 {dimension_numbers = #tpu.dot_dimension_numbers<[1], [0], [0], [1], [0, 0, 1, 1], [], []>} : vector<16x16xf32>, vector<16x8xf32>, vector<16x8xf32> -> vector<16x8xf32>
    %104 = vector.extract_strided_slice %80 {offsets = [0, 0], sizes = [8, 32], strides = [1, 1]} : vector<32x32xf32> to vector<8x32xf32>
    %cst_51 = arith.constant dense<0.000000e+00> : vector<16x32xf32>
    %105 = tpu.matmul %103, %104, %cst_51 {dimension_numbers = #tpu.dot_dimension_numbers<[1], [0], [0], [1], [0, 0, 1, 1], [], []>} : vector<16x8xf32>, vector<8x32xf32>, vector<16x32xf32> -> vector<16x32xf32>
    %106 = arith.addf %84, %105 : vector<16x32xf32>
    %107 = vector.extract_strided_slice %81 {offsets = [0, 8], sizes = [16, 8], strides = [1, 1]} : vector<16x32xf32> to vector<16x8xf32>
    %108 = vector.extract_strided_slice %82 {offsets = [0, 8], sizes = [16, 8], strides = [1, 1]} : vector<16x32xf32> to vector<16x8xf32>
    %cst_52 = arith.constant dense<0.000000e+00> : vector<16x16xf32>
    %109 = tpu.matmul %107, %108, %cst_52 {dimension_numbers = #tpu.dot_dimension_numbers<[1], [1], [0], [0], [0, 0, 1, 0], [], []>} : vector<16x8xf32>, vector<16x8xf32>, vector<16x16xf32> -> vector<16x16xf32>
    %cst_53 = arith.constant 0.353553385 : f32
    %110 = vector.broadcast %cst_53 : f32 to vector<16x16xf32>
    %111 = arith.mulf %109, %110 : vector<16x16xf32>
    %112 = arith.addf %111, %34 : vector<16x16xf32>
    %cst_54 = arith.constant dense<0xFF800000> : vector<16xf32>
    %113 = vector.multi_reduction <maximumf>, %112, %cst_54 [1] : vector<16x16xf32> to vector<16xf32>
    %cst_55 = arith.constant 0xFF800000 : f32
    %114 = vector.broadcast %cst_55 : f32 to vector<16xf32>
    %115 = arith.maximumf %114, %113 : vector<16xf32>
    %116 = vector.shape_cast %115 : vector<16xf32> to vector<16x1xf32>
    %117 = vector.broadcast %116 : vector<16x1xf32> to vector<16x16xf32>
    %118 = arith.subf %112, %117 : vector<16x16xf32>
    %119 = math.exp %118 : vector<16x16xf32>
    %cst_56 = arith.constant dense<0.000000e+00> : vector<16xf32>
    %120 = vector.multi_reduction <add>, %119, %cst_56 [1] : vector<16x16xf32> to vector<16xf32>
    %121 = vector.shape_cast %120 : vector<16xf32> to vector<16x1xf32>
    %122 = vector.broadcast %121 : vector<16x1xf32> to vector<16x16xf32>
    %123 = arith.divf %119, %122 : vector<16x16xf32>
    %124 = vector.extract_strided_slice %83 {offsets = [0, 8], sizes = [16, 8], strides = [1, 1]} : vector<16x32xf32> to vector<16x8xf32>
    %cst_57 = arith.constant dense<0.000000e+00> : vector<16x8xf32>
    %125 = tpu.matmul %123, %124, %cst_57 {dimension_numbers = #tpu.dot_dimension_numbers<[1], [0], [0], [1], [0, 0, 1, 1], [], []>} : vector<16x16xf32>, vector<16x8xf32>, vector<16x8xf32> -> vector<16x8xf32>
    %126 = vector.extract_strided_slice %80 {offsets = [8, 0], sizes = [8, 32], strides = [1, 1]} : vector<32x32xf32> to vector<8x32xf32>
    %cst_58 = arith.constant dense<0.000000e+00> : vector<16x32xf32>
    %127 = tpu.matmul %125, %126, %cst_58 {dimension_numbers = #tpu.dot_dimension_numbers<[1], [0], [0], [1], [0, 0, 1, 1], [], []>} : vector<16x8xf32>, vector<8x32xf32>, vector<16x32xf32> -> vector<16x32xf32>
    %128 = arith.addf %106, %127 : vector<16x32xf32>
    %129 = vector.extract_strided_slice %81 {offsets = [0, 16], sizes = [16, 8], strides = [1, 1]} : vector<16x32xf32> to vector<16x8xf32>
    %130 = vector.extract_strided_slice %82 {offsets = [0, 16], sizes = [16, 8], strides = [1, 1]} : vector<16x32xf32> to vector<16x8xf32>
    %cst_59 = arith.constant dense<0.000000e+00> : vector<16x16xf32>
    %131 = tpu.matmul %129, %130, %cst_59 {dimension_numbers = #tpu.dot_dimension_numbers<[1], [1], [0], [0], [0, 0, 1, 0], [], []>} : vector<16x8xf32>, vector<16x8xf32>, vector<16x16xf32> -> vector<16x16xf32>
    %cst_60 = arith.constant 0.353553385 : f32
    %132 = vector.broadcast %cst_60 : f32 to vector<16x16xf32>
    %133 = arith.mulf %131, %132 : vector<16x16xf32>
    %134 = arith.addf %133, %34 : vector<16x16xf32>
    %cst_61 = arith.constant dense<0xFF800000> : vector<16xf32>
    %135 = vector.multi_reduction <maximumf>, %134, %cst_61 [1] : vector<16x16xf32> to vector<16xf32>
    %cst_62 = arith.constant 0xFF800000 : f32
    %136 = vector.broadcast %cst_62 : f32 to vector<16xf32>
    %137 = arith.maximumf %136, %135 : vector<16xf32>
    %138 = vector.shape_cast %137 : vector<16xf32> to vector<16x1xf32>
    %139 = vector.broadcast %138 : vector<16x1xf32> to vector<16x16xf32>
    %140 = arith.subf %134, %139 : vector<16x16xf32>
    %141 = math.exp %140 : vector<16x16xf32>
    %cst_63 = arith.constant dense<0.000000e+00> : vector<16xf32>
    %142 = vector.multi_reduction <add>, %141, %cst_63 [1] : vector<16x16xf32> to vector<16xf32>
    %143 = vector.shape_cast %142 : vector<16xf32> to vector<16x1xf32>
    %144 = vector.broadcast %143 : vector<16x1xf32> to vector<16x16xf32>
    %145 = arith.divf %141, %144 : vector<16x16xf32>
    %146 = vector.extract_strided_slice %83 {offsets = [0, 16], sizes = [16, 8], strides = [1, 1]} : vector<16x32xf32> to vector<16x8xf32>
    %cst_64 = arith.constant dense<0.000000e+00> : vector<16x8xf32>
    %147 = tpu.matmul %145, %146, %cst_64 {dimension_numbers = #tpu.dot_dimension_numbers<[1], [0], [0], [1], [0, 0, 1, 1], [], []>} : vector<16x16xf32>, vector<16x8xf32>, vector<16x8xf32> -> vector<16x8xf32>
    %148 = vector.extract_strided_slice %80 {offsets = [16, 0], sizes = [8, 32], strides = [1, 1]} : vector<32x32xf32> to vector<8x32xf32>
    %cst_65 = arith.constant dense<0.000000e+00> : vector<16x32xf32>
    %149 = tpu.matmul %147, %148, %cst_65 {dimension_numbers = #tpu.dot_dimension_numbers<[1], [0], [0], [1], [0, 0, 1, 1], [], []>} : vector<16x8xf32>, vector<8x32xf32>, vector<16x32xf32> -> vector<16x32xf32>
    %150 = arith.addf %128, %149 : vector<16x32xf32>
    %151 = vector.extract_strided_slice %81 {offsets = [0, 24], sizes = [16, 8], strides = [1, 1]} : vector<16x32xf32> to vector<16x8xf32>
    %152 = vector.extract_strided_slice %82 {offsets = [0, 24], sizes = [16, 8], strides = [1, 1]} : vector<16x32xf32> to vector<16x8xf32>
    %cst_66 = arith.constant dense<0.000000e+00> : vector<16x16xf32>
    %153 = tpu.matmul %151, %152, %cst_66 {dimension_numbers = #tpu.dot_dimension_numbers<[1], [1], [0], [0], [0, 0, 1, 0], [], []>} : vector<16x8xf32>, vector<16x8xf32>, vector<16x16xf32> -> vector<16x16xf32>
    %cst_67 = arith.constant 0.353553385 : f32
    %154 = vector.broadcast %cst_67 : f32 to vector<16x16xf32>
    %155 = arith.mulf %153, %154 : vector<16x16xf32>
    %156 = arith.addf %155, %34 : vector<16x16xf32>
    %cst_68 = arith.constant dense<0xFF800000> : vector<16xf32>
    %157 = vector.multi_reduction <maximumf>, %156, %cst_68 [1] : vector<16x16xf32> to vector<16xf32>
    %cst_69 = arith.constant 0xFF800000 : f32
    %158 = vector.broadcast %cst_69 : f32 to vector<16xf32>
    %159 = arith.maximumf %158, %157 : vector<16xf32>
    %160 = vector.shape_cast %159 : vector<16xf32> to vector<16x1xf32>
    %161 = vector.broadcast %160 : vector<16x1xf32> to vector<16x16xf32>
    %162 = arith.subf %156, %161 : vector<16x16xf32>
    %163 = math.exp %162 : vector<16x16xf32>
    %cst_70 = arith.constant dense<0.000000e+00> : vector<16xf32>
    %164 = vector.multi_reduction <add>, %163, %cst_70 [1] : vector<16x16xf32> to vector<16xf32>
    %165 = vector.shape_cast %164 : vector<16xf32> to vector<16x1xf32>
    %166 = vector.broadcast %165 : vector<16x1xf32> to vector<16x16xf32>
    %167 = arith.divf %163, %166 : vector<16x16xf32>
    %168 = vector.extract_strided_slice %83 {offsets = [0, 24], sizes = [16, 8], strides = [1, 1]} : vector<16x32xf32> to vector<16x8xf32>
    %cst_71 = arith.constant dense<0.000000e+00> : vector<16x8xf32>
    %169 = tpu.matmul %167, %168, %cst_71 {dimension_numbers = #tpu.dot_dimension_numbers<[1], [0], [0], [1], [0, 0, 1, 1], [], []>} : vector<16x16xf32>, vector<16x8xf32>, vector<16x8xf32> -> vector<16x8xf32>
    %170 = vector.extract_strided_slice %80 {offsets = [24, 0], sizes = [8, 32], strides = [1, 1]} : vector<32x32xf32> to vector<8x32xf32>
    %cst_72 = arith.constant dense<0.000000e+00> : vector<16x32xf32>
    %171 = tpu.matmul %169, %170, %cst_72 {dimension_numbers = #tpu.dot_dimension_numbers<[1], [0], [0], [1], [0, 0, 1, 1], [], []>} : vector<16x8xf32>, vector<8x32xf32>, vector<16x32xf32> -> vector<16x32xf32>
    %172 = arith.addf %150, %171 : vector<16x32xf32>
    %173 = vector.extract_strided_slice %76 {offsets = [16, 0], sizes = [16, 32], strides = [1, 1]} : vector<32x32xf32> to vector<16x32xf32>
    %174 = vector.extract_strided_slice %77 {offsets = [16, 0], sizes = [16, 32], strides = [1, 1]} : vector<32x32xf32> to vector<16x32xf32>
    %175 = vector.extract_strided_slice %78 {offsets = [16, 0], sizes = [16, 32], strides = [1, 1]} : vector<32x32xf32> to vector<16x32xf32>
    %cst_73 = arith.constant 0.000000e+00 : f32
    %176 = vector.broadcast %cst_73 : f32 to vector<16x32xf32>
    %177 = vector.extract_strided_slice %173 {offsets = [0, 0], sizes = [16, 8], strides = [1, 1]} : vector<16x32xf32> to vector<16x8xf32>
    %178 = vector.extract_strided_slice %174 {offsets = [0, 0], sizes = [16, 8], strides = [1, 1]} : vector<16x32xf32> to vector<16x8xf32>
    %cst_74 = arith.constant dense<0.000000e+00> : vector<16x16xf32>
    %179 = tpu.matmul %177, %178, %cst_74 {dimension_numbers = #tpu.dot_dimension_numbers<[1], [1], [0], [0], [0, 0, 1, 0], [], []>} : vector<16x8xf32>, vector<16x8xf32>, vector<16x16xf32> -> vector<16x16xf32>
    %cst_75 = arith.constant 0.353553385 : f32
    %180 = vector.broadcast %cst_75 : f32 to vector<16x16xf32>
    %181 = arith.mulf %179, %180 : vector<16x16xf32>
    %182 = arith.addf %181, %42 : vector<16x16xf32>
    %cst_76 = arith.constant dense<0xFF800000> : vector<16xf32>
    %183 = vector.multi_reduction <maximumf>, %182, %cst_76 [1] : vector<16x16xf32> to vector<16xf32>
    %cst_77 = arith.constant 0xFF800000 : f32
    %184 = vector.broadcast %cst_77 : f32 to vector<16xf32>
    %185 = arith.maximumf %184, %183 : vector<16xf32>
    %186 = vector.shape_cast %185 : vector<16xf32> to vector<16x1xf32>
    %187 = vector.broadcast %186 : vector<16x1xf32> to vector<16x16xf32>
    %188 = arith.subf %182, %187 : vector<16x16xf32>
    %189 = math.exp %188 : vector<16x16xf32>
    %cst_78 = arith.constant dense<0.000000e+00> : vector<16xf32>
    %190 = vector.multi_reduction <add>, %189, %cst_78 [1] : vector<16x16xf32> to vector<16xf32>
    %191 = vector.shape_cast %190 : vector<16xf32> to vector<16x1xf32>
    %192 = vector.broadcast %191 : vector<16x1xf32> to vector<16x16xf32>
    %193 = arith.divf %189, %192 : vector<16x16xf32>
    %194 = vector.extract_strided_slice %175 {offsets = [0, 0], sizes = [16, 8], strides = [1, 1]} : vector<16x32xf32> to vector<16x8xf32>
    %cst_79 = arith.constant dense<0.000000e+00> : vector<16x8xf32>
    %195 = tpu.matmul %193, %194, %cst_79 {dimension_numbers = #tpu.dot_dimension_numbers<[1], [0], [0], [1], [0, 0, 1, 1], [], []>} : vector<16x16xf32>, vector<16x8xf32>, vector<16x8xf32> -> vector<16x8xf32>
    %196 = vector.extract_strided_slice %80 {offsets = [0, 0], sizes = [8, 32], strides = [1, 1]} : vector<32x32xf32> to vector<8x32xf32>
    %cst_80 = arith.constant dense<0.000000e+00> : vector<16x32xf32>
    %197 = tpu.matmul %195, %196, %cst_80 {dimension_numbers = #tpu.dot_dimension_numbers<[1], [0], [0], [1], [0, 0, 1, 1], [], []>} : vector<16x8xf32>, vector<8x32xf32>, vector<16x32xf32> -> vector<16x32xf32>
    %198 = arith.addf %176, %197 : vector<16x32xf32>
    %199 = vector.extract_strided_slice %173 {offsets = [0, 8], sizes = [16, 8], strides = [1, 1]} : vector<16x32xf32> to vector<16x8xf32>
    %200 = vector.extract_strided_slice %174 {offsets = [0, 8], sizes = [16, 8], strides = [1, 1]} : vector<16x32xf32> to vector<16x8xf32>
    %cst_81 = arith.constant dense<0.000000e+00> : vector<16x16xf32>
    %201 = tpu.matmul %199, %200, %cst_81 {dimension_numbers = #tpu.dot_dimension_numbers<[1], [1], [0], [0], [0, 0, 1, 0], [], []>} : vector<16x8xf32>, vector<16x8xf32>, vector<16x16xf32> -> vector<16x16xf32>
    %cst_82 = arith.constant 0.353553385 : f32
    %202 = vector.broadcast %cst_82 : f32 to vector<16x16xf32>
    %203 = arith.mulf %201, %202 : vector<16x16xf32>
    %204 = arith.addf %203, %42 : vector<16x16xf32>
    %cst_83 = arith.constant dense<0xFF800000> : vector<16xf32>
    %205 = vector.multi_reduction <maximumf>, %204, %cst_83 [1] : vector<16x16xf32> to vector<16xf32>
    %cst_84 = arith.constant 0xFF800000 : f32
    %206 = vector.broadcast %cst_84 : f32 to vector<16xf32>
    %207 = arith.maximumf %206, %205 : vector<16xf32>
    %208 = vector.shape_cast %207 : vector<16xf32> to vector<16x1xf32>
    %209 = vector.broadcast %208 : vector<16x1xf32> to vector<16x16xf32>
    %210 = arith.subf %204, %209 : vector<16x16xf32>
    %211 = math.exp %210 : vector<16x16xf32>
    %cst_85 = arith.constant dense<0.000000e+00> : vector<16xf32>
    %212 = vector.multi_reduction <add>, %211, %cst_85 [1] : vector<16x16xf32> to vector<16xf32>
    %213 = vector.shape_cast %212 : vector<16xf32> to vector<16x1xf32>
    %214 = vector.broadcast %213 : vector<16x1xf32> to vector<16x16xf32>
    %215 = arith.divf %211, %214 : vector<16x16xf32>
    %216 = vector.extract_strided_slice %175 {offsets = [0, 8], sizes = [16, 8], strides = [1, 1]} : vector<16x32xf32> to vector<16x8xf32>
    %cst_86 = arith.constant dense<0.000000e+00> : vector<16x8xf32>
    %217 = tpu.matmul %215, %216, %cst_86 {dimension_numbers = #tpu.dot_dimension_numbers<[1], [0], [0], [1], [0, 0, 1, 1], [], []>} : vector<16x16xf32>, vector<16x8xf32>, vector<16x8xf32> -> vector<16x8xf32>
    %218 = vector.extract_strided_slice %80 {offsets = [8, 0], sizes = [8, 32], strides = [1, 1]} : vector<32x32xf32> to vector<8x32xf32>
    %cst_87 = arith.constant dense<0.000000e+00> : vector<16x32xf32>
    %219 = tpu.matmul %217, %218, %cst_87 {dimension_numbers = #tpu.dot_dimension_numbers<[1], [0], [0], [1], [0, 0, 1, 1], [], []>} : vector<16x8xf32>, vector<8x32xf32>, vector<16x32xf32> -> vector<16x32xf32>
    %220 = arith.addf %198, %219 : vector<16x32xf32>
    %221 = vector.extract_strided_slice %173 {offsets = [0, 16], sizes = [16, 8], strides = [1, 1]} : vector<16x32xf32> to vector<16x8xf32>
    %222 = vector.extract_strided_slice %174 {offsets = [0, 16], sizes = [16, 8], strides = [1, 1]} : vector<16x32xf32> to vector<16x8xf32>
    %cst_88 = arith.constant dense<0.000000e+00> : vector<16x16xf32>
    %223 = tpu.matmul %221, %222, %cst_88 {dimension_numbers = #tpu.dot_dimension_numbers<[1], [1], [0], [0], [0, 0, 1, 0], [], []>} : vector<16x8xf32>, vector<16x8xf32>, vector<16x16xf32> -> vector<16x16xf32>
    %cst_89 = arith.constant 0.353553385 : f32
    %224 = vector.broadcast %cst_89 : f32 to vector<16x16xf32>
    %225 = arith.mulf %223, %224 : vector<16x16xf32>
    %226 = arith.addf %225, %42 : vector<16x16xf32>
    %cst_90 = arith.constant dense<0xFF800000> : vector<16xf32>
    %227 = vector.multi_reduction <maximumf>, %226, %cst_90 [1] : vector<16x16xf32> to vector<16xf32>
    %cst_91 = arith.constant 0xFF800000 : f32
    %228 = vector.broadcast %cst_91 : f32 to vector<16xf32>
    %229 = arith.maximumf %228, %227 : vector<16xf32>
    %230 = vector.shape_cast %229 : vector<16xf32> to vector<16x1xf32>
    %231 = vector.broadcast %230 : vector<16x1xf32> to vector<16x16xf32>
    %232 = arith.subf %226, %231 : vector<16x16xf32>
    %233 = math.exp %232 : vector<16x16xf32>
    %cst_92 = arith.constant dense<0.000000e+00> : vector<16xf32>
    %234 = vector.multi_reduction <add>, %233, %cst_92 [1] : vector<16x16xf32> to vector<16xf32>
    %235 = vector.shape_cast %234 : vector<16xf32> to vector<16x1xf32>
    %236 = vector.broadcast %235 : vector<16x1xf32> to vector<16x16xf32>
    %237 = arith.divf %233, %236 : vector<16x16xf32>
    %238 = vector.extract_strided_slice %175 {offsets = [0, 16], sizes = [16, 8], strides = [1, 1]} : vector<16x32xf32> to vector<16x8xf32>
    %cst_93 = arith.constant dense<0.000000e+00> : vector<16x8xf32>
    %239 = tpu.matmul %237, %238, %cst_93 {dimension_numbers = #tpu.dot_dimension_numbers<[1], [0], [0], [1], [0, 0, 1, 1], [], []>} : vector<16x16xf32>, vector<16x8xf32>, vector<16x8xf32> -> vector<16x8xf32>
    %240 = vector.extract_strided_slice %80 {offsets = [16, 0], sizes = [8, 32], strides = [1, 1]} : vector<32x32xf32> to vector<8x32xf32>
    %cst_94 = arith.constant dense<0.000000e+00> : vector<16x32xf32>
    %241 = tpu.matmul %239, %240, %cst_94 {dimension_numbers = #tpu.dot_dimension_numbers<[1], [0], [0], [1], [0, 0, 1, 1], [], []>} : vector<16x8xf32>, vector<8x32xf32>, vector<16x32xf32> -> vector<16x32xf32>
    %242 = arith.addf %220, %241 : vector<16x32xf32>
    %243 = vector.extract_strided_slice %173 {offsets = [0, 24], sizes = [16, 8], strides = [1, 1]} : vector<16x32xf32> to vector<16x8xf32>
    %244 = vector.extract_strided_slice %174 {offsets = [0, 24], sizes = [16, 8], strides = [1, 1]} : vector<16x32xf32> to vector<16x8xf32>
    %cst_95 = arith.constant dense<0.000000e+00> : vector<16x16xf32>
    %245 = tpu.matmul %243, %244, %cst_95 {dimension_numbers = #tpu.dot_dimension_numbers<[1], [1], [0], [0], [0, 0, 1, 0], [], []>} : vector<16x8xf32>, vector<16x8xf32>, vector<16x16xf32> -> vector<16x16xf32>
    %cst_96 = arith.constant 0.353553385 : f32
    %246 = vector.broadcast %cst_96 : f32 to vector<16x16xf32>
    %247 = arith.mulf %245, %246 : vector<16x16xf32>
    %248 = arith.addf %247, %42 : vector<16x16xf32>
    %cst_97 = arith.constant dense<0xFF800000> : vector<16xf32>
    %249 = vector.multi_reduction <maximumf>, %248, %cst_97 [1] : vector<16x16xf32> to vector<16xf32>
    %cst_98 = arith.constant 0xFF800000 : f32
    %250 = vector.broadcast %cst_98 : f32 to vector<16xf32>
    %251 = arith.maximumf %250, %249 : vector<16xf32>
    %252 = vector.shape_cast %251 : vector<16xf32> to vector<16x1xf32>
    %253 = vector.broadcast %252 : vector<16x1xf32> to vector<16x16xf32>
    %254 = arith.subf %248, %253 : vector<16x16xf32>
    %255 = math.exp %254 : vector<16x16xf32>
    %cst_99 = arith.constant dense<0.000000e+00> : vector<16xf32>
    %256 = vector.multi_reduction <add>, %255, %cst_99 [1] : vector<16x16xf32> to vector<16xf32>
    %257 = vector.shape_cast %256 : vector<16xf32> to vector<16x1xf32>
    %258 = vector.broadcast %257 : vector<16x1xf32> to vector<16x16xf32>
    %259 = arith.divf %255, %258 : vector<16x16xf32>
    %260 = vector.extract_strided_slice %175 {offsets = [0, 24], sizes = [16, 8], strides = [1, 1]} : vector<16x32xf32> to vector<16x8xf32>
    %cst_100 = arith.constant dense<0.000000e+00> : vector<16x8xf32>
    %261 = tpu.matmul %259, %260, %cst_100 {dimension_numbers = #tpu.dot_dimension_numbers<[1], [0], [0], [1], [0, 0, 1, 1], [], []>} : vector<16x16xf32>, vector<16x8xf32>, vector<16x8xf32> -> vector<16x8xf32>
    %262 = vector.extract_strided_slice %80 {offsets = [24, 0], sizes = [8, 32], strides = [1, 1]} : vector<32x32xf32> to vector<8x32xf32>
    %cst_101 = arith.constant dense<0.000000e+00> : vector<16x32xf32>
    %263 = tpu.matmul %261, %262, %cst_101 {dimension_numbers = #tpu.dot_dimension_numbers<[1], [0], [0], [1], [0, 0, 1, 1], [], []>} : vector<16x8xf32>, vector<8x32xf32>, vector<16x32xf32> -> vector<16x32xf32>
    %264 = arith.addf %242, %263 : vector<16x32xf32>
    %265 = tpu.concatenate %172, %264 in 0 : vector<16x32xf32>, vector<16x32xf32> -> vector<32x32xf32>
    %266 = arith.addf %22, %265 : vector<32x32xf32>
    %c0_102 = arith.constant 0 : index
    %c0_103 = arith.constant 0 : index
    %c0_104 = arith.constant 0 : index
    %267 = vector.load %arg15[%c0_102, %c0_103, %c0_104] : memref<2x1x32xf32, #tpu.memory_space<vmem>>, vector<1x1x32xf32>
    %268 = vector.shape_cast %267 : vector<1x1x32xf32> to vector<1x32xf32>
    %269 = vector.broadcast %268 : vector<1x32xf32> to vector<32x32xf32>
    %270 = arith.addf %266, %269 : vector<32x32xf32>
    %c0_105 = arith.constant 0 : index
    %c0_106 = arith.constant 0 : index
    %c0_107 = arith.constant 0 : index
    %271 = vector.load %arg16[%c0_105, %c0_106, %c0_107] : memref<2x1x32xf32, #tpu.memory_space<vmem>>, vector<1x1x32xf32>
    %272 = vector.shape_cast %271 : vector<1x1x32xf32> to vector<1x32xf32>
    %c0_108 = arith.constant 0 : index
    %c0_109 = arith.constant 0 : index
    %c0_110 = arith.constant 0 : index
    %273 = vector.load %arg17[%c0_108, %c0_109, %c0_110] : memref<2x1x32xf32, #tpu.memory_space<vmem>>, vector<1x1x32xf32>
    %274 = vector.shape_cast %273 : vector<1x1x32xf32> to vector<1x32xf32>
    %cst_111 = arith.constant dense<0.000000e+00> : vector<32xf32>
    %275 = vector.multi_reduction <add>, %270, %cst_111 [1] : vector<32x32xf32> to vector<32xf32>
    %276 = vector.shape_cast %275 : vector<32xf32> to vector<32x1xf32>
    %cst_112 = arith.constant 3.200000e+01 : f32
    %277 = vector.broadcast %cst_112 : f32 to vector<32x1xf32>
    %278 = arith.divf %276, %277 : vector<32x1xf32>
    %279 = vector.broadcast %278 : vector<32x1xf32> to vector<32x32xf32>
    %280 = arith.subf %270, %279 : vector<32x32xf32>
    %281 = arith.mulf %280, %280 : vector<32x32xf32>
    %cst_113 = arith.constant dense<0.000000e+00> : vector<32xf32>
    %282 = vector.multi_reduction <add>, %281, %cst_113 [1] : vector<32x32xf32> to vector<32xf32>
    %283 = vector.shape_cast %282 : vector<32xf32> to vector<32x1xf32>
    %cst_114 = arith.constant 3.200000e+01 : f32
    %284 = vector.broadcast %cst_114 : f32 to vector<32x1xf32>
    %285 = arith.divf %283, %284 : vector<32x1xf32>
    %286 = vector.broadcast %278 : vector<32x1xf32> to vector<32x32xf32>
    %287 = arith.subf %270, %286 : vector<32x32xf32>
    %cst_115 = arith.constant 9.99999974E-6 : f32
    %288 = vector.broadcast %cst_115 : f32 to vector<32x1xf32>
    %289 = arith.addf %285, %288 : vector<32x1xf32>
    %290 = math.rsqrt %289 : vector<32x1xf32>
    %291 = vector.broadcast %290 : vector<32x1xf32> to vector<32x32xf32>
    %292 = arith.mulf %287, %291 : vector<32x32xf32>
    %293 = vector.broadcast %272 : vector<1x32xf32> to vector<32x32xf32>
    %294 = arith.mulf %292, %293 : vector<32x32xf32>
    %295 = vector.broadcast %274 : vector<1x32xf32> to vector<32x32xf32>
    %296 = arith.addf %294, %295 : vector<32x32xf32>
    %c0_116 = arith.constant 0 : index
    %c0_117 = arith.constant 0 : index
    %c0_118 = arith.constant 0 : index
    %297 = vector.load %arg18[%c0_116, %c0_117, %c0_118] : memref<2x32x128xf32, #tpu.memory_space<vmem>>, vector<1x32x128xf32>
    %298 = vector.shape_cast %297 : vector<1x32x128xf32> to vector<32x128xf32>
    %cst_119 = arith.constant dense<0.000000e+00> : vector<32x128xf32>
    %299 = tpu.matmul %296, %298, %cst_119 {dimension_numbers = #tpu.dot_dimension_numbers<[1], [0], [0], [1], [0, 0, 1, 1], [], []>} : vector<32x32xf32>, vector<32x128xf32>, vector<32x128xf32> -> vector<32x128xf32>
    %c0_120 = arith.constant 0 : index
    %c0_121 = arith.constant 0 : index
    %c0_122 = arith.constant 0 : index
    %300 = vector.load %arg19[%c0_120, %c0_121, %c0_122] : memref<2x1x128xf32, #tpu.memory_space<vmem>>, vector<1x1x128xf32>
    %301 = vector.shape_cast %300 : vector<1x1x128xf32> to vector<1x128xf32>
    %302 = vector.broadcast %301 : vector<1x128xf32> to vector<32x128xf32>
    %303 = arith.addf %299, %302 : vector<32x128xf32>
    %cst_123 = arith.constant 5.000000e-01 : f32
    %304 = vector.broadcast %cst_123 : f32 to vector<32x128xf32>
    %305 = arith.mulf %304, %303 : vector<32x128xf32>
    %cst_124 = arith.constant 4.471500e-02 : f32
    %306 = vector.broadcast %cst_124 : f32 to vector<32x128xf32>
    %307 = arith.mulf %306, %303 : vector<32x128xf32>
    %308 = arith.mulf %307, %303 : vector<32x128xf32>
    %309 = arith.mulf %308, %303 : vector<32x128xf32>
    %310 = arith.addf %303, %309 : vector<32x128xf32>
    %cst_125 = arith.constant 0.797884583 : f32
    %311 = vector.broadcast %cst_125 : f32 to vector<32x128xf32>
    %312 = arith.mulf %311, %310 : vector<32x128xf32>
    %313 = math.tanh %312 : vector<32x128xf32>
    %cst_126 = arith.constant 1.000000e+00 : f32
    %314 = vector.broadcast %cst_126 : f32 to vector<32x128xf32>
    %315 = arith.addf %314, %313 : vector<32x128xf32>
    %316 = arith.mulf %305, %315 : vector<32x128xf32>
    %c0_127 = arith.constant 0 : index
    %c0_128 = arith.constant 0 : index
    %c0_129 = arith.constant 0 : index
    %317 = vector.load %arg20[%c0_127, %c0_128, %c0_129] : memref<2x128x32xf32, #tpu.memory_space<vmem>>, vector<1x128x32xf32>
    %318 = vector.shape_cast %317 : vector<1x128x32xf32> to vector<128x32xf32>
    %cst_130 = arith.constant dense<0.000000e+00> : vector<32x32xf32>
    %319 = tpu.matmul %316, %318, %cst_130 {dimension_numbers = #tpu.dot_dimension_numbers<[1], [0], [0], [1], [0, 0, 1, 1], [], []>} : vector<32x128xf32>, vector<128x32xf32>, vector<32x32xf32> -> vector<32x32xf32>
    %c0_131 = arith.constant 0 : index
    %c0_132 = arith.constant 0 : index
    %c0_133 = arith.constant 0 : index
    %320 = vector.load %arg21[%c0_131, %c0_132, %c0_133] : memref<2x1x32xf32, #tpu.memory_space<vmem>>, vector<1x1x32xf32>
    %321 = vector.shape_cast %320 : vector<1x1x32xf32> to vector<1x32xf32>
    %322 = vector.broadcast %321 : vector<1x32xf32> to vector<32x32xf32>
    %323 = arith.addf %319, %322 : vector<32x32xf32>
    %324 = arith.addf %270, %323 : vector<32x32xf32>
    %c1 = arith.constant 1 : index
    %c0_134 = arith.constant 0 : index
    %c0_135 = arith.constant 0 : index
    %325 = vector.load %arg10[%c1, %c0_134, %c0_135] : memref<2x1x32xf32, #tpu.memory_space<vmem>>, vector<1x1x32xf32>
    %326 = vector.shape_cast %325 : vector<1x1x32xf32> to vector<1x32xf32>
    %c1_136 = arith.constant 1 : index
    %c0_137 = arith.constant 0 : index
    %c0_138 = arith.constant 0 : index
    %327 = vector.load %arg11[%c1_136, %c0_137, %c0_138] : memref<2x1x32xf32, #tpu.memory_space<vmem>>, vector<1x1x32xf32>
    %328 = vector.shape_cast %327 : vector<1x1x32xf32> to vector<1x32xf32>
    %cst_139 = arith.constant dense<0.000000e+00> : vector<32xf32>
    %329 = vector.multi_reduction <add>, %324, %cst_139 [1] : vector<32x32xf32> to vector<32xf32>
    %330 = vector.shape_cast %329 : vector<32xf32> to vector<32x1xf32>
    %cst_140 = arith.constant 3.200000e+01 : f32
    %331 = vector.broadcast %cst_140 : f32 to vector<32x1xf32>
    %332 = arith.divf %330, %331 : vector<32x1xf32>
    %333 = vector.broadcast %332 : vector<32x1xf32> to vector<32x32xf32>
    %334 = arith.subf %324, %333 : vector<32x32xf32>
    %335 = arith.mulf %334, %334 : vector<32x32xf32>
    %cst_141 = arith.constant dense<0.000000e+00> : vector<32xf32>
    %336 = vector.multi_reduction <add>, %335, %cst_141 [1] : vector<32x32xf32> to vector<32xf32>
    %337 = vector.shape_cast %336 : vector<32xf32> to vector<32x1xf32>
    %cst_142 = arith.constant 3.200000e+01 : f32
    %338 = vector.broadcast %cst_142 : f32 to vector<32x1xf32>
    %339 = arith.divf %337, %338 : vector<32x1xf32>
    %340 = vector.broadcast %332 : vector<32x1xf32> to vector<32x32xf32>
    %341 = arith.subf %324, %340 : vector<32x32xf32>
    %cst_143 = arith.constant 9.99999974E-6 : f32
    %342 = vector.broadcast %cst_143 : f32 to vector<32x1xf32>
    %343 = arith.addf %339, %342 : vector<32x1xf32>
    %344 = math.rsqrt %343 : vector<32x1xf32>
    %345 = vector.broadcast %344 : vector<32x1xf32> to vector<32x32xf32>
    %346 = arith.mulf %341, %345 : vector<32x32xf32>
    %347 = vector.broadcast %326 : vector<1x32xf32> to vector<32x32xf32>
    %348 = arith.mulf %346, %347 : vector<32x32xf32>
    %349 = vector.broadcast %328 : vector<1x32xf32> to vector<32x32xf32>
    %350 = arith.addf %348, %349 : vector<32x32xf32>
    %c1_144 = arith.constant 1 : index
    %c0_145 = arith.constant 0 : index
    %c0_146 = arith.constant 0 : index
    %351 = vector.load %arg12[%c1_144, %c0_145, %c0_146] : memref<2x32x96xf32, #tpu.memory_space<vmem>>, vector<1x32x96xf32>
    %352 = vector.shape_cast %351 : vector<1x32x96xf32> to vector<32x96xf32>
    %cst_147 = arith.constant dense<0.000000e+00> : vector<32x96xf32>
    %353 = tpu.matmul %350, %352, %cst_147 {dimension_numbers = #tpu.dot_dimension_numbers<[1], [0], [0], [1], [0, 0, 1, 1], [], []>} : vector<32x32xf32>, vector<32x96xf32>, vector<32x96xf32> -> vector<32x96xf32>
    %c1_148 = arith.constant 1 : index
    %c0_149 = arith.constant 0 : index
    %c0_150 = arith.constant 0 : index
    %354 = vector.load %arg13[%c1_148, %c0_149, %c0_150] : memref<2x1x96xf32, #tpu.memory_space<vmem>>, vector<1x1x96xf32>
    %355 = vector.shape_cast %354 : vector<1x1x96xf32> to vector<1x96xf32>
    %356 = vector.broadcast %355 : vector<1x96xf32> to vector<32x96xf32>
    %357 = arith.addf %353, %356 : vector<32x96xf32>
    %358 = vector.extract_strided_slice %357 {offsets = [0, 0], sizes = [32, 32], strides = [1, 1]} : vector<32x96xf32> to vector<32x32xf32>
    %359 = vector.extract_strided_slice %357 {offsets = [0, 32], sizes = [32, 32], strides = [1, 1]} : vector<32x96xf32> to vector<32x32xf32>
    %360 = vector.extract_strided_slice %357 {offsets = [0, 64], sizes = [32, 32], strides = [1, 1]} : vector<32x96xf32> to vector<32x32xf32>
    %c1_151 = arith.constant 1 : index
    %c0_152 = arith.constant 0 : index
    %c0_153 = arith.constant 0 : index
    %361 = vector.load %arg14[%c1_151, %c0_152, %c0_153] : memref<2x32x32xf32, #tpu.memory_space<vmem>>, vector<1x32x32xf32>
    %362 = vector.shape_cast %361 : vector<1x32x32xf32> to vector<32x32xf32>
    %363 = vector.extract_strided_slice %358 {offsets = [0, 0], sizes = [16, 32], strides = [1, 1]} : vector<32x32xf32> to vector<16x32xf32>
    %364 = vector.extract_strided_slice %359 {offsets = [0, 0], sizes = [16, 32], strides = [1, 1]} : vector<32x32xf32> to vector<16x32xf32>
    %365 = vector.extract_strided_slice %360 {offsets = [0, 0], sizes = [16, 32], strides = [1, 1]} : vector<32x32xf32> to vector<16x32xf32>
    %cst_154 = arith.constant 0.000000e+00 : f32
    %366 = vector.broadcast %cst_154 : f32 to vector<16x32xf32>
    %367 = vector.extract_strided_slice %363 {offsets = [0, 0], sizes = [16, 8], strides = [1, 1]} : vector<16x32xf32> to vector<16x8xf32>
    %368 = vector.extract_strided_slice %364 {offsets = [0, 0], sizes = [16, 8], strides = [1, 1]} : vector<16x32xf32> to vector<16x8xf32>
    %cst_155 = arith.constant dense<0.000000e+00> : vector<16x16xf32>
    %369 = tpu.matmul %367, %368, %cst_155 {dimension_numbers = #tpu.dot_dimension_numbers<[1], [1], [0], [0], [0, 0, 1, 0], [], []>} : vector<16x8xf32>, vector<16x8xf32>, vector<16x16xf32> -> vector<16x16xf32>
    %cst_156 = arith.constant 0.353553385 : f32
    %370 = vector.broadcast %cst_156 : f32 to vector<16x16xf32>
    %371 = arith.mulf %369, %370 : vector<16x16xf32>
    %372 = arith.addf %371, %34 : vector<16x16xf32>
    %cst_157 = arith.constant dense<0xFF800000> : vector<16xf32>
    %373 = vector.multi_reduction <maximumf>, %372, %cst_157 [1] : vector<16x16xf32> to vector<16xf32>
    %cst_158 = arith.constant 0xFF800000 : f32
    %374 = vector.broadcast %cst_158 : f32 to vector<16xf32>
    %375 = arith.maximumf %374, %373 : vector<16xf32>
    %376 = vector.shape_cast %375 : vector<16xf32> to vector<16x1xf32>
    %377 = vector.broadcast %376 : vector<16x1xf32> to vector<16x16xf32>
    %378 = arith.subf %372, %377 : vector<16x16xf32>
    %379 = math.exp %378 : vector<16x16xf32>
    %cst_159 = arith.constant dense<0.000000e+00> : vector<16xf32>
    %380 = vector.multi_reduction <add>, %379, %cst_159 [1] : vector<16x16xf32> to vector<16xf32>
    %381 = vector.shape_cast %380 : vector<16xf32> to vector<16x1xf32>
    %382 = vector.broadcast %381 : vector<16x1xf32> to vector<16x16xf32>
    %383 = arith.divf %379, %382 : vector<16x16xf32>
    %384 = vector.extract_strided_slice %365 {offsets = [0, 0], sizes = [16, 8], strides = [1, 1]} : vector<16x32xf32> to vector<16x8xf32>
    %cst_160 = arith.constant dense<0.000000e+00> : vector<16x8xf32>
    %385 = tpu.matmul %383, %384, %cst_160 {dimension_numbers = #tpu.dot_dimension_numbers<[1], [0], [0], [1], [0, 0, 1, 1], [], []>} : vector<16x16xf32>, vector<16x8xf32>, vector<16x8xf32> -> vector<16x8xf32>
    %386 = vector.extract_strided_slice %362 {offsets = [0, 0], sizes = [8, 32], strides = [1, 1]} : vector<32x32xf32> to vector<8x32xf32>
    %cst_161 = arith.constant dense<0.000000e+00> : vector<16x32xf32>
    %387 = tpu.matmul %385, %386, %cst_161 {dimension_numbers = #tpu.dot_dimension_numbers<[1], [0], [0], [1], [0, 0, 1, 1], [], []>} : vector<16x8xf32>, vector<8x32xf32>, vector<16x32xf32> -> vector<16x32xf32>
    %388 = arith.addf %366, %387 : vector<16x32xf32>
    %389 = vector.extract_strided_slice %363 {offsets = [0, 8], sizes = [16, 8], strides = [1, 1]} : vector<16x32xf32> to vector<16x8xf32>
    %390 = vector.extract_strided_slice %364 {offsets = [0, 8], sizes = [16, 8], strides = [1, 1]} : vector<16x32xf32> to vector<16x8xf32>
    %cst_162 = arith.constant dense<0.000000e+00> : vector<16x16xf32>
    %391 = tpu.matmul %389, %390, %cst_162 {dimension_numbers = #tpu.dot_dimension_numbers<[1], [1], [0], [0], [0, 0, 1, 0], [], []>} : vector<16x8xf32>, vector<16x8xf32>, vector<16x16xf32> -> vector<16x16xf32>
    %cst_163 = arith.constant 0.353553385 : f32
    %392 = vector.broadcast %cst_163 : f32 to vector<16x16xf32>
    %393 = arith.mulf %391, %392 : vector<16x16xf32>
    %394 = arith.addf %393, %34 : vector<16x16xf32>
    %cst_164 = arith.constant dense<0xFF800000> : vector<16xf32>
    %395 = vector.multi_reduction <maximumf>, %394, %cst_164 [1] : vector<16x16xf32> to vector<16xf32>
    %cst_165 = arith.constant 0xFF800000 : f32
    %396 = vector.broadcast %cst_165 : f32 to vector<16xf32>
    %397 = arith.maximumf %396, %395 : vector<16xf32>
    %398 = vector.shape_cast %397 : vector<16xf32> to vector<16x1xf32>
    %399 = vector.broadcast %398 : vector<16x1xf32> to vector<16x16xf32>
    %400 = arith.subf %394, %399 : vector<16x16xf32>
    %401 = math.exp %400 : vector<16x16xf32>
    %cst_166 = arith.constant dense<0.000000e+00> : vector<16xf32>
    %402 = vector.multi_reduction <add>, %401, %cst_166 [1] : vector<16x16xf32> to vector<16xf32>
    %403 = vector.shape_cast %402 : vector<16xf32> to vector<16x1xf32>
    %404 = vector.broadcast %403 : vector<16x1xf32> to vector<16x16xf32>
    %405 = arith.divf %401, %404 : vector<16x16xf32>
    %406 = vector.extract_strided_slice %365 {offsets = [0, 8], sizes = [16, 8], strides = [1, 1]} : vector<16x32xf32> to vector<16x8xf32>
    %cst_167 = arith.constant dense<0.000000e+00> : vector<16x8xf32>
    %407 = tpu.matmul %405, %406, %cst_167 {dimension_numbers = #tpu.dot_dimension_numbers<[1], [0], [0], [1], [0, 0, 1, 1], [], []>} : vector<16x16xf32>, vector<16x8xf32>, vector<16x8xf32> -> vector<16x8xf32>
    %408 = vector.extract_strided_slice %362 {offsets = [8, 0], sizes = [8, 32], strides = [1, 1]} : vector<32x32xf32> to vector<8x32xf32>
    %cst_168 = arith.constant dense<0.000000e+00> : vector<16x32xf32>
    %409 = tpu.matmul %407, %408, %cst_168 {dimension_numbers = #tpu.dot_dimension_numbers<[1], [0], [0], [1], [0, 0, 1, 1], [], []>} : vector<16x8xf32>, vector<8x32xf32>, vector<16x32xf32> -> vector<16x32xf32>
    %410 = arith.addf %388, %409 : vector<16x32xf32>
    %411 = vector.extract_strided_slice %363 {offsets = [0, 16], sizes = [16, 8], strides = [1, 1]} : vector<16x32xf32> to vector<16x8xf32>
    %412 = vector.extract_strided_slice %364 {offsets = [0, 16], sizes = [16, 8], strides = [1, 1]} : vector<16x32xf32> to vector<16x8xf32>
    %cst_169 = arith.constant dense<0.000000e+00> : vector<16x16xf32>
    %413 = tpu.matmul %411, %412, %cst_169 {dimension_numbers = #tpu.dot_dimension_numbers<[1], [1], [0], [0], [0, 0, 1, 0], [], []>} : vector<16x8xf32>, vector<16x8xf32>, vector<16x16xf32> -> vector<16x16xf32>
    %cst_170 = arith.constant 0.353553385 : f32
    %414 = vector.broadcast %cst_170 : f32 to vector<16x16xf32>
    %415 = arith.mulf %413, %414 : vector<16x16xf32>
    %416 = arith.addf %415, %34 : vector<16x16xf32>
    %cst_171 = arith.constant dense<0xFF800000> : vector<16xf32>
    %417 = vector.multi_reduction <maximumf>, %416, %cst_171 [1] : vector<16x16xf32> to vector<16xf32>
    %cst_172 = arith.constant 0xFF800000 : f32
    %418 = vector.broadcast %cst_172 : f32 to vector<16xf32>
    %419 = arith.maximumf %418, %417 : vector<16xf32>
    %420 = vector.shape_cast %419 : vector<16xf32> to vector<16x1xf32>
    %421 = vector.broadcast %420 : vector<16x1xf32> to vector<16x16xf32>
    %422 = arith.subf %416, %421 : vector<16x16xf32>
    %423 = math.exp %422 : vector<16x16xf32>
    %cst_173 = arith.constant dense<0.000000e+00> : vector<16xf32>
    %424 = vector.multi_reduction <add>, %423, %cst_173 [1] : vector<16x16xf32> to vector<16xf32>
    %425 = vector.shape_cast %424 : vector<16xf32> to vector<16x1xf32>
    %426 = vector.broadcast %425 : vector<16x1xf32> to vector<16x16xf32>
    %427 = arith.divf %423, %426 : vector<16x16xf32>
    %428 = vector.extract_strided_slice %365 {offsets = [0, 16], sizes = [16, 8], strides = [1, 1]} : vector<16x32xf32> to vector<16x8xf32>
    %cst_174 = arith.constant dense<0.000000e+00> : vector<16x8xf32>
    %429 = tpu.matmul %427, %428, %cst_174 {dimension_numbers = #tpu.dot_dimension_numbers<[1], [0], [0], [1], [0, 0, 1, 1], [], []>} : vector<16x16xf32>, vector<16x8xf32>, vector<16x8xf32> -> vector<16x8xf32>
    %430 = vector.extract_strided_slice %362 {offsets = [16, 0], sizes = [8, 32], strides = [1, 1]} : vector<32x32xf32> to vector<8x32xf32>
    %cst_175 = arith.constant dense<0.000000e+00> : vector<16x32xf32>
    %431 = tpu.matmul %429, %430, %cst_175 {dimension_numbers = #tpu.dot_dimension_numbers<[1], [0], [0], [1], [0, 0, 1, 1], [], []>} : vector<16x8xf32>, vector<8x32xf32>, vector<16x32xf32> -> vector<16x32xf32>
    %432 = arith.addf %410, %431 : vector<16x32xf32>
    %433 = vector.extract_strided_slice %363 {offsets = [0, 24], sizes = [16, 8], strides = [1, 1]} : vector<16x32xf32> to vector<16x8xf32>
    %434 = vector.extract_strided_slice %364 {offsets = [0, 24], sizes = [16, 8], strides = [1, 1]} : vector<16x32xf32> to vector<16x8xf32>
    %cst_176 = arith.constant dense<0.000000e+00> : vector<16x16xf32>
    %435 = tpu.matmul %433, %434, %cst_176 {dimension_numbers = #tpu.dot_dimension_numbers<[1], [1], [0], [0], [0, 0, 1, 0], [], []>} : vector<16x8xf32>, vector<16x8xf32>, vector<16x16xf32> -> vector<16x16xf32>
    %cst_177 = arith.constant 0.353553385 : f32
    %436 = vector.broadcast %cst_177 : f32 to vector<16x16xf32>
    %437 = arith.mulf %435, %436 : vector<16x16xf32>
    %438 = arith.addf %437, %34 : vector<16x16xf32>
    %cst_178 = arith.constant dense<0xFF800000> : vector<16xf32>
    %439 = vector.multi_reduction <maximumf>, %438, %cst_178 [1] : vector<16x16xf32> to vector<16xf32>
    %cst_179 = arith.constant 0xFF800000 : f32
    %440 = vector.broadcast %cst_179 : f32 to vector<16xf32>
    %441 = arith.maximumf %440, %439 : vector<16xf32>
    %442 = vector.shape_cast %441 : vector<16xf32> to vector<16x1xf32>
    %443 = vector.broadcast %442 : vector<16x1xf32> to vector<16x16xf32>
    %444 = arith.subf %438, %443 : vector<16x16xf32>
    %445 = math.exp %444 : vector<16x16xf32>
    %cst_180 = arith.constant dense<0.000000e+00> : vector<16xf32>
    %446 = vector.multi_reduction <add>, %445, %cst_180 [1] : vector<16x16xf32> to vector<16xf32>
    %447 = vector.shape_cast %446 : vector<16xf32> to vector<16x1xf32>
    %448 = vector.broadcast %447 : vector<16x1xf32> to vector<16x16xf32>
    %449 = arith.divf %445, %448 : vector<16x16xf32>
    %450 = vector.extract_strided_slice %365 {offsets = [0, 24], sizes = [16, 8], strides = [1, 1]} : vector<16x32xf32> to vector<16x8xf32>
    %cst_181 = arith.constant dense<0.000000e+00> : vector<16x8xf32>
    %451 = tpu.matmul %449, %450, %cst_181 {dimension_numbers = #tpu.dot_dimension_numbers<[1], [0], [0], [1], [0, 0, 1, 1], [], []>} : vector<16x16xf32>, vector<16x8xf32>, vector<16x8xf32> -> vector<16x8xf32>
    %452 = vector.extract_strided_slice %362 {offsets = [24, 0], sizes = [8, 32], strides = [1, 1]} : vector<32x32xf32> to vector<8x32xf32>
    %cst_182 = arith.constant dense<0.000000e+00> : vector<16x32xf32>
    %453 = tpu.matmul %451, %452, %cst_182 {dimension_numbers = #tpu.dot_dimension_numbers<[1], [0], [0], [1], [0, 0, 1, 1], [], []>} : vector<16x8xf32>, vector<8x32xf32>, vector<16x32xf32> -> vector<16x32xf32>
    %454 = arith.addf %432, %453 : vector<16x32xf32>
    %455 = vector.extract_strided_slice %358 {offsets = [16, 0], sizes = [16, 32], strides = [1, 1]} : vector<32x32xf32> to vector<16x32xf32>
    %456 = vector.extract_strided_slice %359 {offsets = [16, 0], sizes = [16, 32], strides = [1, 1]} : vector<32x32xf32> to vector<16x32xf32>
    %457 = vector.extract_strided_slice %360 {offsets = [16, 0], sizes = [16, 32], strides = [1, 1]} : vector<32x32xf32> to vector<16x32xf32>
    %cst_183 = arith.constant 0.000000e+00 : f32
    %458 = vector.broadcast %cst_183 : f32 to vector<16x32xf32>
    %459 = vector.extract_strided_slice %455 {offsets = [0, 0], sizes = [16, 8], strides = [1, 1]} : vector<16x32xf32> to vector<16x8xf32>
    %460 = vector.extract_strided_slice %456 {offsets = [0, 0], sizes = [16, 8], strides = [1, 1]} : vector<16x32xf32> to vector<16x8xf32>
    %cst_184 = arith.constant dense<0.000000e+00> : vector<16x16xf32>
    %461 = tpu.matmul %459, %460, %cst_184 {dimension_numbers = #tpu.dot_dimension_numbers<[1], [1], [0], [0], [0, 0, 1, 0], [], []>} : vector<16x8xf32>, vector<16x8xf32>, vector<16x16xf32> -> vector<16x16xf32>
    %cst_185 = arith.constant 0.353553385 : f32
    %462 = vector.broadcast %cst_185 : f32 to vector<16x16xf32>
    %463 = arith.mulf %461, %462 : vector<16x16xf32>
    %464 = arith.addf %463, %42 : vector<16x16xf32>
    %cst_186 = arith.constant dense<0xFF800000> : vector<16xf32>
    %465 = vector.multi_reduction <maximumf>, %464, %cst_186 [1] : vector<16x16xf32> to vector<16xf32>
    %cst_187 = arith.constant 0xFF800000 : f32
    %466 = vector.broadcast %cst_187 : f32 to vector<16xf32>
    %467 = arith.maximumf %466, %465 : vector<16xf32>
    %468 = vector.shape_cast %467 : vector<16xf32> to vector<16x1xf32>
    %469 = vector.broadcast %468 : vector<16x1xf32> to vector<16x16xf32>
    %470 = arith.subf %464, %469 : vector<16x16xf32>
    %471 = math.exp %470 : vector<16x16xf32>
    %cst_188 = arith.constant dense<0.000000e+00> : vector<16xf32>
    %472 = vector.multi_reduction <add>, %471, %cst_188 [1] : vector<16x16xf32> to vector<16xf32>
    %473 = vector.shape_cast %472 : vector<16xf32> to vector<16x1xf32>
    %474 = vector.broadcast %473 : vector<16x1xf32> to vector<16x16xf32>
    %475 = arith.divf %471, %474 : vector<16x16xf32>
    %476 = vector.extract_strided_slice %457 {offsets = [0, 0], sizes = [16, 8], strides = [1, 1]} : vector<16x32xf32> to vector<16x8xf32>
    %cst_189 = arith.constant dense<0.000000e+00> : vector<16x8xf32>
    %477 = tpu.matmul %475, %476, %cst_189 {dimension_numbers = #tpu.dot_dimension_numbers<[1], [0], [0], [1], [0, 0, 1, 1], [], []>} : vector<16x16xf32>, vector<16x8xf32>, vector<16x8xf32> -> vector<16x8xf32>
    %478 = vector.extract_strided_slice %362 {offsets = [0, 0], sizes = [8, 32], strides = [1, 1]} : vector<32x32xf32> to vector<8x32xf32>
    %cst_190 = arith.constant dense<0.000000e+00> : vector<16x32xf32>
    %479 = tpu.matmul %477, %478, %cst_190 {dimension_numbers = #tpu.dot_dimension_numbers<[1], [0], [0], [1], [0, 0, 1, 1], [], []>} : vector<16x8xf32>, vector<8x32xf32>, vector<16x32xf32> -> vector<16x32xf32>
    %480 = arith.addf %458, %479 : vector<16x32xf32>
    %481 = vector.extract_strided_slice %455 {offsets = [0, 8], sizes = [16, 8], strides = [1, 1]} : vector<16x32xf32> to vector<16x8xf32>
    %482 = vector.extract_strided_slice %456 {offsets = [0, 8], sizes = [16, 8], strides = [1, 1]} : vector<16x32xf32> to vector<16x8xf32>
    %cst_191 = arith.constant dense<0.000000e+00> : vector<16x16xf32>
    %483 = tpu.matmul %481, %482, %cst_191 {dimension_numbers = #tpu.dot_dimension_numbers<[1], [1], [0], [0], [0, 0, 1, 0], [], []>} : vector<16x8xf32>, vector<16x8xf32>, vector<16x16xf32> -> vector<16x16xf32>
    %cst_192 = arith.constant 0.353553385 : f32
    %484 = vector.broadcast %cst_192 : f32 to vector<16x16xf32>
    %485 = arith.mulf %483, %484 : vector<16x16xf32>
    %486 = arith.addf %485, %42 : vector<16x16xf32>
    %cst_193 = arith.constant dense<0xFF800000> : vector<16xf32>
    %487 = vector.multi_reduction <maximumf>, %486, %cst_193 [1] : vector<16x16xf32> to vector<16xf32>
    %cst_194 = arith.constant 0xFF800000 : f32
    %488 = vector.broadcast %cst_194 : f32 to vector<16xf32>
    %489 = arith.maximumf %488, %487 : vector<16xf32>
    %490 = vector.shape_cast %489 : vector<16xf32> to vector<16x1xf32>
    %491 = vector.broadcast %490 : vector<16x1xf32> to vector<16x16xf32>
    %492 = arith.subf %486, %491 : vector<16x16xf32>
    %493 = math.exp %492 : vector<16x16xf32>
    %cst_195 = arith.constant dense<0.000000e+00> : vector<16xf32>
    %494 = vector.multi_reduction <add>, %493, %cst_195 [1] : vector<16x16xf32> to vector<16xf32>
    %495 = vector.shape_cast %494 : vector<16xf32> to vector<16x1xf32>
    %496 = vector.broadcast %495 : vector<16x1xf32> to vector<16x16xf32>
    %497 = arith.divf %493, %496 : vector<16x16xf32>
    %498 = vector.extract_strided_slice %457 {offsets = [0, 8], sizes = [16, 8], strides = [1, 1]} : vector<16x32xf32> to vector<16x8xf32>
    %cst_196 = arith.constant dense<0.000000e+00> : vector<16x8xf32>
    %499 = tpu.matmul %497, %498, %cst_196 {dimension_numbers = #tpu.dot_dimension_numbers<[1], [0], [0], [1], [0, 0, 1, 1], [], []>} : vector<16x16xf32>, vector<16x8xf32>, vector<16x8xf32> -> vector<16x8xf32>
    %500 = vector.extract_strided_slice %362 {offsets = [8, 0], sizes = [8, 32], strides = [1, 1]} : vector<32x32xf32> to vector<8x32xf32>
    %cst_197 = arith.constant dense<0.000000e+00> : vector<16x32xf32>
    %501 = tpu.matmul %499, %500, %cst_197 {dimension_numbers = #tpu.dot_dimension_numbers<[1], [0], [0], [1], [0, 0, 1, 1], [], []>} : vector<16x8xf32>, vector<8x32xf32>, vector<16x32xf32> -> vector<16x32xf32>
    %502 = arith.addf %480, %501 : vector<16x32xf32>
    %503 = vector.extract_strided_slice %455 {offsets = [0, 16], sizes = [16, 8], strides = [1, 1]} : vector<16x32xf32> to vector<16x8xf32>
    %504 = vector.extract_strided_slice %456 {offsets = [0, 16], sizes = [16, 8], strides = [1, 1]} : vector<16x32xf32> to vector<16x8xf32>
    %cst_198 = arith.constant dense<0.000000e+00> : vector<16x16xf32>
    %505 = tpu.matmul %503, %504, %cst_198 {dimension_numbers = #tpu.dot_dimension_numbers<[1], [1], [0], [0], [0, 0, 1, 0], [], []>} : vector<16x8xf32>, vector<16x8xf32>, vector<16x16xf32> -> vector<16x16xf32>
    %cst_199 = arith.constant 0.353553385 : f32
    %506 = vector.broadcast %cst_199 : f32 to vector<16x16xf32>
    %507 = arith.mulf %505, %506 : vector<16x16xf32>
    %508 = arith.addf %507, %42 : vector<16x16xf32>
    %cst_200 = arith.constant dense<0xFF800000> : vector<16xf32>
    %509 = vector.multi_reduction <maximumf>, %508, %cst_200 [1] : vector<16x16xf32> to vector<16xf32>
    %cst_201 = arith.constant 0xFF800000 : f32
    %510 = vector.broadcast %cst_201 : f32 to vector<16xf32>
    %511 = arith.maximumf %510, %509 : vector<16xf32>
    %512 = vector.shape_cast %511 : vector<16xf32> to vector<16x1xf32>
    %513 = vector.broadcast %512 : vector<16x1xf32> to vector<16x16xf32>
    %514 = arith.subf %508, %513 : vector<16x16xf32>
    %515 = math.exp %514 : vector<16x16xf32>
    %cst_202 = arith.constant dense<0.000000e+00> : vector<16xf32>
    %516 = vector.multi_reduction <add>, %515, %cst_202 [1] : vector<16x16xf32> to vector<16xf32>
    %517 = vector.shape_cast %516 : vector<16xf32> to vector<16x1xf32>
    %518 = vector.broadcast %517 : vector<16x1xf32> to vector<16x16xf32>
    %519 = arith.divf %515, %518 : vector<16x16xf32>
    %520 = vector.extract_strided_slice %457 {offsets = [0, 16], sizes = [16, 8], strides = [1, 1]} : vector<16x32xf32> to vector<16x8xf32>
    %cst_203 = arith.constant dense<0.000000e+00> : vector<16x8xf32>
    %521 = tpu.matmul %519, %520, %cst_203 {dimension_numbers = #tpu.dot_dimension_numbers<[1], [0], [0], [1], [0, 0, 1, 1], [], []>} : vector<16x16xf32>, vector<16x8xf32>, vector<16x8xf32> -> vector<16x8xf32>
    %522 = vector.extract_strided_slice %362 {offsets = [16, 0], sizes = [8, 32], strides = [1, 1]} : vector<32x32xf32> to vector<8x32xf32>
    %cst_204 = arith.constant dense<0.000000e+00> : vector<16x32xf32>
    %523 = tpu.matmul %521, %522, %cst_204 {dimension_numbers = #tpu.dot_dimension_numbers<[1], [0], [0], [1], [0, 0, 1, 1], [], []>} : vector<16x8xf32>, vector<8x32xf32>, vector<16x32xf32> -> vector<16x32xf32>
    %524 = arith.addf %502, %523 : vector<16x32xf32>
    %525 = vector.extract_strided_slice %455 {offsets = [0, 24], sizes = [16, 8], strides = [1, 1]} : vector<16x32xf32> to vector<16x8xf32>
    %526 = vector.extract_strided_slice %456 {offsets = [0, 24], sizes = [16, 8], strides = [1, 1]} : vector<16x32xf32> to vector<16x8xf32>
    %cst_205 = arith.constant dense<0.000000e+00> : vector<16x16xf32>
    %527 = tpu.matmul %525, %526, %cst_205 {dimension_numbers = #tpu.dot_dimension_numbers<[1], [1], [0], [0], [0, 0, 1, 0], [], []>} : vector<16x8xf32>, vector<16x8xf32>, vector<16x16xf32> -> vector<16x16xf32>
    %cst_206 = arith.constant 0.353553385 : f32
    %528 = vector.broadcast %cst_206 : f32 to vector<16x16xf32>
    %529 = arith.mulf %527, %528 : vector<16x16xf32>
    %530 = arith.addf %529, %42 : vector<16x16xf32>
    %cst_207 = arith.constant dense<0xFF800000> : vector<16xf32>
    %531 = vector.multi_reduction <maximumf>, %530, %cst_207 [1] : vector<16x16xf32> to vector<16xf32>
    %cst_208 = arith.constant 0xFF800000 : f32
    %532 = vector.broadcast %cst_208 : f32 to vector<16xf32>
    %533 = arith.maximumf %532, %531 : vector<16xf32>
    %534 = vector.shape_cast %533 : vector<16xf32> to vector<16x1xf32>
    %535 = vector.broadcast %534 : vector<16x1xf32> to vector<16x16xf32>
    %536 = arith.subf %530, %535 : vector<16x16xf32>
    %537 = math.exp %536 : vector<16x16xf32>
    %cst_209 = arith.constant dense<0.000000e+00> : vector<16xf32>
    %538 = vector.multi_reduction <add>, %537, %cst_209 [1] : vector<16x16xf32> to vector<16xf32>
    %539 = vector.shape_cast %538 : vector<16xf32> to vector<16x1xf32>
    %540 = vector.broadcast %539 : vector<16x1xf32> to vector<16x16xf32>
    %541 = arith.divf %537, %540 : vector<16x16xf32>
    %542 = vector.extract_strided_slice %457 {offsets = [0, 24], sizes = [16, 8], strides = [1, 1]} : vector<16x32xf32> to vector<16x8xf32>
    %cst_210 = arith.constant dense<0.000000e+00> : vector<16x8xf32>
    %543 = tpu.matmul %541, %542, %cst_210 {dimension_numbers = #tpu.dot_dimension_numbers<[1], [0], [0], [1], [0, 0, 1, 1], [], []>} : vector<16x16xf32>, vector<16x8xf32>, vector<16x8xf32> -> vector<16x8xf32>
    %544 = vector.extract_strided_slice %362 {offsets = [24, 0], sizes = [8, 32], strides = [1, 1]} : vector<32x32xf32> to vector<8x32xf32>
    %cst_211 = arith.constant dense<0.000000e+00> : vector<16x32xf32>
    %545 = tpu.matmul %543, %544, %cst_211 {dimension_numbers = #tpu.dot_dimension_numbers<[1], [0], [0], [1], [0, 0, 1, 1], [], []>} : vector<16x8xf32>, vector<8x32xf32>, vector<16x32xf32> -> vector<16x32xf32>
    %546 = arith.addf %524, %545 : vector<16x32xf32>
    %547 = tpu.concatenate %454, %546 in 0 : vector<16x32xf32>, vector<16x32xf32> -> vector<32x32xf32>
    %548 = arith.addf %324, %547 : vector<32x32xf32>
    %c1_212 = arith.constant 1 : index
    %c0_213 = arith.constant 0 : index
    %c0_214 = arith.constant 0 : index
    %549 = vector.load %arg15[%c1_212, %c0_213, %c0_214] : memref<2x1x32xf32, #tpu.memory_space<vmem>>, vector<1x1x32xf32>
    %550 = vector.shape_cast %549 : vector<1x1x32xf32> to vector<1x32xf32>
    %551 = vector.broadcast %550 : vector<1x32xf32> to vector<32x32xf32>
    %552 = arith.addf %548, %551 : vector<32x32xf32>
    %c1_215 = arith.constant 1 : index
    %c0_216 = arith.constant 0 : index
    %c0_217 = arith.constant 0 : index
    %553 = vector.load %arg16[%c1_215, %c0_216, %c0_217] : memref<2x1x32xf32, #tpu.memory_space<vmem>>, vector<1x1x32xf32>
    %554 = vector.shape_cast %553 : vector<1x1x32xf32> to vector<1x32xf32>
    %c1_218 = arith.constant 1 : index
    %c0_219 = arith.constant 0 : index
    %c0_220 = arith.constant 0 : index
    %555 = vector.load %arg17[%c1_218, %c0_219, %c0_220] : memref<2x1x32xf32, #tpu.memory_space<vmem>>, vector<1x1x32xf32>
    %556 = vector.shape_cast %555 : vector<1x1x32xf32> to vector<1x32xf32>
    %cst_221 = arith.constant dense<0.000000e+00> : vector<32xf32>
    %557 = vector.multi_reduction <add>, %552, %cst_221 [1] : vector<32x32xf32> to vector<32xf32>
    %558 = vector.shape_cast %557 : vector<32xf32> to vector<32x1xf32>
    %cst_222 = arith.constant 3.200000e+01 : f32
    %559 = vector.broadcast %cst_222 : f32 to vector<32x1xf32>
    %560 = arith.divf %558, %559 : vector<32x1xf32>
    %561 = vector.broadcast %560 : vector<32x1xf32> to vector<32x32xf32>
    %562 = arith.subf %552, %561 : vector<32x32xf32>
    %563 = arith.mulf %562, %562 : vector<32x32xf32>
    %cst_223 = arith.constant dense<0.000000e+00> : vector<32xf32>
    %564 = vector.multi_reduction <add>, %563, %cst_223 [1] : vector<32x32xf32> to vector<32xf32>
    %565 = vector.shape_cast %564 : vector<32xf32> to vector<32x1xf32>
    %cst_224 = arith.constant 3.200000e+01 : f32
    %566 = vector.broadcast %cst_224 : f32 to vector<32x1xf32>
    %567 = arith.divf %565, %566 : vector<32x1xf32>
    %568 = vector.broadcast %560 : vector<32x1xf32> to vector<32x32xf32>
    %569 = arith.subf %552, %568 : vector<32x32xf32>
    %cst_225 = arith.constant 9.99999974E-6 : f32
    %570 = vector.broadcast %cst_225 : f32 to vector<32x1xf32>
    %571 = arith.addf %567, %570 : vector<32x1xf32>
    %572 = math.rsqrt %571 : vector<32x1xf32>
    %573 = vector.broadcast %572 : vector<32x1xf32> to vector<32x32xf32>
    %574 = arith.mulf %569, %573 : vector<32x32xf32>
    %575 = vector.broadcast %554 : vector<1x32xf32> to vector<32x32xf32>
    %576 = arith.mulf %574, %575 : vector<32x32xf32>
    %577 = vector.broadcast %556 : vector<1x32xf32> to vector<32x32xf32>
    %578 = arith.addf %576, %577 : vector<32x32xf32>
    %c1_226 = arith.constant 1 : index
    %c0_227 = arith.constant 0 : index
    %c0_228 = arith.constant 0 : index
    %579 = vector.load %arg18[%c1_226, %c0_227, %c0_228] : memref<2x32x128xf32, #tpu.memory_space<vmem>>, vector<1x32x128xf32>
    %580 = vector.shape_cast %579 : vector<1x32x128xf32> to vector<32x128xf32>
    %cst_229 = arith.constant dense<0.000000e+00> : vector<32x128xf32>
    %581 = tpu.matmul %578, %580, %cst_229 {dimension_numbers = #tpu.dot_dimension_numbers<[1], [0], [0], [1], [0, 0, 1, 1], [], []>} : vector<32x32xf32>, vector<32x128xf32>, vector<32x128xf32> -> vector<32x128xf32>
    %c1_230 = arith.constant 1 : index
    %c0_231 = arith.constant 0 : index
    %c0_232 = arith.constant 0 : index
    %582 = vector.load %arg19[%c1_230, %c0_231, %c0_232] : memref<2x1x128xf32, #tpu.memory_space<vmem>>, vector<1x1x128xf32>
    %583 = vector.shape_cast %582 : vector<1x1x128xf32> to vector<1x128xf32>
    %584 = vector.broadcast %583 : vector<1x128xf32> to vector<32x128xf32>
    %585 = arith.addf %581, %584 : vector<32x128xf32>
    %cst_233 = arith.constant 5.000000e-01 : f32
    %586 = vector.broadcast %cst_233 : f32 to vector<32x128xf32>
    %587 = arith.mulf %586, %585 : vector<32x128xf32>
    %cst_234 = arith.constant 4.471500e-02 : f32
    %588 = vector.broadcast %cst_234 : f32 to vector<32x128xf32>
    %589 = arith.mulf %588, %585 : vector<32x128xf32>
    %590 = arith.mulf %589, %585 : vector<32x128xf32>
    %591 = arith.mulf %590, %585 : vector<32x128xf32>
    %592 = arith.addf %585, %591 : vector<32x128xf32>
    %cst_235 = arith.constant 0.797884583 : f32
    %593 = vector.broadcast %cst_235 : f32 to vector<32x128xf32>
    %594 = arith.mulf %593, %592 : vector<32x128xf32>
    %595 = math.tanh %594 : vector<32x128xf32>
    %cst_236 = arith.constant 1.000000e+00 : f32
    %596 = vector.broadcast %cst_236 : f32 to vector<32x128xf32>
    %597 = arith.addf %596, %595 : vector<32x128xf32>
    %598 = arith.mulf %587, %597 : vector<32x128xf32>
    %c1_237 = arith.constant 1 : index
    %c0_238 = arith.constant 0 : index
    %c0_239 = arith.constant 0 : index
    %599 = vector.load %arg20[%c1_237, %c0_238, %c0_239] : memref<2x128x32xf32, #tpu.memory_space<vmem>>, vector<1x128x32xf32>
    %600 = vector.shape_cast %599 : vector<1x128x32xf32> to vector<128x32xf32>
    %cst_240 = arith.constant dense<0.000000e+00> : vector<32x32xf32>
    %601 = tpu.matmul %598, %600, %cst_240 {dimension_numbers = #tpu.dot_dimension_numbers<[1], [0], [0], [1], [0, 0, 1, 1], [], []>} : vector<32x128xf32>, vector<128x32xf32>, vector<32x32xf32> -> vector<32x32xf32>
    %c1_241 = arith.constant 1 : index
    %c0_242 = arith.constant 0 : index
    %c0_243 = arith.constant 0 : index
    %602 = vector.load %arg21[%c1_241, %c0_242, %c0_243] : memref<2x1x32xf32, #tpu.memory_space<vmem>>, vector<1x1x32xf32>
    %603 = vector.shape_cast %602 : vector<1x1x32xf32> to vector<1x32xf32>
    %604 = vector.broadcast %603 : vector<1x32xf32> to vector<32x32xf32>
    %605 = arith.addf %601, %604 : vector<32x32xf32>
    %606 = arith.addf %552, %605 : vector<32x32xf32>
    %c0_244 = arith.constant 0 : index
    %c0_245 = arith.constant 0 : index
    %607 = vector.load %arg27[%c0_244, %c0_245] : memref<32x32xf32, #tpu.memory_space<vmem>>, vector<32x32xf32>
    tpu.vector_store %arg27[%c0_244, %c0_245], %606 {strides = array<i32>} : memref<32x32xf32, #tpu.memory_space<vmem>>, vector<32x32xf32>,
    %c0_246 = arith.constant 0 : index
    %608 = memref.load %arg1[%c0_246] : memref<2xi32, #tpu.memory_space<smem>>
    %c0_i32 = arith.constant 0 : i32
    %c8_i32 = arith.constant 8 : i32
    %609 = arith.maxsi %c0_i32, %608 : i32
    %610 = arith.minsi %c8_i32, %609 : i32
    %c0_i32_247 = arith.constant 0 : i32
    %611 = arith.addi %c0_i32_247, %610 : i32
    %612 = arith.index_cast %611 : i32 to index
    %c0_248 = arith.constant 0 : index
    %613 = vector.load %arg27[%612, %c0_248] : memref<32x32xf32, #tpu.memory_space<vmem>>, vector<1x32xf32>
    %c1_249 = arith.constant 1 : index
    %614 = memref.load %arg1[%c1_249] : memref<2xi32, #tpu.memory_space<smem>>
    %c0_i32_250 = arith.constant 0 : i32
    %c8_i32_251 = arith.constant 8 : i32
    %615 = arith.maxsi %c0_i32_250, %614 : i32
    %616 = arith.minsi %c8_i32_251, %615 : i32
    %c16_i32 = arith.constant 16 : i32
    %617 = arith.addi %c16_i32, %616 : i32
    %618 = arith.index_cast %617 : i32 to index
    %c0_252 = arith.constant 0 : index
    %619 = vector.load %arg27[%618, %c0_252] : memref<32x32xf32, #tpu.memory_space<vmem>>, vector<1x32xf32>
    %620 = tpu.concatenate %613, %619 in 0 : vector<1x32xf32>, vector<1x32xf32> -> vector<2x32xf32>
    %c0_253 = arith.constant 0 : index
    %c0_254 = arith.constant 0 : index
    %621 = vector.load %arg22[%c0_253, %c0_254] : memref<1x32xf32, #tpu.memory_space<vmem>>, vector<1x32xf32>
    %c0_255 = arith.constant 0 : index
    %c0_256 = arith.constant 0 : index
    %622 = vector.load %arg23[%c0_255, %c0_256] : memref<1x32xf32, #tpu.memory_space<vmem>>, vector<1x32xf32>
    %cst_257 = arith.constant dense<0.000000e+00> : vector<2xf32>
    %623 = vector.multi_reduction <add>, %620, %cst_257 [1] : vector<2x32xf32> to vector<2xf32>
    %624 = vector.shape_cast %623 : vector<2xf32> to vector<2x1xf32>
    %cst_258 = arith.constant 3.200000e+01 : f32
    %625 = vector.broadcast %cst_258 : f32 to vector<2x1xf32>
    %626 = arith.divf %624, %625 : vector<2x1xf32>
    %627 = vector.broadcast %626 : vector<2x1xf32> to vector<2x32xf32>
    %628 = arith.subf %620, %627 : vector<2x32xf32>
    %629 = arith.mulf %628, %628 : vector<2x32xf32>
    %cst_259 = arith.constant dense<0.000000e+00> : vector<2xf32>
    %630 = vector.multi_reduction <add>, %629, %cst_259 [1] : vector<2x32xf32> to vector<2xf32>
    %631 = vector.shape_cast %630 : vector<2xf32> to vector<2x1xf32>
    %cst_260 = arith.constant 3.200000e+01 : f32
    %632 = vector.broadcast %cst_260 : f32 to vector<2x1xf32>
    %633 = arith.divf %631, %632 : vector<2x1xf32>
    %634 = vector.broadcast %626 : vector<2x1xf32> to vector<2x32xf32>
    %635 = arith.subf %620, %634 : vector<2x32xf32>
    %cst_261 = arith.constant 9.99999974E-6 : f32
    %636 = vector.broadcast %cst_261 : f32 to vector<2x1xf32>
    %637 = arith.addf %633, %636 : vector<2x1xf32>
    %638 = math.rsqrt %637 : vector<2x1xf32>
    %639 = vector.broadcast %638 : vector<2x1xf32> to vector<2x32xf32>
    %640 = arith.mulf %635, %639 : vector<2x32xf32>
    %641 = vector.broadcast %621 : vector<1x32xf32> to vector<2x32xf32>
    %642 = arith.mulf %640, %641 : vector<2x32xf32>
    %643 = vector.broadcast %622 : vector<1x32xf32> to vector<2x32xf32>
    %644 = arith.addf %642, %643 : vector<2x32xf32>
    %c0_262 = arith.constant 0 : index
    %c0_263 = arith.constant 0 : index
    %645 = vector.load %arg24[%c0_262, %c0_263] : memref<32x1xf32, #tpu.memory_space<vmem>>, vector<32x1xf32>
    %cst_264 = arith.constant dense<0.000000e+00> : vector<2x1xf32>
    %646 = tpu.matmul %644, %645, %cst_264 {dimension_numbers = #tpu.dot_dimension_numbers<[1], [0], [0], [1], [0, 0, 1, 1], [], []>} : vector<2x32xf32>, vector<32x1xf32>, vector<2x1xf32> -> vector<2x1xf32>
    %c0_265 = arith.constant 0 : index
    %c0_266 = arith.constant 0 : index
    %647 = vector.load %arg25[%c0_265, %c0_266] : memref<1x1xf32, #tpu.memory_space<vmem>>, vector<1x1xf32>
    %648 = vector.broadcast %647 : vector<1x1xf32> to vector<2x1xf32>
    %649 = arith.addf %646, %648 : vector<2x1xf32>
    %cst_267 = arith.constant 0.000000e+00 : f32
    %650 = vector.broadcast %cst_267 : f32 to vector<2x1xf32>
    %651 = arith.maximumf %649, %650 : vector<2x1xf32>
    %c0_268 = arith.constant 0 : index
    %c0_269 = arith.constant 0 : index
    %652 = vector.load %arg26[%c0_268, %c0_269] : memref<2x1xf32, #tpu.memory_space<vmem>>, vector<2x1xf32>
    tpu.vector_store %arg26[%c0_268, %c0_269], %651 {strides = array<i32>} : memref<2x1xf32, #tpu.memory_space<vmem>>, vector<2x1xf32>,
    return
  }
  func.func @transform_0(%arg0: i32, %arg1: memref<2xi32, #tpu.memory_space<smem>>) -> (i32, i32) {
    %c0_i32 = arith.constant 0 : i32
    %c0_i32_0 = arith.constant 0 : i32
    %c0_i32_1 = arith.constant 0 : i32
    return %c0_i32, %c0_i32_0 : i32, i32
  }
  func.func @transform_1(%arg0: i32, %arg1: memref<2xi32, #tpu.memory_space<smem>>) -> (i32, i32) {
    %c0_i32 = arith.constant 0 : i32
    %c0_i32_0 = arith.constant 0 : i32
    %c0_i32_1 = arith.constant 0 : i32
    return %c0_i32, %c0_i32_0 : i32, i32
  }
  func.func @transform_2(%arg0: i32, %arg1: memref<2xi32, #tpu.memory_space<smem>>) -> (i32, i32) {
    %c0_i32 = arith.constant 0 : i32
    %c0_i32_0 = arith.constant 0 : i32
    %c0_i32_1 = arith.constant 0 : i32
    return %c0_i32, %c0_i32_0 : i32, i32
  }
  func.func @transform_3(%arg0: i32, %arg1: memref<2xi32, #tpu.memory_space<smem>>) -> (i32, i32) {
    %c0_i32 = arith.constant 0 : i32
    %c0_i32_0 = arith.constant 0 : i32
    %c0_i32_1 = arith.constant 0 : i32
    return %c0_i32, %c0_i32_0 : i32, i32
  }
  func.func @transform_4(%arg0: i32, %arg1: memref<2xi32, #tpu.memory_space<smem>>) -> (i32, i32) {
    %c0_i32 = arith.constant 0 : i32
    %c0_i32_0 = arith.constant 0 : i32
    %c0_i32_1 = arith.constant 0 : i32
    return %c0_i32, %c0_i32_0 : i32, i32
  }
  func.func @transform_5(%arg0: i32, %arg1: memref<2xi32, #tpu.memory_space<smem>>) -> (i32, i32) {
    %c0_i32 = arith.constant 0 : i32
    %c0_i32_0 = arith.constant 0 : i32
    %c0_i32_1 = arith.constant 0 : i32
    return %c0_i32, %c0_i32_0 : i32, i32
  }
  func.func @transform_6(%arg0: i32, %arg1: memref<2xi32, #tpu.memory_space<smem>>) -> (i32, i32) {
    %c0_i32 = arith.constant 0 : i32
    %c0_i32_0 = arith.constant 0 : i32
    %c0_i32_1 = arith.constant 0 : i32
    return %c0_i32, %c0_i32_0 : i32, i32
  }
  func.func @transform_7(%arg0: i32, %arg1: memref<2xi32, #tpu.memory_space<smem>>) -> (i32, i32) {
    %c0_i32 = arith.constant 0 : i32
    %c0_i32_0 = arith.constant 0 : i32
    %c0_i32_1 = arith.constant 0 : i32
    return %c0_i32, %c0_i32_0 : i32, i32
  }
  func.func @transform_8(%arg0: i32, %arg1: memref<2xi32, #tpu.memory_space<smem>>) -> (i32, i32, i32) {
    %c0_i32 = arith.constant 0 : i32
    %c0_i32_0 = arith.constant 0 : i32
    %c0_i32_1 = arith.constant 0 : i32
    %c0_i32_2 = arith.constant 0 : i32
    return %c0_i32, %c0_i32_0, %c0_i32_1 : i32, i32, i32
  }
  func.func @transform_9(%arg0: i32, %arg1: memref<2xi32, #tpu.memory_space<smem>>) -> (i32, i32, i32) {
    %c0_i32 = arith.constant 0 : i32
    %c0_i32_0 = arith.constant 0 : i32
    %c0_i32_1 = arith.constant 0 : i32
    %c0_i32_2 = arith.constant 0 : i32
    return %c0_i32, %c0_i32_0, %c0_i32_1 : i32, i32, i32
  }
  func.func @transform_10(%arg0: i32, %arg1: memref<2xi32, #tpu.memory_space<smem>>) -> (i32, i32, i32) {
    %c0_i32 = arith.constant 0 : i32
    %c0_i32_0 = arith.constant 0 : i32
    %c0_i32_1 = arith.constant 0 : i32
    %c0_i32_2 = arith.constant 0 : i32
    return %c0_i32, %c0_i32_0, %c0_i32_1 : i32, i32, i32
  }
  func.func @transform_11(%arg0: i32, %arg1: memref<2xi32, #tpu.memory_space<smem>>) -> (i32, i32, i32) {
    %c0_i32 = arith.constant 0 : i32
    %c0_i32_0 = arith.constant 0 : i32
    %c0_i32_1 = arith.constant 0 : i32
    %c0_i32_2 = arith.constant 0 : i32
    return %c0_i32, %c0_i32_0, %c0_i32_1 : i32, i32, i32
  }
  func.func @transform_12(%arg0: i32, %arg1: memref<2xi32, #tpu.memory_space<smem>>) -> (i32, i32, i32) {
    %c0_i32 = arith.constant 0 : i32
    %c0_i32_0 = arith.constant 0 : i32
    %c0_i32_1 = arith.constant 0 : i32
    %c0_i32_2 = arith.constant 0 : i32
    return %c0_i32, %c0_i32_0, %c0_i32_1 : i32, i32, i32
  }
  func.func @transform_13(%arg0: i32, %arg1: memref<2xi32, #tpu.memory_space<smem>>) -> (i32, i32, i32) {
    %c0_i32 = arith.constant 0 : i32
    %c0_i32_0 = arith.constant 0 : i32
    %c0_i32_1 = arith.constant 0 : i32
    %c0_i32_2 = arith.constant 0 : i32
    return %c0_i32, %c0_i32_0, %c0_i32_1 : i32, i32, i32
  }
  func.func @transform_14(%arg0: i32, %arg1: memref<2xi32, #tpu.memory_space<smem>>) -> (i32, i32, i32) {
    %c0_i32 = arith.constant 0 : i32
    %c0_i32_0 = arith.constant 0 : i32
    %c0_i32_1 = arith.constant 0 : i32
    %c0_i32_2 = arith.constant 0 : i32
    return %c0_i32, %c0_i32_0, %c0_i32_1 : i32, i32, i32
  }
  func.func @transform_15(%arg0: i32, %arg1: memref<2xi32, #tpu.memory_space<smem>>) -> (i32, i32, i32) {
    %c0_i32 = arith.constant 0 : i32
    %c0_i32_0 = arith.constant 0 : i32
    %c0_i32_1 = arith.constant 0 : i32
    %c0_i32_2 = arith.constant 0 : i32
    return %c0_i32, %c0_i32_0, %c0_i32_1 : i32, i32, i32
  }
  func.func @transform_16(%arg0: i32, %arg1: memref<2xi32, #tpu.memory_space<smem>>) -> (i32, i32, i32) {
    %c0_i32 = arith.constant 0 : i32
    %c0_i32_0 = arith.constant 0 : i32
    %c0_i32_1 = arith.constant 0 : i32
    %c0_i32_2 = arith.constant 0 : i32
    return %c0_i32, %c0_i32_0, %c0_i32_1 : i32, i32, i32
  }
  func.func @transform_17(%arg0: i32, %arg1: memref<2xi32, #tpu.memory_space<smem>>) -> (i32, i32, i32) {
    %c0_i32 = arith.constant 0 : i32
    %c0_i32_0 = arith.constant 0 : i32
    %c0_i32_1 = arith.constant 0 : i32
    %c0_i32_2 = arith.constant 0 : i32
    return %c0_i32, %c0_i32_0, %c0_i32_1 : i32, i32, i32
  }
  func.func @transform_18(%arg0: i32, %arg1: memref<2xi32, #tpu.memory_space<smem>>) -> (i32, i32, i32) {
    %c0_i32 = arith.constant 0 : i32
    %c0_i32_0 = arith.constant 0 : i32
    %c0_i32_1 = arith.constant 0 : i32
    %c0_i32_2 = arith.constant 0 : i32
    return %c0_i32, %c0_i32_0, %c0_i32_1 : i32, i32, i32
  }
  func.func @transform_19(%arg0: i32, %arg1: memref<2xi32, #tpu.memory_space<smem>>) -> (i32, i32, i32) {
    %c0_i32 = arith.constant 0 : i32
    %c0_i32_0 = arith.constant 0 : i32
    %c0_i32_1 = arith.constant 0 : i32
    %c0_i32_2 = arith.constant 0 : i32
    return %c0_i32, %c0_i32_0, %c0_i32_1 : i32, i32, i32
  }
  func.func @transform_20(%arg0: i32, %arg1: memref<2xi32, #tpu.memory_space<smem>>) -> (i32, i32) {
    %c0_i32 = arith.constant 0 : i32
    %c0_i32_0 = arith.constant 0 : i32
    %c0_i32_1 = arith.constant 0 : i32
    return %c0_i32, %c0_i32_0 : i32, i32
  }
  func.func @transform_21(%arg0: i32, %arg1: memref<2xi32, #tpu.memory_space<smem>>) -> (i32, i32) {
    %c0_i32 = arith.constant 0 : i32
    %c0_i32_0 = arith.constant 0 : i32
    %c0_i32_1 = arith.constant 0 : i32
    return %c0_i32, %c0_i32_0 : i32, i32
  }
  func.func @transform_22(%arg0: i32, %arg1: memref<2xi32, #tpu.memory_space<smem>>) -> (i32, i32) {
    %c0_i32 = arith.constant 0 : i32
    %c0_i32_0 = arith.constant 0 : i32
    %c0_i32_1 = arith.constant 0 : i32
    return %c0_i32, %c0_i32_0 : i32, i32
  }
  func.func @transform_23(%arg0: i32, %arg1: memref<2xi32, #tpu.memory_space<smem>>) -> (i32, i32) {
    %c0_i32 = arith.constant 0 : i32
    %c0_i32_0 = arith.constant 0 : i32
    %c0_i32_1 = arith.constant 0 : i32
    return %c0_i32, %c0_i32_0 : i32, i32
  }
  func.func @transform_24(%arg0: i32, %arg1: memref<2xi32, #tpu.memory_space<smem>>) -> (i32, i32) {
    %c0_i32 = arith.constant 0 : i32
    %c0_i32_0 = arith.constant 0 : i32
    %c0_i32_1 = arith.constant 0 : i32
    return %c0_i32, %c0_i32_0 : i32, i32
  }
}

</mosaic_0001>

<llo_original>
// kernel: tpu_custom_call.1
$region0: #{tpu_custom_call.1}
  #allocation0 [shape = 'u32[]', space=smem, size = 0x4, offset = 0x4, fixed_abs, tag = 'smem constant byte address 0x4 - core index']
  #allocation1 [shape = 'u32[72,128]{1,0:T(1,128)}', space=vmem, size = 0x9000, scoped, tag = 'internal scratch']
  #allocation2 [shape = 'f32[32,32]{1,0:T(8,128)}', space=vmem, size = 0x4000, scoped, tag = 'scratch operand']
  #allocation3 [shape = 's32[1]{0}', space=sflag, size = 0x4, scoped, tag = 'scoped memory for tpu_custom_call.1']
  #allocation4 [shape = 'u8[512]{0}', space=smem, size = 0x200, scoped, tag = 'prefetched SMEM operand 0']
  #allocation5 [shape = 'f32[1,1]{1,0:T(1,128)S(1)}', space=vmem, size = 0x200, scoped, tag = 'scoped memory for tpu_custom_call.1']
  %s0 = inlined_call_operand.vmem [shape: s32[2], index: 0, kind: input, shape index: {}]
  %s1 = inlined_call_operand.vmem [shape: f32[2,16], index: 1, kind: input, shape index: {}]
  %s2 = inlined_call_operand.vmem [shape: f32[16,6], index: 2, kind: input, shape index: {}]
  %s3 = inlined_call_operand.vmem [shape: f32[2,16], index: 3, kind: input, shape index: {}]
  %s4 = inlined_call_operand.vmem [shape: f32[16,32], index: 4, kind: input, shape index: {}]
  %s5 = inlined_call_operand.vmem [shape: f32[1,32], index: 5, kind: input, shape index: {}]
  %s6 = inlined_call_operand.vmem [shape: f32[6,32], index: 6, kind: input, shape index: {}]
  %s7 = inlined_call_operand.vmem [shape: f32[1,32], index: 7, kind: input, shape index: {}]
  %s8 = inlined_call_operand.vmem [shape: f32[16,32], index: 8, kind: input, shape index: {}]
  %s9 = inlined_call_operand.vmem [shape: f32[2,1,32], index: 9, kind: input, shape index: {}]
  %s10 = inlined_call_operand.vmem [shape: f32[2,1,32], index: 10, kind: input, shape index: {}]
  %s11 = inlined_call_operand.vmem [shape: f32[2,32,96], index: 11, kind: input, shape index: {}]
  %s12 = inlined_call_operand.vmem [shape: f32[2,1,96], index: 12, kind: input, shape index: {}]
  %s13 = inlined_call_operand.vmem [shape: f32[2,32,32], index: 13, kind: input, shape index: {}]
  %s14 = inlined_call_operand.vmem [shape: f32[2,1,32], index: 14, kind: input, shape index: {}]
  %s15 = inlined_call_operand.vmem [shape: f32[2,1,32], index: 15, kind: input, shape index: {}]
  %s16 = inlined_call_operand.vmem [shape: f32[2,1,32], index: 16, kind: input, shape index: {}]
  %s17 = inlined_call_operand.vmem [shape: f32[2,32,128], index: 17, kind: input, shape index: {}]
  %s18 = inlined_call_operand.vmem [shape: f32[2,1,128], index: 18, kind: input, shape index: {}]
  %s19 = inlined_call_operand.vmem [shape: f32[2,128,32], index: 19, kind: input, shape index: {}]
  %s20 = inlined_call_operand.vmem [shape: f32[2,1,32], index: 20, kind: input, shape index: {}]
  %s21 = inlined_call_operand.vmem [shape: f32[1,32], index: 21, kind: input, shape index: {}]
  %s22 = inlined_call_operand.vmem [shape: f32[1,32], index: 22, kind: input, shape index: {}]
  %s23 = inlined_call_operand.vmem [shape: f32[32,1], index: 23, kind: input, shape index: {}]
  %s24 = inlined_call_operand.<no memory space> [shape: f32[1,1], index: 24, kind: input, shape index: {}]
  %s25 = inlined_call_operand.vmem [shape: f32[2,1], index: 25, kind: output, shape index: {}]
  %s26 = sld [smem:[#allocation0]]
  $region106: #{tpu_custom_call.1} parent=0
    _
  %s28 = ssub.s32 1, %s26
  %s29 = scalar_select 0, %s28, %s26
  %s31 = sshll.u32 %s0, 4
  %s32 = int_to_ptr.vmem [resolvable:$true] %s31
  %34 = dma.vmem_to_smem %s32, 16, [#allocation4], [#allocation3]
  %v35 = vstv %s24
  %36 = vst [vmem:[#allocation5] sm:$0x1] %v35
  %38 = dma.done [#allocation3], 16
  %39 = sfence
  // Predicated region
  $region2: #{tpu_custom_call.1} parent=0 // pred_check
    _
  $region3: #{tpu_custom_call.1} parent=0 // pred_check_branch
    %41 = sbr.rel (0) target = $region5
  $region4: #{tpu_custom_call.1} parent=0 // pred_region
    _
  $region5: #{tpu_custom_call.1} parent=0 // pred_fallthru
    _
  // Predicated region
  $region6: #{tpu_custom_call.1} parent=0 // pred_check
    _
  $region7: #{tpu_custom_call.1} parent=0 // pred_check_branch
    %43 = sbr.rel (0) target = $region9
  $region8: #{tpu_custom_call.1} parent=0 // pred_region
    _
  $region9: #{tpu_custom_call.1} parent=0 // pred_fallthru
    _
  // Predicated region
  $region10: #{tpu_custom_call.1} parent=0 // pred_check
    _
  $region11: #{tpu_custom_call.1} parent=0 // pred_check_branch
    %45 = sbr.rel (0) target = $region13
  $region12: #{tpu_custom_call.1} parent=0 // pred_region
    _
  $region13: #{tpu_custom_call.1} parent=0 // pred_fallthru
    _
  // Predicated region
  $region14: #{tpu_custom_call.1} parent=0 // pred_check
    _
  $region15: #{tpu_custom_call.1} parent=0 // pred_check_branch
    %47 = sbr.rel (0) target = $region17
  $region16: #{tpu_custom_call.1} parent=0 // pred_region
    _
  $region17: #{tpu_custom_call.1} parent=0 // pred_fallthru
    _
  // Predicated region
  $region18: #{tpu_custom_call.1} parent=0 // pred_check
    _
  $region19: #{tpu_custom_call.1} parent=0 // pred_check_branch
    %49 = sbr.rel (0) target = $region21
  $region20: #{tpu_custom_call.1} parent=0 // pred_region
    _
  $region21: #{tpu_custom_call.1} parent=0 // pred_fallthru
    _
  // Predicated region
  $region22: #{tpu_custom_call.1} parent=0 // pred_check
    _
  $region23: #{tpu_custom_call.1} parent=0 // pred_check_branch
    %51 = sbr.rel (0) target = $region25
  $region24: #{tpu_custom_call.1} parent=0 // pred_region
    _
  $region25: #{tpu_custom_call.1} parent=0 // pred_fallthru
    _
  // Predicated region
  $region26: #{tpu_custom_call.1} parent=0 // pred_check
    _
  $region27: #{tpu_custom_call.1} parent=0 // pred_check_branch
    %53 = sbr.rel (0) target = $region29
  $region28: #{tpu_custom_call.1} parent=0 // pred_region
    _
  $region29: #{tpu_custom_call.1} parent=0 // pred_fallthru
    _
  // Predicated region
  $region30: #{tpu_custom_call.1} parent=0 // pred_check
    _
  $region31: #{tpu_custom_call.1} parent=0 // pred_check_branch
    %55 = sbr.rel (0) target = $region33
  $region32: #{tpu_custom_call.1} parent=0 // pred_region
    _
  $region33: #{tpu_custom_call.1} parent=0 // pred_fallthru
    _
  // Predicated region
  $region34: #{tpu_custom_call.1} parent=0 // pred_check
    _
  $region35: #{tpu_custom_call.1} parent=0 // pred_check_branch
    %57 = sbr.rel (0) target = $region37
  $region36: #{tpu_custom_call.1} parent=0 // pred_region
    _
  $region37: #{tpu_custom_call.1} parent=0 // pred_fallthru
    _
  // Predicated region
  $region38: #{tpu_custom_call.1} parent=0 // pred_check
    _
  $region39: #{tpu_custom_call.1} parent=0 // pred_check_branch
    %59 = sbr.rel (0) target = $region41
  $region40: #{tpu_custom_call.1} parent=0 // pred_region
    _
  $region41: #{tpu_custom_call.1} parent=0 // pred_fallthru
    _
  // Predicated region
  $region42: #{tpu_custom_call.1} parent=0 // pred_check
    _
  $region43: #{tpu_custom_call.1} parent=0 // pred_check_branch
    %61 = sbr.rel (0) target = $region45
  $region44: #{tpu_custom_call.1} parent=0 // pred_region
    _
  $region45: #{tpu_custom_call.1} parent=0 // pred_fallthru
    _
  // Predicated region
  $region46: #{tpu_custom_call.1} parent=0 // pred_check
    _
  $region47: #{tpu_custom_call.1} parent=0 // pred_check_branch
    %63 = sbr.rel (0) target = $region49
  $region48: #{tpu_custom_call.1} parent=0 // pred_region
    _
  $region49: #{tpu_custom_call.1} parent=0 // pred_fallthru
    _
  // Predicated region
  $region50: #{tpu_custom_call.1} parent=0 // pred_check
    _
  $region51: #{tpu_custom_call.1} parent=0 // pred_check_branch
    %65 = sbr.rel (0) target = $region53
  $region52: #{tpu_custom_call.1} parent=0 // pred_region
    _
  $region53: #{tpu_custom_call.1} parent=0 // pred_fallthru
    _
  // Predicated region
  $region54: #{tpu_custom_call.1} parent=0 // pred_check
    _
  $region55: #{tpu_custom_call.1} parent=0 // pred_check_branch
    %67 = sbr.rel (0) target = $region57
  $region56: #{tpu_custom_call.1} parent=0 // pred_region
    _
  $region57: #{tpu_custom_call.1} parent=0 // pred_fallthru
    _
  // Predicated region
  $region58: #{tpu_custom_call.1} parent=0 // pred_check
    _
  $region59: #{tpu_custom_call.1} parent=0 // pred_check_branch
    %69 = sbr.rel (0) target = $region61
  $region60: #{tpu_custom_call.1} parent=0 // pred_region
    _
  $region61: #{tpu_custom_call.1} parent=0 // pred_fallthru
    _
  // Predicated region
  $region62: #{tpu_custom_call.1} parent=0 // pred_check
    _
  $region63: #{tpu_custom_call.1} parent=0 // pred_check_branch
    %71 = sbr.rel (0) target = $region65
  $region64: #{tpu_custom_call.1} parent=0 // pred_region
    _
  $region65: #{tpu_custom_call.1} parent=0 // pred_fallthru
    _
  // Predicated region
  $region66: #{tpu_custom_call.1} parent=0 // pred_check
    _
  $region67: #{tpu_custom_call.1} parent=0 // pred_check_branch
    %73 = sbr.rel (0) target = $region69
  $region68: #{tpu_custom_call.1} parent=0 // pred_region
    _
  $region69: #{tpu_custom_call.1} parent=0 // pred_fallthru
    _
  // Predicated region
  $region70: #{tpu_custom_call.1} parent=0 // pred_check
    _
  $region71: #{tpu_custom_call.1} parent=0 // pred_check_branch
    %75 = sbr.rel (0) target = $region73
  $region72: #{tpu_custom_call.1} parent=0 // pred_region
    _
  $region73: #{tpu_custom_call.1} parent=0 // pred_fallthru
    _
  // Predicated region
  $region74: #{tpu_custom_call.1} parent=0 // pred_check
    _
  $region75: #{tpu_custom_call.1} parent=0 // pred_check_branch
    %77 = sbr.rel (0) target = $region77
  $region76: #{tpu_custom_call.1} parent=0 // pred_region
    _
  $region77: #{tpu_custom_call.1} parent=0 // pred_fallthru
    _
  // Predicated region
  $region78: #{tpu_custom_call.1} parent=0 // pred_check
    _
  $region79: #{tpu_custom_call.1} parent=0 // pred_check_branch
    %79 = sbr.rel (0) target = $region81
  $region80: #{tpu_custom_call.1} parent=0 // pred_region
    _
  $region81: #{tpu_custom_call.1} parent=0 // pred_fallthru
    _
  // Predicated region
  $region82: #{tpu_custom_call.1} parent=0 // pred_check
    _
  $region83: #{tpu_custom_call.1} parent=0 // pred_check_branch
    %81 = sbr.rel (0) target = $region85
  $region84: #{tpu_custom_call.1} parent=0 // pred_region
    _
  $region85: #{tpu_custom_call.1} parent=0 // pred_fallthru
    _
  // Predicated region
  $region86: #{tpu_custom_call.1} parent=0 // pred_check
    _
  $region87: #{tpu_custom_call.1} parent=0 // pred_check_branch
    %83 = sbr.rel (0) target = $region89
  $region88: #{tpu_custom_call.1} parent=0 // pred_region
    _
  $region89: #{tpu_custom_call.1} parent=0 // pred_fallthru
    _
  // Predicated region
  $region90: #{tpu_custom_call.1} parent=0 // pred_check
    _
  $region91: #{tpu_custom_call.1} parent=0 // pred_check_branch
    %85 = sbr.rel (0) target = $region93
  $region92: #{tpu_custom_call.1} parent=0 // pred_region
    _
  $region93: #{tpu_custom_call.1} parent=0 // pred_fallthru
    _
  // Predicated region
  $region94: #{tpu_custom_call.1} parent=0 // pred_check
    _
  $region95: #{tpu_custom_call.1} parent=0 // pred_check_branch
    %87 = sbr.rel (0) target = $region97
  $region96: #{tpu_custom_call.1} parent=0 // pred_region
    _
  $region97: #{tpu_custom_call.1} parent=0 // pred_fallthru
    _
  %v88 = vld [vmem:[%s1] sm:$0x3]
  %v89 = vld [vmem:[%s4] sm:$0xff]
  %v90 = vld [vmem:[%s4 + $0x8] sm:$0xff]
  %v91 = vld [vmem:[%s5] sm:$0x1]
  %v93 = vperm.slane %v91, 0
  %vm95 = vcmask 130048
  %v97 = vsel %vm95, %v88, 0
  %99 = vmatpush.msra.mxu0 0.0
  %100 = vmatpush.msra.mxu0 0.0
  %101 = vmatpush.msra.mxu0 0.0
  %102 = vmatpush.msra.mxu0 0.0
  %103 = vmatpush.msra.mxu0 0.0
  %104 = vmatpush.msra.mxu0 0.0
  %105 = vmatpush.msra.mxu0 0.0
  %106 = vmatpush.msra.mxu0 0.0
  %107 = vmatpush.msra.mxu0 0.0
  %108 = vmatpush.msra.mxu0 0.0
  %109 = vmatpush.msra.mxu0 0.0
  %110 = vmatpush.msra.mxu0 0.0
  %111 = vmatpush.msra.mxu0 0.0
  %112 = vmatpush.msra.mxu0 0.0
  %113 = vmatpush.msra.mxu0 %v90
  %114 = vmatpush.msra.mxu0 %v89
  %115 = vmatmul.f32.gmra.mxu0 %v97
  %v116 = vpop.f32.mrf.mxu0
  %v117 = vadd.f32 %v93, %v116
  %118 = vdwg.mxu0
  %v119 = vtanh.pop %v117
  %v120 = vld [vmem:[%s2] sm:$0xff]
  %v121 = vld [vmem:[%s2 + $0x8] sm:$0xff]
  %v122 = vld [vmem:[%s6] sm:$0x3f]
  %v123 = vld [vmem:[%s7] sm:$0x1]
  %v125 = vperm.slane %v123, 0
  %vm127 = vcmask 48128
  %v129 = vsel %vm127, %v120, 0
  %v132 = vsel %vm127, %v121, 0
  %vm134 = vcmask 1045504
  %v136 = vsel %vm134, %v122, 0
  %138 = vmatpush.msra.mxu0 0.0
  %139 = vmatpush.msra.mxu0 0.0
  %140 = vmatpush.msra.mxu0 0.0
  %141 = vmatpush.msra.mxu0 0.0
  %142 = vmatpush.msra.mxu0 0.0
  %143 = vmatpush.msra.mxu0 0.0
  %144 = vmatpush.msra.mxu0 0.0
  %145 = vmatpush.msra.mxu0 0.0
  %146 = vmatpush.msra.mxu0 0.0
  %147 = vmatpush.msra.mxu0 0.0
  %148 = vmatpush.msra.mxu0 0.0
  %149 = vmatpush.msra.mxu0 0.0
  %150 = vmatpush.msra.mxu0 0.0
  %151 = vmatpush.msra.mxu0 0.0
  %152 = vmatpush.msra.mxu0 0.0
  %153 = vmatpush.msra.mxu0 %v136
  %154 = vmatmul.f32.gmra.mxu0 %v129
  %v155 = vpop.f32.mrf.mxu0
  %v156 = vadd.f32 %v125, %v155
  %157 = vmatmul.f32.gmra.mxu0 %v132
  %v158 = vpop.f32.mrf.mxu0
  %v159 = vadd.f32 %v125, %v158
  %160 = vdwg.mxu0
  %v161 = vtanh.pop %v156
  %v162 = vtanh.pop %v159
  %v163 = vld [vmem:[%s8] sm:$0xff]
  %v164 = vld [vmem:[%s8 + $0x8] sm:$0xff]
  %v166 = vrot.slane %v161, 7
  %v169 = vrot.slane %v119, 1
  %v172 = vrot.slane %v162, 7
  %vm174 = vcmask 1040384
  %v175 = vsel %vm174, %v119, %v166
  %v176 = vsel %vm174, %v166, 0.0
  %v177 = vsel %vm174, %v169, %v172
  %v178 = vsel %vm174, %v172, 0.0
  %v179 = vadd.f32 %v175, %v163
  %v180 = vadd.f32 %v176, %v164
  %v181 = vadd.f32 %v177, %v163
  %v182 = vadd.f32 %v178, %v164
  %v183 = vlaneseq
  %v184 = vshrl.u32 %v183, 7
  %v185 = vadd.s32 %v184, 8
  %v186 = vlaneseq
  %v187 = vand.u32 %v186, 127
  %vm188 = vcmp.le.s32.totalorder %v187, %v184
  %vm189 = vcmp.le.s32.totalorder %v187, %v185
  %v190 = vld [vmem:[%s3] sm:$0x3]
  %vm191 = vcmp.gt.f32.partialorder %v190, 0.5
  %v192 = vsel %vm191, 1, 0
  %v193 = vperm.slane %v192, 0
  %vm194 = vcmp.eq.s32.totalorder %v193, 1
  %vm195 = vmand %vm188, %vm194
  %vm196 = vmand %vm189, %vm194
  %v197 = vsel %vm195, 0.0, -1e+09
  %v198 = vsel %vm196, 0.0, -1e+09
  %v199 = vperm.slane %v192, 1
  %vm200 = vcmp.eq.s32.totalorder %v199, 1
  %vm201 = vmand %vm188, %vm200
  %vm202 = vmand %vm189, %vm200
  %v203 = vsel %vm201, 0.0, -1e+09
  %v204 = vsel %vm202, 0.0, -1e+09
  %v205 = vld [vmem:[%s9] sm:$0x1]
  %v206 = vld [vmem:[%s10] sm:$0x1]
  %vm207 = vcmask 261120
  %v208 = vsel %vm207, %v179, 0.0
  %209 = vadd.xlane.f32.xlu0 %v208
  %v210 = vpop.xlane.xlu0 %209
  %v211 = vsel %vm207, %v180, 0.0
  %212 = vadd.xlane.f32.xlu0 %v211
  %v213 = vpop.xlane.xlu0 %212
  %v214 = vsel %vm207, %v181, 0.0
  %215 = vadd.xlane.f32.xlu0 %v214
  %v216 = vpop.xlane.xlu0 %215
  %v217 = vsel %vm207, %v182, 0.0
  %218 = vadd.xlane.f32.xlu0 %v217
  %v219 = vpop.xlane.xlu0 %218
  %v220 = vrcp.pop 32.0
  %v221 = vmul.f32 32.0, %v220
  %v222 = vsub.f32 1.0, %v221
  %v223 = vmul.f32 %v220, %v222
  %v224 = vadd.f32 %v220, %v223
  %vm225 = vweird.f32 %v220
  %v226 = vsel %vm225, %v220, %v224
  %v227 = vmul.f32 %v210, %v226
  %v228 = vmul.f32 %v213, %v226
  %v229 = vmul.f32 %v216, %v226
  %v230 = vmul.f32 %v219, %v226
  %v231 = vsub.f32 %v179, %v227
  %v232 = vsub.f32 %v180, %v228
  %v233 = vsub.f32 %v181, %v229
  %v234 = vsub.f32 %v182, %v230
  %v235 = vmul.f32 %v231, %v231
  %v236 = vmul.f32 %v232, %v232
  %v237 = vmul.f32 %v233, %v233
  %v238 = vmul.f32 %v234, %v234
  %v239 = vsel %vm207, %v235, 0.0
  %240 = vadd.xlane.f32.xlu0 %v239
  %v241 = vpop.xlane.xlu0 %240
  %v242 = vsel %vm207, %v236, 0.0
  %243 = vadd.xlane.f32.xlu0 %v242
  %v244 = vpop.xlane.xlu0 %243
  %v245 = vsel %vm207, %v237, 0.0
  %246 = vadd.xlane.f32.xlu0 %v245
  %v247 = vpop.xlane.xlu0 %246
  %v248 = vsel %vm207, %v238, 0.0
  %249 = vadd.xlane.f32.xlu0 %v248
  %v250 = vpop.xlane.xlu0 %249
  %v251 = vmul.f32 %v241, %v226
  %v252 = vmul.f32 %v244, %v226
  %v253 = vmul.f32 %v247, %v226
  %v254 = vmul.f32 %v250, %v226
  %v255 = vadd.f32 %v251, 1e-05
  %v256 = vadd.f32 %v252, 1e-05
  %v257 = vadd.f32 %v253, 1e-05
  %v258 = vadd.f32 %v254, 1e-05
  %v259 = vrsqrt.pop %v255
  %v260 = vmul.f32 %v259, %v255
  %v261 = vmul.f32 %v260, %v259
  %v262 = vmul.f32 0.5, %v261
  %v263 = vsub.f32 1.5, %v262
  %v264 = vmul.f32 %v259, %v263
  %vm265 = vweird.f32 %v255
  %vm266 = vweird.f32 %v259
  %vm267 = vmor %vm265, %vm266
  %v268 = vsel %vm267, %v259, %v264
  %v269 = vrsqrt.pop %v256
  %v270 = vmul.f32 %v269, %v256
  %v271 = vmul.f32 %v270, %v269
  %v272 = vmul.f32 0.5, %v271
  %v273 = vsub.f32 1.5, %v272
  %v274 = vmul.f32 %v269, %v273
  %vm275 = vweird.f32 %v256
  %vm276 = vweird.f32 %v269
  %vm277 = vmor %vm275, %vm276
  %v278 = vsel %vm277, %v269, %v274
  %v279 = vrsqrt.pop %v257
  %v280 = vmul.f32 %v279, %v257
  %v281 = vmul.f32 %v280, %v279
  %v282 = vmul.f32 0.5, %v281
  %v283 = vsub.f32 1.5, %v282
  %v284 = vmul.f32 %v279, %v283
  %vm285 = vweird.f32 %v257
  %vm286 = vweird.f32 %v279
  %vm287 = vmor %vm285, %vm286
  %v288 = vsel %vm287, %v279, %v284
  %v289 = vrsqrt.pop %v258
  %v290 = vmul.f32 %v289, %v258
  %v291 = vmul.f32 %v290, %v289
  %v292 = vmul.f32 0.5, %v291
  %v293 = vsub.f32 1.5, %v292
  %v294 = vmul.f32 %v289, %v293
  %vm295 = vweird.f32 %v258
  %vm296 = vweird.f32 %v289
  %vm297 = vmor %vm295, %vm296
  %v298 = vsel %vm297, %v289, %v294
  %v299 = vmul.f32 %v231, %v268
  %v300 = vmul.f32 %v232, %v278
  %v301 = vmul.f32 %v233, %v288
  %v302 = vmul.f32 %v234, %v298
  %v304 = vperm.slane %v205, 0
  %v306 = vmul.f32 %v299, %v304
  %v307 = vmul.f32 %v300, %v304
  %v308 = vmul.f32 %v301, %v304
  %v309 = vmul.f32 %v302, %v304
  %v311 = vperm.slane %v206, 0
  %v313 = vadd.f32 %v306, %v311
  %v314 = vadd.f32 %v307, %v311
  %v315 = vadd.f32 %v308, %v311
  %v316 = vadd.f32 %v309, %v311
  %v317 = vld [vmem:[%s11] sm:$0xff]
  %v318 = vld [vmem:[%s11 + $0x8] sm:$0xff]
  %v319 = vld [vmem:[%s11 + $0x10] sm:$0xff]
  %v320 = vld [vmem:[%s11 + $0x18] sm:$0xff]
  %v321 = vld [vmem:[%s12] sm:$0x1]
  %v323 = vperm.slane %v321, 0
  %v326 = vsel %vm207, %v313, 0
  %v329 = vsel %vm207, %v314, 0
  %v332 = vsel %vm207, %v315, 0
  %v335 = vsel %vm207, %v316, 0
  %337 = vmatpush.msra.mxu0 0.0
  %338 = vmatpush.msra.mxu0 0.0
  %339 = vmatpush.msra.mxu0 0.0
  %340 = vmatpush.msra.mxu0 0.0
  %341 = vmatpush.msra.mxu0 0.0
  %342 = vmatpush.msra.mxu0 0.0
  %343 = vmatpush.msra.mxu0 0.0
  %344 = vmatpush.msra.mxu0 0.0
  %345 = vmatpush.msra.mxu0 0.0
  %346 = vmatpush.msra.mxu0 0.0
  %347 = vmatpush.msra.mxu0 0.0
  %348 = vmatpush.msra.mxu0 0.0
  %349 = vmatpush.msra.mxu0 %v320
  %350 = vmatpush.msra.mxu0 %v319
  %351 = vmatpush.msra.mxu0 %v318
  %352 = vmatpush.msra.mxu0 %v317
  %353 = vmatmul.f32.gmra.mxu0 %v326
  %v354 = vpop.f32.mrf.mxu0
  %v355 = vadd.f32 %v323, %v354
  %356 = vmatmul.f32.gmra.mxu0 %v329
  %v357 = vpop.f32.mrf.mxu0
  %v358 = vadd.f32 %v323, %v357
  %359 = vmatmul.f32.gmra.mxu0 %v332
  %v360 = vpop.f32.mrf.mxu0
  %v361 = vadd.f32 %v323, %v360
  %362 = vmatmul.f32.gmra.mxu0 %v335
  %v363 = vpop.f32.mrf.mxu0
  %v364 = vadd.f32 %v323, %v363
  %365 = vdwg.mxu0
  %v366 = vld [vmem:[%s13] sm:$0xff]
  %v367 = vld [vmem:[%s13 + $0x8] sm:$0xff]
  %v368 = vld [vmem:[%s13 + $0x10] sm:$0xff]
  %v369 = vld [vmem:[%s13 + $0x18] sm:$0xff]
  %372 = vrot.lane.b32.xlu0 %v355, 96
  %v373 = vpop.permute.xlu0 %372
  %374 = vrot.lane.b32.xlu0 %v358, 96
  %v375 = vpop.permute.xlu0 %374
  %vm376 = vcmask 64512
  %v377 = vsel %vm376, %v355, 0
  %v379 = vsel %vm376, %v358, 0
  %v381 = vsel %vm376, %v373, 0
  %v383 = vsel %vm376, %v375, 0
  %385 = vmatpush.xpose.msra.mxu0 0.0
  %386 = vmatpush.xpose.msra.mxu0 0.0
  %387 = vmatpush.xpose.msra.mxu0 0.0
  %388 = vmatpush.xpose.msra.mxu0 0.0
  %389 = vmatpush.xpose.msra.mxu0 0.0
  %390 = vmatpush.xpose.msra.mxu0 0.0
  %391 = vmatpush.xpose.msra.mxu0 0.0
  %392 = vmatpush.xpose.msra.mxu0 0.0
  %393 = vmatpush.xpose.msra.mxu0 0.0
  %394 = vmatpush.xpose.msra.mxu0 0.0
  %395 = vmatpush.xpose.msra.mxu0 0.0
  %396 = vmatpush.xpose.msra.mxu0 0.0
  %397 = vmatpush.xpose.msra.mxu0 0.0
  %398 = vmatpush.xpose.msra.mxu0 0.0
  %399 = vmatpush.xpose.msra.mxu0 %v383
  %400 = vmatpush.xpose.msra.mxu0 %v381
  %401 = vmatmul.f32.gmra.mxu0 %v377
  %v402 = vpop.f32.mrf.mxu0
  %v403 = vadd.f32 0.0, %v402
  %404 = vmatmul.f32.gmra.mxu0 %v379
  %v405 = vpop.f32.mrf.mxu0
  %v406 = vadd.f32 0.0, %v405
  %407 = vdwg.mxu0
  %v408 = vmul.f32 %v403, 0.35355338
  %v409 = vmul.f32 %v406, 0.35355338
  %v410 = vadd.f32 %v408, %v197
  %v411 = vadd.f32 %v409, %v198
  %v412 = vsel %vm95, %v410, -inf
  %413 = vmax.xlane.f32.xlu0 %v412
  %v414 = vpop.xlane.xlu0 %413
  %v415 = vsel %vm95, %v411, -inf
  %416 = vmax.xlane.f32.xlu0 %v415
  %v417 = vpop.xlane.xlu0 %416
  %v418 = vsub.f32 %v410, %v414
  %v419 = vsub.f32 %v411, %v417
  %v420 = vmul.f32 %v418, 1.442695
  %v421 = vpow.pop %v420
  %v422 = vmul.f32 %v419, 1.442695
  %v423 = vpow.pop %v422
  %v424 = vsel %vm95, %v421, 0.0
  %425 = vadd.xlane.f32.xlu0 %v424
  %v426 = vpop.xlane.xlu0 %425
  %v427 = vsel %vm95, %v423, 0.0
  %428 = vadd.xlane.f32.xlu0 %v427
  %v429 = vpop.xlane.xlu0 %428
  %v430 = vrcp.pop %v426
  %v431 = vmul.f32 %v426, %v430
  %v432 = vsub.f32 1.0, %v431
  %v433 = vmul.f32 %v430, %v432
  %v434 = vadd.f32 %v430, %v433
  %vm435 = vweird.f32 %v426
  %vm436 = vweird.f32 %v430
  %vm437 = vmor %vm435, %vm436
  %v438 = vsel %vm437, %v430, %v434
  %v439 = vand.u32 2147483647, %v426
  %vm440 = vcmp.eq.f32.partialorder %v439, 8.507059e+37
  %v441 = vand.u32 %v426, 2147483648
  %v442 = vor.u32 1.1754944e-38, %v441
  %v443 = vsel %vm440, %v442, %v438
  %v444 = vmul.f32 %v421, %v443
  %v445 = vrcp.pop %v429
  %v446 = vmul.f32 %v429, %v445
  %v447 = vsub.f32 1.0, %v446
  %v448 = vmul.f32 %v445, %v447
  %v449 = vadd.f32 %v445, %v448
  %vm450 = vweird.f32 %v429
  %vm451 = vweird.f32 %v445
  %vm452 = vmor %vm450, %vm451
  %v453 = vsel %vm452, %v445, %v449
  %v454 = vand.u32 2147483647, %v429
  %vm455 = vcmp.eq.f32.partialorder %v454, 8.507059e+37
  %v456 = vand.u32 %v429, 2147483648
  %v457 = vor.u32 1.1754944e-38, %v456
  %v458 = vsel %vm455, %v457, %v453
  %v459 = vmul.f32 %v423, %v458
  %460 = vrot.lane.b32.xlu0 %v355, 64
  %v461 = vpop.permute.xlu0 %460
  %462 = vrot.lane.b32.xlu0 %v358, 64
  %v463 = vpop.permute.xlu0 %462
  %v467 = vsel %vm95, %v444, 0
  %v470 = vsel %vm95, %v459, 0
  %472 = vmatpush.msra.mxu0 0.0
  %473 = vmatpush.msra.mxu0 0.0
  %474 = vmatpush.msra.mxu0 0.0
  %475 = vmatpush.msra.mxu0 0.0
  %476 = vmatpush.msra.mxu0 0.0
  %477 = vmatpush.msra.mxu0 0.0
  %478 = vmatpush.msra.mxu0 0.0
  %479 = vmatpush.msra.mxu0 0.0
  %480 = vmatpush.msra.mxu0 0.0
  %481 = vmatpush.msra.mxu0 0.0
  %482 = vmatpush.msra.mxu0 0.0
  %483 = vmatpush.msra.mxu0 0.0
  %484 = vmatpush.msra.mxu0 0.0
  %485 = vmatpush.msra.mxu0 0.0
  %486 = vmatpush.msra.mxu0 %v463
  %487 = vmatpush.msra.mxu0 %v461
  %488 = vmatmul.f32.gmra.mxu0 %v467
  %v489 = vpop.f32.mrf.mxu0
  %v490 = vadd.f32 0.0, %v489
  %491 = vmatmul.f32.gmra.mxu0 %v470
  %v492 = vpop.f32.mrf.mxu0
  %v493 = vadd.f32 0.0, %v492
  %494 = vdwg.mxu0
  %495 = vrot.lane.b32.xlu0 %v355, 120
  %v496 = vpop.permute.xlu0 %495
  %497 = vrot.lane.b32.xlu0 %v358, 120
  %v498 = vpop.permute.xlu0 %497
  %499 = vrot.lane.b32.xlu0 %v355, 88
  %v500 = vpop.permute.xlu0 %499
  %501 = vrot.lane.b32.xlu0 %v358, 88
  %v502 = vpop.permute.xlu0 %501
  %v503 = vsel %vm376, %v496, 0
  %v505 = vsel %vm376, %v498, 0
  %v507 = vsel %vm376, %v500, 0
  %v509 = vsel %vm376, %v502, 0
  %511 = vmatpush.xpose.msra.mxu0 0.0
  %512 = vmatpush.xpose.msra.mxu0 0.0
  %513 = vmatpush.xpose.msra.mxu0 0.0
  %514 = vmatpush.xpose.msra.mxu0 0.0
  %515 = vmatpush.xpose.msra.mxu0 0.0
  %516 = vmatpush.xpose.msra.mxu0 0.0
  %517 = vmatpush.xpose.msra.mxu0 0.0
  %518 = vmatpush.xpose.msra.mxu0 0.0
  %519 = vmatpush.xpose.msra.mxu0 0.0
  %520 = vmatpush.xpose.msra.mxu0 0.0
  %521 = vmatpush.xpose.msra.mxu0 0.0
  %522 = vmatpush.xpose.msra.mxu0 0.0
  %523 = vmatpush.xpose.msra.mxu0 0.0
  %524 = vmatpush.xpose.msra.mxu0 0.0
  %525 = vmatpush.xpose.msra.mxu0 %v509
  %526 = vmatpush.xpose.msra.mxu0 %v507
  %527 = vmatmul.f32.gmra.mxu0 %v503
  %v528 = vpop.f32.mrf.mxu0
  %v529 = vadd.f32 0.0, %v528
  %530 = vmatmul.f32.gmra.mxu0 %v505
  %v531 = vpop.f32.mrf.mxu0
  %v532 = vadd.f32 0.0, %v531
  %533 = vdwg.mxu0
  %v534 = vmul.f32 %v529, 0.35355338
  %v535 = vmul.f32 %v532, 0.35355338
  %v536 = vadd.f32 %v534, %v197
  %v537 = vadd.f32 %v535, %v198
  %v538 = vsel %vm95, %v536, -inf
  %539 = vmax.xlane.f32.xlu0 %v538
  %v540 = vpop.xlane.xlu0 %539
  %v541 = vsel %vm95, %v537, -inf
  %542 = vmax.xlane.f32.xlu0 %v541
  %v543 = vpop.xlane.xlu0 %542
  %v544 = vsub.f32 %v536, %v540
  %v545 = vsub.f32 %v537, %v543
  %v546 = vmul.f32 %v544, 1.442695
  %v547 = vpow.pop %v546
  %v548 = vmul.f32 %v545, 1.442695
  %v549 = vpow.pop %v548
  %v550 = vsel %vm95, %v547, 0.0
  %551 = vadd.xlane.f32.xlu0 %v550
  %v552 = vpop.xlane.xlu0 %551
  %v553 = vsel %vm95, %v549, 0.0
  %554 = vadd.xlane.f32.xlu0 %v553
  %v555 = vpop.xlane.xlu0 %554
  %v556 = vrcp.pop %v552
  %v557 = vmul.f32 %v552, %v556
  %v558 = vsub.f32 1.0, %v557
  %v559 = vmul.f32 %v556, %v558
  %v560 = vadd.f32 %v556, %v559
  %vm561 = vweird.f32 %v552
  %vm562 = vweird.f32 %v556
  %vm563 = vmor %vm561, %vm562
  %v564 = vsel %vm563, %v556, %v560
  %v565 = vand.u32 2147483647, %v552
  %vm566 = vcmp.eq.f32.partialorder %v565, 8.507059e+37
  %v567 = vand.u32 %v552, 2147483648
  %v568 = vor.u32 1.1754944e-38, %v567
  %v569 = vsel %vm566, %v568, %v564
  %v570 = vmul.f32 %v547, %v569
  %v571 = vrcp.pop %v555
  %v572 = vmul.f32 %v555, %v571
  %v573 = vsub.f32 1.0, %v572
  %v574 = vmul.f32 %v571, %v573
  %v575 = vadd.f32 %v571, %v574
  %vm576 = vweird.f32 %v555
  %vm577 = vweird.f32 %v571
  %vm578 = vmor %vm576, %vm577
  %v579 = vsel %vm578, %v571, %v575
  %v580 = vand.u32 2147483647, %v555
  %vm581 = vcmp.eq.f32.partialorder %v580, 8.507059e+37
  %v582 = vand.u32 %v555, 2147483648
  %v583 = vor.u32 1.1754944e-38, %v582
  %v584 = vsel %vm581, %v583, %v579
  %v585 = vmul.f32 %v549, %v584
  %586 = vrot.lane.b32.xlu0 %v355, 56
  %v587 = vpop.permute.xlu0 %586
  %588 = vrot.lane.b32.xlu0 %v358, 56
  %v589 = vpop.permute.xlu0 %588
  %v593 = vsel %vm95, %v570, 0
  %v596 = vsel %vm95, %v585, 0
  %598 = vmatpush.msra.mxu0 0.0
  %599 = vmatpush.msra.mxu0 0.0
  %600 = vmatpush.msra.mxu0 0.0
  %601 = vmatpush.msra.mxu0 0.0
  %602 = vmatpush.msra.mxu0 0.0
  %603 = vmatpush.msra.mxu0 0.0
  %604 = vmatpush.msra.mxu0 0.0
  %605 = vmatpush.msra.mxu0 0.0
  %606 = vmatpush.msra.mxu0 0.0
  %607 = vmatpush.msra.mxu0 0.0
  %608 = vmatpush.msra.mxu0 0.0
  %609 = vmatpush.msra.mxu0 0.0
  %610 = vmatpush.msra.mxu0 0.0
  %611 = vmatpush.msra.mxu0 0.0
  %612 = vmatpush.msra.mxu0 %v589
  %613 = vmatpush.msra.mxu0 %v587
  %614 = vmatmul.f32.gmra.mxu0 %v593
  %v615 = vpop.f32.mrf.mxu0
  %v616 = vadd.f32 0.0, %v615
  %617 = vmatmul.f32.gmra.mxu0 %v596
  %v618 = vpop.f32.mrf.mxu0
  %v619 = vadd.f32 0.0, %v618
  %620 = vdwg.mxu0
  %v622 = vsel %vm376, %v616, 0
  %v625 = vsel %vm376, %v619, 0
  %627 = vmatpush.msra.mxu0 0.0
  %628 = vmatpush.msra.mxu0 0.0
  %629 = vmatpush.msra.mxu0 0.0
  %630 = vmatpush.msra.mxu0 0.0
  %631 = vmatpush.msra.mxu0 0.0
  %632 = vmatpush.msra.mxu0 0.0
  %633 = vmatpush.msra.mxu0 0.0
  %634 = vmatpush.msra.mxu0 0.0
  %635 = vmatpush.msra.mxu0 0.0
  %636 = vmatpush.msra.mxu0 0.0
  %637 = vmatpush.msra.mxu0 0.0
  %638 = vmatpush.msra.mxu0 0.0
  %639 = vmatpush.msra.mxu0 0.0
  %640 = vmatpush.msra.mxu0 0.0
  %641 = vmatpush.msra.mxu0 0.0
  %642 = vmatpush.msra.mxu0 %v367
  %643 = vmatmul.f32.gmra.mxu0 %v622
  %v644 = vpop.f32.mrf.mxu0
  %v645 = vadd.f32 0.0, %v644
  %646 = vmatmul.f32.gmra.mxu0 %v625
  %v647 = vpop.f32.mrf.mxu0
  %v648 = vadd.f32 0.0, %v647
  %649 = vdwg.mxu0
  %v651 = vsel %vm376, %v490, 0
  %v654 = vsel %vm376, %v493, 0
  %656 = vmatpush.msra.mxu0 0.0
  %657 = vmatpush.msra.mxu0 0.0
  %658 = vmatpush.msra.mxu0 0.0
  %659 = vmatpush.msra.mxu0 0.0
  %660 = vmatpush.msra.mxu0 0.0
  %661 = vmatpush.msra.mxu0 0.0
  %662 = vmatpush.msra.mxu0 0.0
  %663 = vmatpush.msra.mxu0 0.0
  %664 = vmatpush.msra.mxu0 0.0
  %665 = vmatpush.msra.mxu0 0.0
  %666 = vmatpush.msra.mxu0 0.0
  %667 = vmatpush.msra.mxu0 0.0
  %668 = vmatpush.msra.mxu0 0.0
  %669 = vmatpush.msra.mxu0 0.0
  %670 = vmatpush.msra.mxu0 0.0
  %671 = vmatpush.msra.mxu0 %v366
  %672 = vmatmul.f32.gmra.mxu0 %v651
  %v673 = vpop.f32.mrf.mxu0
  %v674 = vadd.f32 %v645, %v673
  %675 = vmatmul.f32.gmra.mxu0 %v654
  %v676 = vpop.f32.mrf.mxu0
  %v677 = vadd.f32 %v648, %v676
  %678 = vdwg.mxu0
  %679 = vrot.lane.b32.xlu0 %v355, 112
  %v680 = vpop.permute.xlu0 %679
  %681 = vrot.lane.b32.xlu0 %v358, 112
  %v682 = vpop.permute.xlu0 %681
  %683 = vrot.lane.b32.xlu0 %v355, 80
  %v684 = vpop.permute.xlu0 %683
  %685 = vrot.lane.b32.xlu0 %v358, 80
  %v686 = vpop.permute.xlu0 %685
  %v687 = vsel %vm376, %v680, 0
  %v689 = vsel %vm376, %v682, 0
  %v691 = vsel %vm376, %v684, 0
  %v693 = vsel %vm376, %v686, 0
  %695 = vmatpush.xpose.msra.mxu0 0.0
  %696 = vmatpush.xpose.msra.mxu0 0.0
  %697 = vmatpush.xpose.msra.mxu0 0.0
  %698 = vmatpush.xpose.msra.mxu0 0.0
  %699 = vmatpush.xpose.msra.mxu0 0.0
  %700 = vmatpush.xpose.msra.mxu0 0.0
  %701 = vmatpush.xpose.msra.mxu0 0.0
  %702 = vmatpush.xpose.msra.mxu0 0.0
  %703 = vmatpush.xpose.msra.mxu0 0.0
  %704 = vmatpush.xpose.msra.mxu0 0.0
  %705 = vmatpush.xpose.msra.mxu0 0.0
  %706 = vmatpush.xpose.msra.mxu0 0.0
  %707 = vmatpush.xpose.msra.mxu0 0.0
  %708 = vmatpush.xpose.msra.mxu0 0.0
  %709 = vmatpush.xpose.msra.mxu0 %v693
  %710 = vmatpush.xpose.msra.mxu0 %v691
  %711 = vmatmul.f32.gmra.mxu0 %v687
  %v712 = vpop.f32.mrf.mxu0
  %v713 = vadd.f32 0.0, %v712
  %714 = vmatmul.f32.gmra.mxu0 %v689
  %v715 = vpop.f32.mrf.mxu0
  %v716 = vadd.f32 0.0, %v715
  %717 = vdwg.mxu0
  %v718 = vmul.f32 %v713, 0.35355338
  %v719 = vmul.f32 %v716, 0.35355338
  %v720 = vadd.f32 %v718, %v197
  %v721 = vadd.f32 %v719, %v198
  %v722 = vsel %vm95, %v720, -inf
  %723 = vmax.xlane.f32.xlu0 %v722
  %v724 = vpop.xlane.xlu0 %723
  %v725 = vsel %vm95, %v721, -inf
  %726 = vmax.xlane.f32.xlu0 %v725
  %v727 = vpop.xlane.xlu0 %726
  %v728 = vsub.f32 %v720, %v724
  %v729 = vsub.f32 %v721, %v727
  %v730 = vmul.f32 %v728, 1.442695
  %v731 = vpow.pop %v730
  %v732 = vmul.f32 %v729, 1.442695
  %v733 = vpow.pop %v732
  %v734 = vsel %vm95, %v731, 0.0
  %735 = vadd.xlane.f32.xlu0 %v734
  %v736 = vpop.xlane.xlu0 %735
  %v737 = vsel %vm95, %v733, 0.0
  %738 = vadd.xlane.f32.xlu0 %v737
  %v739 = vpop.xlane.xlu0 %738
  %v740 = vrcp.pop %v736
  %v741 = vmul.f32 %v736, %v740
  %v742 = vsub.f32 1.0, %v741
  %v743 = vmul.f32 %v740, %v742
  %v744 = vadd.f32 %v740, %v743
  %vm745 = vweird.f32 %v736
  %vm746 = vweird.f32 %v740
  %vm747 = vmor %vm745, %vm746
  %v748 = vsel %vm747, %v740, %v744
  %v749 = vand.u32 2147483647, %v736
  %vm750 = vcmp.eq.f32.partialorder %v749, 8.507059e+37
  %v751 = vand.u32 %v736, 2147483648
  %v752 = vor.u32 1.1754944e-38, %v751
  %v753 = vsel %vm750, %v752, %v748
  %v754 = vmul.f32 %v731, %v753
  %v755 = vrcp.pop %v739
  %v756 = vmul.f32 %v739, %v755
  %v757 = vsub.f32 1.0, %v756
  %v758 = vmul.f32 %v755, %v757
  %v759 = vadd.f32 %v755, %v758
  %vm760 = vweird.f32 %v739
  %vm761 = vweird.f32 %v755
  %vm762 = vmor %vm760, %vm761
  %v763 = vsel %vm762, %v755, %v759
  %v764 = vand.u32 2147483647, %v739
  %vm765 = vcmp.eq.f32.partialorder %v764, 8.507059e+37
  %v766 = vand.u32 %v739, 2147483648
  %v767 = vor.u32 1.1754944e-38, %v766
  %v768 = vsel %vm765, %v767, %v763
  %v769 = vmul.f32 %v733, %v768
  %770 = vrot.lane.b32.xlu0 %v355, 48
  %v771 = vpop.permute.xlu0 %770
  %772 = vrot.lane.b32.xlu0 %v358, 48
  %v773 = vpop.permute.xlu0 %772
  %v777 = vsel %vm95, %v754, 0
  %v780 = vsel %vm95, %v769, 0
  %782 = vmatpush.msra.mxu0 0.0
  %783 = vmatpush.msra.mxu0 0.0
  %784 = vmatpush.msra.mxu0 0.0
  %785 = vmatpush.msra.mxu0 0.0
  %786 = vmatpush.msra.mxu0 0.0
  %787 = vmatpush.msra.mxu0 0.0
  %788 = vmatpush.msra.mxu0 0.0
  %789 = vmatpush.msra.mxu0 0.0
  %790 = vmatpush.msra.mxu0 0.0
  %791 = vmatpush.msra.mxu0 0.0
  %792 = vmatpush.msra.mxu0 0.0
  %793 = vmatpush.msra.mxu0 0.0
  %794 = vmatpush.msra.mxu0 0.0
  %795 = vmatpush.msra.mxu0 0.0
  %796 = vmatpush.msra.mxu0 %v773
  %797 = vmatpush.msra.mxu0 %v771
  %798 = vmatmul.f32.gmra.mxu0 %v777
  %v799 = vpop.f32.mrf.mxu0
  %v800 = vadd.f32 0.0, %v799
  %801 = vmatmul.f32.gmra.mxu0 %v780
  %v802 = vpop.f32.mrf.mxu0
  %v803 = vadd.f32 0.0, %v802
  %804 = vdwg.mxu0
  %v806 = vsel %vm376, %v800, 0
  %v809 = vsel %vm376, %v803, 0
  %811 = vmatpush.msra.mxu0 0.0
  %812 = vmatpush.msra.mxu0 0.0
  %813 = vmatpush.msra.mxu0 0.0
  %814 = vmatpush.msra.mxu0 0.0
  %815 = vmatpush.msra.mxu0 0.0
  %816 = vmatpush.msra.mxu0 0.0
  %817 = vmatpush.msra.mxu0 0.0
  %818 = vmatpush.msra.mxu0 0.0
  %819 = vmatpush.msra.mxu0 0.0
  %820 = vmatpush.msra.mxu0 0.0
  %821 = vmatpush.msra.mxu0 0.0
  %822 = vmatpush.msra.mxu0 0.0
  %823 = vmatpush.msra.mxu0 0.0
  %824 = vmatpush.msra.mxu0 0.0
  %825 = vmatpush.msra.mxu0 0.0
  %826 = vmatpush.msra.mxu0 %v368
  %827 = vmatmul.f32.gmra.mxu0 %v806
  %v828 = vpop.f32.mrf.mxu0
  %v829 = vadd.f32 0.0, %v828
  %830 = vmatmul.f32.gmra.mxu0 %v809
  %v831 = vpop.f32.mrf.mxu0
  %v832 = vadd.f32 0.0, %v831
  %833 = vdwg.mxu0
  %v834 = vadd.f32 %v674, %v829
  %v835 = vadd.f32 %v677, %v832
  %836 = vrot.lane.b32.xlu0 %v355, 104
  %v837 = vpop.permute.xlu0 %836
  %838 = vrot.lane.b32.xlu0 %v358, 104
  %v839 = vpop.permute.xlu0 %838
  %840 = vrot.lane.b32.xlu0 %v355, 72
  %v841 = vpop.permute.xlu0 %840
  %842 = vrot.lane.b32.xlu0 %v358, 72
  %v843 = vpop.permute.xlu0 %842
  %v844 = vsel %vm376, %v837, 0
  %v846 = vsel %vm376, %v839, 0
  %v848 = vsel %vm376, %v841, 0
  %v850 = vsel %vm376, %v843, 0
  %852 = vmatpush.xpose.msra.mxu0 0.0
  %853 = vmatpush.xpose.msra.mxu0 0.0
  %854 = vmatpush.xpose.msra.mxu0 0.0
  %855 = vmatpush.xpose.msra.mxu0 0.0
  %856 = vmatpush.xpose.msra.mxu0 0.0
  %857 = vmatpush.xpose.msra.mxu0 0.0
  %858 = vmatpush.xpose.msra.mxu0 0.0
  %859 = vmatpush.xpose.msra.mxu0 0.0
  %860 = vmatpush.xpose.msra.mxu0 0.0
  %861 = vmatpush.xpose.msra.mxu0 0.0
  %862 = vmatpush.xpose.msra.mxu0 0.0
  %863 = vmatpush.xpose.msra.mxu0 0.0
  %864 = vmatpush.xpose.msra.mxu0 0.0
  %865 = vmatpush.xpose.msra.mxu0 0.0
  %866 = vmatpush.xpose.msra.mxu0 %v850
  %867 = vmatpush.xpose.msra.mxu0 %v848
  %868 = vmatmul.f32.gmra.mxu0 %v844
  %v869 = vpop.f32.mrf.mxu0
  %v870 = vadd.f32 0.0, %v869
  %871 = vmatmul.f32.gmra.mxu0 %v846
  %v872 = vpop.f32.mrf.mxu0
  %v873 = vadd.f32 0.0, %v872
  %874 = vdwg.mxu0
  %v875 = vmul.f32 %v870, 0.35355338
  %v876 = vmul.f32 %v873, 0.35355338
  %v877 = vadd.f32 %v875, %v197
  %v878 = vadd.f32 %v876, %v198
  %v879 = vsel %vm95, %v877, -inf
  %880 = vmax.xlane.f32.xlu0 %v879
  %v881 = vpop.xlane.xlu0 %880
  %v882 = vsel %vm95, %v878, -inf
  %883 = vmax.xlane.f32.xlu0 %v882
  %v884 = vpop.xlane.xlu0 %883
  %v885 = vsub.f32 %v877, %v881
  %v886 = vsub.f32 %v878, %v884
  %v887 = vmul.f32 %v885, 1.442695
  %v888 = vpow.pop %v887
  %v889 = vmul.f32 %v886, 1.442695
  %v890 = vpow.pop %v889
  %v891 = vsel %vm95, %v888, 0.0
  %892 = vadd.xlane.f32.xlu0 %v891
  %v893 = vpop.xlane.xlu0 %892
  %v894 = vsel %vm95, %v890, 0.0
  %895 = vadd.xlane.f32.xlu0 %v894
  %v896 = vpop.xlane.xlu0 %895
  %v897 = vrcp.pop %v893
  %v898 = vmul.f32 %v893, %v897
  %v899 = vsub.f32 1.0, %v898
  %v900 = vmul.f32 %v897, %v899
  %v901 = vadd.f32 %v897, %v900
  %vm902 = vweird.f32 %v893
  %vm903 = vweird.f32 %v897
  %vm904 = vmor %vm902, %vm903
  %v905 = vsel %vm904, %v897, %v901
  %v906 = vand.u32 2147483647, %v893
  %vm907 = vcmp.eq.f32.partialorder %v906, 8.507059e+37
  %v908 = vand.u32 %v893, 2147483648
  %v909 = vor.u32 1.1754944e-38, %v908
  %v910 = vsel %vm907, %v909, %v905
  %v911 = vmul.f32 %v888, %v910
  %v912 = vrcp.pop %v896
  %v913 = vmul.f32 %v896, %v912
  %v914 = vsub.f32 1.0, %v913
  %v915 = vmul.f32 %v912, %v914
  %v916 = vadd.f32 %v912, %v915
  %vm917 = vweird.f32 %v896
  %vm918 = vweird.f32 %v912
  %vm919 = vmor %vm917, %vm918
  %v920 = vsel %vm919, %v912, %v916
  %v921 = vand.u32 2147483647, %v896
  %vm922 = vcmp.eq.f32.partialorder %v921, 8.507059e+37
  %v923 = vand.u32 %v896, 2147483648
  %v924 = vor.u32 1.1754944e-38, %v923
  %v925 = vsel %vm922, %v924, %v920
  %v926 = vmul.f32 %v890, %v925
  %927 = vrot.lane.b32.xlu0 %v355, 40
  %v928 = vpop.permute.xlu0 %927
  %929 = vrot.lane.b32.xlu0 %v358, 40
  %v930 = vpop.permute.xlu0 %929
  %v934 = vsel %vm95, %v911, 0
  %v937 = vsel %vm95, %v926, 0
  %939 = vmatpush.msra.mxu0 0.0
  %940 = vmatpush.msra.mxu0 0.0
  %941 = vmatpush.msra.mxu0 0.0
  %942 = vmatpush.msra.mxu0 0.0
  %943 = vmatpush.msra.mxu0 0.0
  %944 = vmatpush.msra.mxu0 0.0
  %945 = vmatpush.msra.mxu0 0.0
  %946 = vmatpush.msra.mxu0 0.0
  %947 = vmatpush.msra.mxu0 0.0
  %948 = vmatpush.msra.mxu0 0.0
  %949 = vmatpush.msra.mxu0 0.0
  %950 = vmatpush.msra.mxu0 0.0
  %951 = vmatpush.msra.mxu0 0.0
  %952 = vmatpush.msra.mxu0 0.0
  %953 = vmatpush.msra.mxu0 %v930
  %954 = vmatpush.msra.mxu0 %v928
  %955 = vmatmul.f32.gmra.mxu0 %v934
  %v956 = vpop.f32.mrf.mxu0
  %v957 = vadd.f32 0.0, %v956
  %958 = vmatmul.f32.gmra.mxu0 %v937
  %v959 = vpop.f32.mrf.mxu0
  %v960 = vadd.f32 0.0, %v959
  %961 = vdwg.mxu0
  %v963 = vsel %vm376, %v957, 0
  %v966 = vsel %vm376, %v960, 0
  %968 = vmatpush.msra.mxu0 0.0
  %969 = vmatpush.msra.mxu0 0.0
  %970 = vmatpush.msra.mxu0 0.0
  %971 = vmatpush.msra.mxu0 0.0
  %972 = vmatpush.msra.mxu0 0.0
  %973 = vmatpush.msra.mxu0 0.0
  %974 = vmatpush.msra.mxu0 0.0
  %975 = vmatpush.msra.mxu0 0.0
  %976 = vmatpush.msra.mxu0 0.0
  %977 = vmatpush.msra.mxu0 0.0
  %978 = vmatpush.msra.mxu0 0.0
  %979 = vmatpush.msra.mxu0 0.0
  %980 = vmatpush.msra.mxu0 0.0
  %981 = vmatpush.msra.mxu0 0.0
  %982 = vmatpush.msra.mxu0 0.0
  %983 = vmatpush.msra.mxu0 %v369
  %984 = vmatmul.f32.gmra.mxu0 %v963
  %v985 = vpop.f32.mrf.mxu0
  %v986 = vadd.f32 0.0, %v985
  %987 = vmatmul.f32.gmra.mxu0 %v966
  %v988 = vpop.f32.mrf.mxu0
  %v989 = vadd.f32 0.0, %v988
  %990 = vdwg.mxu0
  %v991 = vadd.f32 %v834, %v986
  %v992 = vadd.f32 %v835, %v989
  %995 = vrot.lane.b32.xlu0 %v361, 96
  %v996 = vpop.permute.xlu0 %995
  %997 = vrot.lane.b32.xlu0 %v364, 96
  %v998 = vpop.permute.xlu0 %997
  %v999 = vsel %vm376, %v361, 0
  %v1001 = vsel %vm376, %v364, 0
  %v1003 = vsel %vm376, %v996, 0
  %v1005 = vsel %vm376, %v998, 0
  %1007 = vmatpush.xpose.msra.mxu0 0.0
  %1008 = vmatpush.xpose.msra.mxu0 0.0
  %1009 = vmatpush.xpose.msra.mxu0 0.0
  %1010 = vmatpush.xpose.msra.mxu0 0.0
  %1011 = vmatpush.xpose.msra.mxu0 0.0
  %1012 = vmatpush.xpose.msra.mxu0 0.0
  %1013 = vmatpush.xpose.msra.mxu0 0.0
  %1014 = vmatpush.xpose.msra.mxu0 0.0
  %1015 = vmatpush.xpose.msra.mxu0 0.0
  %1016 = vmatpush.xpose.msra.mxu0 0.0
  %1017 = vmatpush.xpose.msra.mxu0 0.0
  %1018 = vmatpush.xpose.msra.mxu0 0.0
  %1019 = vmatpush.xpose.msra.mxu0 0.0
  %1020 = vmatpush.xpose.msra.mxu0 0.0
  %1021 = vmatpush.xpose.msra.mxu0 %v1005
  %1022 = vmatpush.xpose.msra.mxu0 %v1003
  %1023 = vmatmul.f32.gmra.mxu0 %v999
  %v1024 = vpop.f32.mrf.mxu0
  %v1025 = vadd.f32 0.0, %v1024
  %1026 = vmatmul.f32.gmra.mxu0 %v1001
  %v1027 = vpop.f32.mrf.mxu0
  %v1028 = vadd.f32 0.0, %v1027
  %1029 = vdwg.mxu0
  %v1030 = vmul.f32 %v1025, 0.35355338
  %v1031 = vmul.f32 %v1028, 0.35355338
  %v1032 = vadd.f32 %v1030, %v203
  %v1033 = vadd.f32 %v1031, %v204
  %v1034 = vsel %vm95, %v1032, -inf
  %1035 = vmax.xlane.f32.xlu0 %v1034
  %v1036 = vpop.xlane.xlu0 %1035
  %v1037 = vsel %vm95, %v1033, -inf
  %1038 = vmax.xlane.f32.xlu0 %v1037
  %v1039 = vpop.xlane.xlu0 %1038
  %v1040 = vsub.f32 %v1032, %v1036
  %v1041 = vsub.f32 %v1033, %v1039
  %v1042 = vmul.f32 %v1040, 1.442695
  %v1043 = vpow.pop %v1042
  %v1044 = vmul.f32 %v1041, 1.442695
  %v1045 = vpow.pop %v1044
  %v1046 = vsel %vm95, %v1043, 0.0
  %1047 = vadd.xlane.f32.xlu0 %v1046
  %v1048 = vpop.xlane.xlu0 %1047
  %v1049 = vsel %vm95, %v1045, 0.0
  %1050 = vadd.xlane.f32.xlu0 %v1049
  %v1051 = vpop.xlane.xlu0 %1050
  %v1052 = vrcp.pop %v1048
  %v1053 = vmul.f32 %v1048, %v1052
  %v1054 = vsub.f32 1.0, %v1053
  %v1055 = vmul.f32 %v1052, %v1054
  %v1056 = vadd.f32 %v1052, %v1055
  %vm1057 = vweird.f32 %v1048
  %vm1058 = vweird.f32 %v1052
  %vm1059 = vmor %vm1057, %vm1058
  %v1060 = vsel %vm1059, %v1052, %v1056
  %v1061 = vand.u32 2147483647, %v1048
  %vm1062 = vcmp.eq.f32.partialorder %v1061, 8.507059e+37
  %v1063 = vand.u32 %v1048, 2147483648
  %v1064 = vor.u32 1.1754944e-38, %v1063
  %v1065 = vsel %vm1062, %v1064, %v1060
  %v1066 = vmul.f32 %v1043, %v1065
  %v1067 = vrcp.pop %v1051
  %v1068 = vmul.f32 %v1051, %v1067
  %v1069 = vsub.f32 1.0, %v1068
  %v1070 = vmul.f32 %v1067, %v1069
  %v1071 = vadd.f32 %v1067, %v1070
  %vm1072 = vweird.f32 %v1051
  %vm1073 = vweird.f32 %v1067
  %vm1074 = vmor %vm1072, %vm1073
  %v1075 = vsel %vm1074, %v1067, %v1071
  %v1076 = vand.u32 2147483647, %v1051
  %vm1077 = vcmp.eq.f32.partialorder %v1076, 8.507059e+37
  %v1078 = vand.u32 %v1051, 2147483648
  %v1079 = vor.u32 1.1754944e-38, %v1078
  %v1080 = vsel %vm1077, %v1079, %v1075
  %v1081 = vmul.f32 %v1045, %v1080
  %1082 = vrot.lane.b32.xlu0 %v361, 64
  %v1083 = vpop.permute.xlu0 %1082
  %1084 = vrot.lane.b32.xlu0 %v364, 64
  %v1085 = vpop.permute.xlu0 %1084
  %v1089 = vsel %vm95, %v1066, 0
  %v1092 = vsel %vm95, %v1081, 0
  %1094 = vmatpush.msra.mxu0 0.0
  %1095 = vmatpush.msra.mxu0 0.0
  %1096 = vmatpush.msra.mxu0 0.0
  %1097 = vmatpush.msra.mxu0 0.0
  %1098 = vmatpush.msra.mxu0 0.0
  %1099 = vmatpush.msra.mxu0 0.0
  %1100 = vmatpush.msra.mxu0 0.0
  %1101 = vmatpush.msra.mxu0 0.0
  %1102 = vmatpush.msra.mxu0 0.0
  %1103 = vmatpush.msra.mxu0 0.0
  %1104 = vmatpush.msra.mxu0 0.0
  %1105 = vmatpush.msra.mxu0 0.0
  %1106 = vmatpush.msra.mxu0 0.0
  %1107 = vmatpush.msra.mxu0 0.0
  %1108 = vmatpush.msra.mxu0 %v1085
  %1109 = vmatpush.msra.mxu0 %v1083
  %1110 = vmatmul.f32.gmra.mxu0 %v1089
  %v1111 = vpop.f32.mrf.mxu0
  %v1112 = vadd.f32 0.0, %v1111
  %1113 = vmatmul.f32.gmra.mxu0 %v1092
  %v1114 = vpop.f32.mrf.mxu0
  %v1115 = vadd.f32 0.0, %v1114
  %1116 = vdwg.mxu0
  %1117 = vrot.lane.b32.xlu0 %v361, 120
  %v1118 = vpop.permute.xlu0 %1117
  %1119 = vrot.lane.b32.xlu0 %v364, 120
  %v1120 = vpop.permute.xlu0 %1119
  %1121 = vrot.lane.b32.xlu0 %v361, 88
  %v1122 = vpop.permute.xlu0 %1121
  %1123 = vrot.lane.b32.xlu0 %v364, 88
  %v1124 = vpop.permute.xlu0 %1123
  %v1125 = vsel %vm376, %v1118, 0
  %v1127 = vsel %vm376, %v1120, 0
  %v1129 = vsel %vm376, %v1122, 0
  %v1131 = vsel %vm376, %v1124, 0
  %1133 = vmatpush.xpose.msra.mxu0 0.0
  %1134 = vmatpush.xpose.msra.mxu0 0.0
  %1135 = vmatpush.xpose.msra.mxu0 0.0
  %1136 = vmatpush.xpose.msra.mxu0 0.0
  %1137 = vmatpush.xpose.msra.mxu0 0.0
  %1138 = vmatpush.xpose.msra.mxu0 0.0
  %1139 = vmatpush.xpose.msra.mxu0 0.0
  %1140 = vmatpush.xpose.msra.mxu0 0.0
  %1141 = vmatpush.xpose.msra.mxu0 0.0
  %1142 = vmatpush.xpose.msra.mxu0 0.0
  %1143 = vmatpush.xpose.msra.mxu0 0.0
  %1144 = vmatpush.xpose.msra.mxu0 0.0
  %1145 = vmatpush.xpose.msra.mxu0 0.0
  %1146 = vmatpush.xpose.msra.mxu0 0.0
  %1147 = vmatpush.xpose.msra.mxu0 %v1131
  %1148 = vmatpush.xpose.msra.mxu0 %v1129
  %1149 = vmatmul.f32.gmra.mxu0 %v1125
  %v1150 = vpop.f32.mrf.mxu0
  %v1151 = vadd.f32 0.0, %v1150
  %1152 = vmatmul.f32.gmra.mxu0 %v1127
  %v1153 = vpop.f32.mrf.mxu0
  %v1154 = vadd.f32 0.0, %v1153
  %1155 = vdwg.mxu0
  %v1156 = vmul.f32 %v1151, 0.35355338
  %v1157 = vmul.f32 %v1154, 0.35355338
  %v1158 = vadd.f32 %v1156, %v203
  %v1159 = vadd.f32 %v1157, %v204
  %v1160 = vsel %vm95, %v1158, -inf
  %1161 = vmax.xlane.f32.xlu0 %v1160
  %v1162 = vpop.xlane.xlu0 %1161
  %v1163 = vsel %vm95, %v1159, -inf
  %1164 = vmax.xlane.f32.xlu0 %v1163
  %v1165 = vpop.xlane.xlu0 %1164
  %v1166 = vsub.f32 %v1158, %v1162
  %v1167 = vsub.f32 %v1159, %v1165
  %v1168 = vmul.f32 %v1166, 1.442695
  %v1169 = vpow.pop %v1168
  %v1170 = vmul.f32 %v1167, 1.442695
  %v1171 = vpow.pop %v1170
  %v1172 = vsel %vm95, %v1169, 0.0
  %1173 = vadd.xlane.f32.xlu0 %v1172
  %v1174 = vpop.xlane.xlu0 %1173
  %v1175 = vsel %vm95, %v1171, 0.0
  %1176 = vadd.xlane.f32.xlu0 %v1175
  %v1177 = vpop.xlane.xlu0 %1176
  %v1178 = vrcp.pop %v1174
  %v1179 = vmul.f32 %v1174, %v1178
  %v1180 = vsub.f32 1.0, %v1179
  %v1181 = vmul.f32 %v1178, %v1180
  %v1182 = vadd.f32 %v1178, %v1181
  %vm1183 = vweird.f32 %v1174
  %vm1184 = vweird.f32 %v1178
  %vm1185 = vmor %vm1183, %vm1184
  %v1186 = vsel %vm1185, %v1178, %v1182
  %v1187 = vand.u32 2147483647, %v1174
  %vm1188 = vcmp.eq.f32.partialorder %v1187, 8.507059e+37
  %v1189 = vand.u32 %v1174, 2147483648
  %v1190 = vor.u32 1.1754944e-38, %v1189
  %v1191 = vsel %vm1188, %v1190, %v1186
  %v1192 = vmul.f32 %v1169, %v1191
  %v1193 = vrcp.pop %v1177
  %v1194 = vmul.f32 %v1177, %v1193
  %v1195 = vsub.f32 1.0, %v1194
  %v1196 = vmul.f32 %v1193, %v1195
  %v1197 = vadd.f32 %v1193, %v1196
  %vm1198 = vweird.f32 %v1177
  %vm1199 = vweird.f32 %v1193
  %vm1200 = vmor %vm1198, %vm1199
  %v1201 = vsel %vm1200, %v1193, %v1197
  %v1202 = vand.u32 2147483647, %v1177
  %vm1203 = vcmp.eq.f32.partialorder %v1202, 8.507059e+37
  %v1204 = vand.u32 %v1177, 2147483648
  %v1205 = vor.u32 1.1754944e-38, %v1204
  %v1206 = vsel %vm1203, %v1205, %v1201
  %v1207 = vmul.f32 %v1171, %v1206
  %1208 = vrot.lane.b32.xlu0 %v361, 56
  %v1209 = vpop.permute.xlu0 %1208
  %1210 = vrot.lane.b32.xlu0 %v364, 56
  %v1211 = vpop.permute.xlu0 %1210
  %v1215 = vsel %vm95, %v1192, 0
  %v1218 = vsel %vm95, %v1207, 0
  %1220 = vmatpush.msra.mxu0 0.0
  %1221 = vmatpush.msra.mxu0 0.0
  %1222 = vmatpush.msra.mxu0 0.0
  %1223 = vmatpush.msra.mxu0 0.0
  %1224 = vmatpush.msra.mxu0 0.0
  %1225 = vmatpush.msra.mxu0 0.0
  %1226 = vmatpush.msra.mxu0 0.0
  %1227 = vmatpush.msra.mxu0 0.0
  %1228 = vmatpush.msra.mxu0 0.0
  %1229 = vmatpush.msra.mxu0 0.0
  %1230 = vmatpush.msra.mxu0 0.0
  %1231 = vmatpush.msra.mxu0 0.0
  %1232 = vmatpush.msra.mxu0 0.0
  %1233 = vmatpush.msra.mxu0 0.0
  %1234 = vmatpush.msra.mxu0 %v1211
  %1235 = vmatpush.msra.mxu0 %v1209
  %1236 = vmatmul.f32.gmra.mxu0 %v1215
  %v1237 = vpop.f32.mrf.mxu0
  %v1238 = vadd.f32 0.0, %v1237
  %1239 = vmatmul.f32.gmra.mxu0 %v1218
  %v1240 = vpop.f32.mrf.mxu0
  %v1241 = vadd.f32 0.0, %v1240
  %1242 = vdwg.mxu0
  %v1244 = vsel %vm376, %v1238, 0
  %v1247 = vsel %vm376, %v1241, 0
  %1249 = vmatpush.msra.mxu0 0.0
  %1250 = vmatpush.msra.mxu0 0.0
  %1251 = vmatpush.msra.mxu0 0.0
  %1252 = vmatpush.msra.mxu0 0.0
  %1253 = vmatpush.msra.mxu0 0.0
  %1254 = vmatpush.msra.mxu0 0.0
  %1255 = vmatpush.msra.mxu0 0.0
  %1256 = vmatpush.msra.mxu0 0.0
  %1257 = vmatpush.msra.mxu0 0.0
  %1258 = vmatpush.msra.mxu0 0.0
  %1259 = vmatpush.msra.mxu0 0.0
  %1260 = vmatpush.msra.mxu0 0.0
  %1261 = vmatpush.msra.mxu0 0.0
  %1262 = vmatpush.msra.mxu0 0.0
  %1263 = vmatpush.msra.mxu0 0.0
  %1264 = vmatpush.msra.mxu0 %v367
  %1265 = vmatmul.f32.gmra.mxu0 %v1244
  %v1266 = vpop.f32.mrf.mxu0
  %v1267 = vadd.f32 0.0, %v1266
  %1268 = vmatmul.f32.gmra.mxu0 %v1247
  %v1269 = vpop.f32.mrf.mxu0
  %v1270 = vadd.f32 0.0, %v1269
  %1271 = vdwg.mxu0
  %v1273 = vsel %vm376, %v1112, 0
  %v1276 = vsel %vm376, %v1115, 0
  %1278 = vmatpush.msra.mxu0 0.0
  %1279 = vmatpush.msra.mxu0 0.0
  %1280 = vmatpush.msra.mxu0 0.0
  %1281 = vmatpush.msra.mxu0 0.0
  %1282 = vmatpush.msra.mxu0 0.0
  %1283 = vmatpush.msra.mxu0 0.0
  %1284 = vmatpush.msra.mxu0 0.0
  %1285 = vmatpush.msra.mxu0 0.0
  %1286 = vmatpush.msra.mxu0 0.0
  %1287 = vmatpush.msra.mxu0 0.0
  %1288 = vmatpush.msra.mxu0 0.0
  %1289 = vmatpush.msra.mxu0 0.0
  %1290 = vmatpush.msra.mxu0 0.0
  %1291 = vmatpush.msra.mxu0 0.0
  %1292 = vmatpush.msra.mxu0 0.0
  %1293 = vmatpush.msra.mxu0 %v366
  %1294 = vmatmul.f32.gmra.mxu0 %v1273
  %v1295 = vpop.f32.mrf.mxu0
  %v1296 = vadd.f32 %v1267, %v1295
  %1297 = vmatmul.f32.gmra.mxu0 %v1276
  %v1298 = vpop.f32.mrf.mxu0
  %v1299 = vadd.f32 %v1270, %v1298
  %1300 = vdwg.mxu0
  %1301 = vrot.lane.b32.xlu0 %v361, 112
  %v1302 = vpop.permute.xlu0 %1301
  %1303 = vrot.lane.b32.xlu0 %v364, 112
  %v1304 = vpop.permute.xlu0 %1303
  %1305 = vrot.lane.b32.xlu0 %v361, 80
  %v1306 = vpop.permute.xlu0 %1305
  %1307 = vrot.lane.b32.xlu0 %v364, 80
  %v1308 = vpop.permute.xlu0 %1307
  %v1309 = vsel %vm376, %v1302, 0
  %v1311 = vsel %vm376, %v1304, 0
  %v1313 = vsel %vm376, %v1306, 0
  %v1315 = vsel %vm376, %v1308, 0
  %1317 = vmatpush.xpose.msra.mxu0 0.0
  %1318 = vmatpush.xpose.msra.mxu0 0.0
  %1319 = vmatpush.xpose.msra.mxu0 0.0
  %1320 = vmatpush.xpose.msra.mxu0 0.0
  %1321 = vmatpush.xpose.msra.mxu0 0.0
  %1322 = vmatpush.xpose.msra.mxu0 0.0
  %1323 = vmatpush.xpose.msra.mxu0 0.0
  %1324 = vmatpush.xpose.msra.mxu0 0.0
  %1325 = vmatpush.xpose.msra.mxu0 0.0
  %1326 = vmatpush.xpose.msra.mxu0 0.0
  %1327 = vmatpush.xpose.msra.mxu0 0.0
  %1328 = vmatpush.xpose.msra.mxu0 0.0
  %1329 = vmatpush.xpose.msra.mxu0 0.0
  %1330 = vmatpush.xpose.msra.mxu0 0.0
  %1331 = vmatpush.xpose.msra.mxu0 %v1315
  %1332 = vmatpush.xpose.msra.mxu0 %v1313
  %1333 = vmatmul.f32.gmra.mxu0 %v1309
  %v1334 = vpop.f32.mrf.mxu0
  %v1335 = vadd.f32 0.0, %v1334
  %1336 = vmatmul.f32.gmra.mxu0 %v1311
  %v1337 = vpop.f32.mrf.mxu0
  %v1338 = vadd.f32 0.0, %v1337
  %1339 = vdwg.mxu0
  %v1340 = vmul.f32 %v1335, 0.35355338
  %v1341 = vmul.f32 %v1338, 0.35355338
  %v1342 = vadd.f32 %v1340, %v203
  %v1343 = vadd.f32 %v1341, %v204
  %v1344 = vsel %vm95, %v1342, -inf
  %1345 = vmax.xlane.f32.xlu0 %v1344
  %v1346 = vpop.xlane.xlu0 %1345
  %v1347 = vsel %vm95, %v1343, -inf
  %1348 = vmax.xlane.f32.xlu0 %v1347
  %v1349 = vpop.xlane.xlu0 %1348
  %v1350 = vsub.f32 %v1342, %v1346
  %v1351 = vsub.f32 %v1343, %v1349
  %v1352 = vmul.f32 %v1350, 1.442695
  %v1353 = vpow.pop %v1352
  %v1354 = vmul.f32 %v1351, 1.442695
  %v1355 = vpow.pop %v1354
  %v1356 = vsel %vm95, %v1353, 0.0
  %1357 = vadd.xlane.f32.xlu0 %v1356
  %v1358 = vpop.xlane.xlu0 %1357
  %v1359 = vsel %vm95, %v1355, 0.0
  %1360 = vadd.xlane.f32.xlu0 %v1359
  %v1361 = vpop.xlane.xlu0 %1360
  %v1362 = vrcp.pop %v1358
  %v1363 = vmul.f32 %v1358, %v1362
  %v1364 = vsub.f32 1.0, %v1363
  %v1365 = vmul.f32 %v1362, %v1364
  %v1366 = vadd.f32 %v1362, %v1365
  %vm1367 = vweird.f32 %v1358
  %vm1368 = vweird.f32 %v1362
  %vm1369 = vmor %vm1367, %vm1368
  %v1370 = vsel %vm1369, %v1362, %v1366
  %v1371 = vand.u32 2147483647, %v1358
  %vm1372 = vcmp.eq.f32.partialorder %v1371, 8.507059e+37
  %v1373 = vand.u32 %v1358, 2147483648
  %v1374 = vor.u32 1.1754944e-38, %v1373
  %v1375 = vsel %vm1372, %v1374, %v1370
  %v1376 = vmul.f32 %v1353, %v1375
  %v1377 = vrcp.pop %v1361
  %v1378 = vmul.f32 %v1361, %v1377
  %v1379 = vsub.f32 1.0, %v1378
  %v1380 = vmul.f32 %v1377, %v1379
  %v1381 = vadd.f32 %v1377, %v1380
  %vm1382 = vweird.f32 %v1361
  %vm1383 = vweird.f32 %v1377
  %vm1384 = vmor %vm1382, %vm1383
  %v1385 = vsel %vm1384, %v1377, %v1381
  %v1386 = vand.u32 2147483647, %v1361
  %vm1387 = vcmp.eq.f32.partialorder %v1386, 8.507059e+37
  %v1388 = vand.u32 %v1361, 2147483648
  %v1389 = vor.u32 1.1754944e-38, %v1388
  %v1390 = vsel %vm1387, %v1389, %v1385
  %v1391 = vmul.f32 %v1355, %v1390
  %1392 = vrot.lane.b32.xlu0 %v361, 48
  %v1393 = vpop.permute.xlu0 %1392
  %1394 = vrot.lane.b32.xlu0 %v364, 48
  %v1395 = vpop.permute.xlu0 %1394
  %v1399 = vsel %vm95, %v1376, 0
  %v1402 = vsel %vm95, %v1391, 0
  %1404 = vmatpush.msra.mxu0 0.0
  %1405 = vmatpush.msra.mxu0 0.0
  %1406 = vmatpush.msra.mxu0 0.0
  %1407 = vmatpush.msra.mxu0 0.0
  %1408 = vmatpush.msra.mxu0 0.0
  %1409 = vmatpush.msra.mxu0 0.0
  %1410 = vmatpush.msra.mxu0 0.0
  %1411 = vmatpush.msra.mxu0 0.0
  %1412 = vmatpush.msra.mxu0 0.0
  %1413 = vmatpush.msra.mxu0 0.0
  %1414 = vmatpush.msra.mxu0 0.0
  %1415 = vmatpush.msra.mxu0 0.0
  %1416 = vmatpush.msra.mxu0 0.0
  %1417 = vmatpush.msra.mxu0 0.0
  %1418 = vmatpush.msra.mxu0 %v1395
  %1419 = vmatpush.msra.mxu0 %v1393
  %1420 = vmatmul.f32.gmra.mxu0 %v1399
  %v1421 = vpop.f32.mrf.mxu0
  %v1422 = vadd.f32 0.0, %v1421
  %1423 = vmatmul.f32.gmra.mxu0 %v1402
  %v1424 = vpop.f32.mrf.mxu0
  %v1425 = vadd.f32 0.0, %v1424
  %1426 = vdwg.mxu0
  %v1428 = vsel %vm376, %v1422, 0
  %v1431 = vsel %vm376, %v1425, 0
  %1433 = vmatpush.msra.mxu0 0.0
  %1434 = vmatpush.msra.mxu0 0.0
  %1435 = vmatpush.msra.mxu0 0.0
  %1436 = vmatpush.msra.mxu0 0.0
  %1437 = vmatpush.msra.mxu0 0.0
  %1438 = vmatpush.msra.mxu0 0.0
  %1439 = vmatpush.msra.mxu0 0.0
  %1440 = vmatpush.msra.mxu0 0.0
  %1441 = vmatpush.msra.mxu0 0.0
  %1442 = vmatpush.msra.mxu0 0.0
  %1443 = vmatpush.msra.mxu0 0.0
  %1444 = vmatpush.msra.mxu0 0.0
  %1445 = vmatpush.msra.mxu0 0.0
  %1446 = vmatpush.msra.mxu0 0.0
  %1447 = vmatpush.msra.mxu0 0.0
  %1448 = vmatpush.msra.mxu0 %v368
  %1449 = vmatmul.f32.gmra.mxu0 %v1428
  %v1450 = vpop.f32.mrf.mxu0
  %v1451 = vadd.f32 0.0, %v1450
  %1452 = vmatmul.f32.gmra.mxu0 %v1431
  %v1453 = vpop.f32.mrf.mxu0
  %v1454 = vadd.f32 0.0, %v1453
  %1455 = vdwg.mxu0
  %v1456 = vadd.f32 %v1296, %v1451
  %v1457 = vadd.f32 %v1299, %v1454
  %1458 = vrot.lane.b32.xlu0 %v361, 104
  %v1459 = vpop.permute.xlu0 %1458
  %1460 = vrot.lane.b32.xlu0 %v364, 104
  %v1461 = vpop.permute.xlu0 %1460
  %1462 = vrot.lane.b32.xlu0 %v361, 72
  %v1463 = vpop.permute.xlu0 %1462
  %1464 = vrot.lane.b32.xlu0 %v364, 72
  %v1465 = vpop.permute.xlu0 %1464
  %v1466 = vsel %vm376, %v1459, 0
  %v1468 = vsel %vm376, %v1461, 0
  %v1470 = vsel %vm376, %v1463, 0
  %v1472 = vsel %vm376, %v1465, 0
  %1474 = vmatpush.xpose.msra.mxu0 0.0
  %1475 = vmatpush.xpose.msra.mxu0 0.0
  %1476 = vmatpush.xpose.msra.mxu0 0.0
  %1477 = vmatpush.xpose.msra.mxu0 0.0
  %1478 = vmatpush.xpose.msra.mxu0 0.0
  %1479 = vmatpush.xpose.msra.mxu0 0.0
  %1480 = vmatpush.xpose.msra.mxu0 0.0
  %1481 = vmatpush.xpose.msra.mxu0 0.0
  %1482 = vmatpush.xpose.msra.mxu0 0.0
  %1483 = vmatpush.xpose.msra.mxu0 0.0
  %1484 = vmatpush.xpose.msra.mxu0 0.0
  %1485 = vmatpush.xpose.msra.mxu0 0.0
  %1486 = vmatpush.xpose.msra.mxu0 0.0
  %1487 = vmatpush.xpose.msra.mxu0 0.0
  %1488 = vmatpush.xpose.msra.mxu0 %v1472
  %1489 = vmatpush.xpose.msra.mxu0 %v1470
  %1490 = vmatmul.f32.gmra.mxu0 %v1466
  %v1491 = vpop.f32.mrf.mxu0
  %v1492 = vadd.f32 0.0, %v1491
  %1493 = vmatmul.f32.gmra.mxu0 %v1468
  %v1494 = vpop.f32.mrf.mxu0
  %v1495 = vadd.f32 0.0, %v1494
  %1496 = vdwg.mxu0
  %v1497 = vmul.f32 %v1492, 0.35355338
  %v1498 = vmul.f32 %v1495, 0.35355338
  %v1499 = vadd.f32 %v1497, %v203
  %v1500 = vadd.f32 %v1498, %v204
  %v1501 = vsel %vm95, %v1499, -inf
  %1502 = vmax.xlane.f32.xlu0 %v1501
  %v1503 = vpop.xlane.xlu0 %1502
  %v1504 = vsel %vm95, %v1500, -inf
  %1505 = vmax.xlane.f32.xlu0 %v1504
  %v1506 = vpop.xlane.xlu0 %1505
  %v1507 = vsub.f32 %v1499, %v1503
  %v1508 = vsub.f32 %v1500, %v1506
  %v1509 = vmul.f32 %v1507, 1.442695
  %v1510 = vpow.pop %v1509
  %v1511 = vmul.f32 %v1508, 1.442695
  %v1512 = vpow.pop %v1511
  %v1513 = vsel %vm95, %v1510, 0.0
  %1514 = vadd.xlane.f32.xlu0 %v1513
  %v1515 = vpop.xlane.xlu0 %1514
  %v1516 = vsel %vm95, %v1512, 0.0
  %1517 = vadd.xlane.f32.xlu0 %v1516
  %v1518 = vpop.xlane.xlu0 %1517
  %v1519 = vrcp.pop %v1515
  %v1520 = vmul.f32 %v1515, %v1519
  %v1521 = vsub.f32 1.0, %v1520
  %v1522 = vmul.f32 %v1519, %v1521
  %v1523 = vadd.f32 %v1519, %v1522
  %vm1524 = vweird.f32 %v1515
  %vm1525 = vweird.f32 %v1519
  %vm1526 = vmor %vm1524, %vm1525
  %v1527 = vsel %vm1526, %v1519, %v1523
  %v1528 = vand.u32 2147483647, %v1515
  %vm1529 = vcmp.eq.f32.partialorder %v1528, 8.507059e+37
  %v1530 = vand.u32 %v1515, 2147483648
  %v1531 = vor.u32 1.1754944e-38, %v1530
  %v1532 = vsel %vm1529, %v1531, %v1527
  %v1533 = vmul.f32 %v1510, %v1532
  %v1534 = vrcp.pop %v1518
  %v1535 = vmul.f32 %v1518, %v1534
  %v1536 = vsub.f32 1.0, %v1535
  %v1537 = vmul.f32 %v1534, %v1536
  %v1538 = vadd.f32 %v1534, %v1537
  %vm1539 = vweird.f32 %v1518
  %vm1540 = vweird.f32 %v1534
  %vm1541 = vmor %vm1539, %vm1540
  %v1542 = vsel %vm1541, %v1534, %v1538
  %v1543 = vand.u32 2147483647, %v1518
  %vm1544 = vcmp.eq.f32.partialorder %v1543, 8.507059e+37
  %v1545 = vand.u32 %v1518, 2147483648
  %v1546 = vor.u32 1.1754944e-38, %v1545
  %v1547 = vsel %vm1544, %v1546, %v1542
  %v1548 = vmul.f32 %v1512, %v1547
  %1549 = vrot.lane.b32.xlu0 %v361, 40
  %v1550 = vpop.permute.xlu0 %1549
  %1551 = vrot.lane.b32.xlu0 %v364, 40
  %v1552 = vpop.permute.xlu0 %1551
  %v1556 = vsel %vm95, %v1533, 0
  %v1559 = vsel %vm95, %v1548, 0
  %1561 = vmatpush.msra.mxu0 0.0
  %1562 = vmatpush.msra.mxu0 0.0
  %1563 = vmatpush.msra.mxu0 0.0
  %1564 = vmatpush.msra.mxu0 0.0
  %1565 = vmatpush.msra.mxu0 0.0
  %1566 = vmatpush.msra.mxu0 0.0
  %1567 = vmatpush.msra.mxu0 0.0
  %1568 = vmatpush.msra.mxu0 0.0
  %1569 = vmatpush.msra.mxu0 0.0
  %1570 = vmatpush.msra.mxu0 0.0
  %1571 = vmatpush.msra.mxu0 0.0
  %1572 = vmatpush.msra.mxu0 0.0
  %1573 = vmatpush.msra.mxu0 0.0
  %1574 = vmatpush.msra.mxu0 0.0
  %1575 = vmatpush.msra.mxu0 %v1552
  %1576 = vmatpush.msra.mxu0 %v1550
  %1577 = vmatmul.f32.gmra.mxu0 %v1556
  %v1578 = vpop.f32.mrf.mxu0
  %v1579 = vadd.f32 0.0, %v1578
  %1580 = vmatmul.f32.gmra.mxu0 %v1559
  %v1581 = vpop.f32.mrf.mxu0
  %v1582 = vadd.f32 0.0, %v1581
  %1583 = vdwg.mxu0
  %v1585 = vsel %vm376, %v1579, 0
  %v1588 = vsel %vm376, %v1582, 0
  %1590 = vmatpush.msra.mxu0 0.0
  %1591 = vmatpush.msra.mxu0 0.0
  %1592 = vmatpush.msra.mxu0 0.0
  %1593 = vmatpush.msra.mxu0 0.0
  %1594 = vmatpush.msra.mxu0 0.0
  %1595 = vmatpush.msra.mxu0 0.0
  %1596 = vmatpush.msra.mxu0 0.0
  %1597 = vmatpush.msra.mxu0 0.0
  %1598 = vmatpush.msra.mxu0 0.0
  %1599 = vmatpush.msra.mxu0 0.0
  %1600 = vmatpush.msra.mxu0 0.0
  %1601 = vmatpush.msra.mxu0 0.0
  %1602 = vmatpush.msra.mxu0 0.0
  %1603 = vmatpush.msra.mxu0 0.0
  %1604 = vmatpush.msra.mxu0 0.0
  %1605 = vmatpush.msra.mxu0 %v369
  %1606 = vmatmul.f32.gmra.mxu0 %v1585
  %v1607 = vpop.f32.mrf.mxu0
  %v1608 = vadd.f32 0.0, %v1607
  %1609 = vmatmul.f32.gmra.mxu0 %v1588
  %v1610 = vpop.f32.mrf.mxu0
  %v1611 = vadd.f32 0.0, %v1610
  %1612 = vdwg.mxu0
  %v1613 = vadd.f32 %v1456, %v1608
  %v1614 = vadd.f32 %v1457, %v1611
  %v1615 = vadd.f32 %v179, %v991
  %v1616 = vadd.f32 %v180, %v992
  %v1617 = vadd.f32 %v181, %v1613
  %v1618 = vadd.f32 %v182, %v1614
  %v1619 = vld [vmem:[%s14] sm:$0x1]
  %v1621 = vperm.slane %v1619, 0
  %v1623 = vadd.f32 %v1615, %v1621
  %v1624 = vadd.f32 %v1616, %v1621
  %v1625 = vadd.f32 %v1617, %v1621
  %v1626 = vadd.f32 %v1618, %v1621
  %v1627 = vld [vmem:[%s15] sm:$0x1]
  %v1628 = vld [vmem:[%s16] sm:$0x1]
  %v1629 = vsel %vm207, %v1623, 0.0
  %1630 = vadd.xlane.f32.xlu0 %v1629
  %v1631 = vpop.xlane.xlu0 %1630
  %v1632 = vsel %vm207, %v1624, 0.0
  %1633 = vadd.xlane.f32.xlu0 %v1632
  %v1634 = vpop.xlane.xlu0 %1633
  %v1635 = vsel %vm207, %v1625, 0.0
  %1636 = vadd.xlane.f32.xlu0 %v1635
  %v1637 = vpop.xlane.xlu0 %1636
  %v1638 = vsel %vm207, %v1626, 0.0
  %1639 = vadd.xlane.f32.xlu0 %v1638
  %v1640 = vpop.xlane.xlu0 %1639
  %v1641 = vmul.f32 %v1631, %v226
  %v1642 = vmul.f32 %v1634, %v226
  %v1643 = vmul.f32 %v1637, %v226
  %v1644 = vmul.f32 %v1640, %v226
  %v1645 = vsub.f32 %v1623, %v1641
  %v1646 = vsub.f32 %v1624, %v1642
  %v1647 = vsub.f32 %v1625, %v1643
  %v1648 = vsub.f32 %v1626, %v1644
  %v1649 = vmul.f32 %v1645, %v1645
  %v1650 = vmul.f32 %v1646, %v1646
  %v1651 = vmul.f32 %v1647, %v1647
  %v1652 = vmul.f32 %v1648, %v1648
  %v1653 = vsel %vm207, %v1649, 0.0
  %1654 = vadd.xlane.f32.xlu0 %v1653
  %v1655 = vpop.xlane.xlu0 %1654
  %v1656 = vsel %vm207, %v1650, 0.0
  %1657 = vadd.xlane.f32.xlu0 %v1656
  %v1658 = vpop.xlane.xlu0 %1657
  %v1659 = vsel %vm207, %v1651, 0.0
  %1660 = vadd.xlane.f32.xlu0 %v1659
  %v1661 = vpop.xlane.xlu0 %1660
  %v1662 = vsel %vm207, %v1652, 0.0
  %1663 = vadd.xlane.f32.xlu0 %v1662
  %v1664 = vpop.xlane.xlu0 %1663
  %v1665 = vmul.f32 %v1655, %v226
  %v1666 = vmul.f32 %v1658, %v226
  %v1667 = vmul.f32 %v1661, %v226
  %v1668 = vmul.f32 %v1664, %v226
  %v1669 = vadd.f32 %v1665, 1e-05
  %v1670 = vadd.f32 %v1666, 1e-05
  %v1671 = vadd.f32 %v1667, 1e-05
  %v1672 = vadd.f32 %v1668, 1e-05
  %v1673 = vrsqrt.pop %v1669
  %v1674 = vmul.f32 %v1673, %v1669
  %v1675 = vmul.f32 %v1674, %v1673
  %v1676 = vmul.f32 0.5, %v1675
  %v1677 = vsub.f32 1.5, %v1676
  %v1678 = vmul.f32 %v1673, %v1677
  %vm1679 = vweird.f32 %v1669
  %vm1680 = vweird.f32 %v1673
  %vm1681 = vmor %vm1679, %vm1680
  %v1682 = vsel %vm1681, %v1673, %v1678
  %v1683 = vrsqrt.pop %v1670
  %v1684 = vmul.f32 %v1683, %v1670
  %v1685 = vmul.f32 %v1684, %v1683
  %v1686 = vmul.f32 0.5, %v1685
  %v1687 = vsub.f32 1.5, %v1686
  %v1688 = vmul.f32 %v1683, %v1687
  %vm1689 = vweird.f32 %v1670
  %vm1690 = vweird.f32 %v1683
  %vm1691 = vmor %vm1689, %vm1690
  %v1692 = vsel %vm1691, %v1683, %v1688
  %v1693 = vrsqrt.pop %v1671
  %v1694 = vmul.f32 %v1693, %v1671
  %v1695 = vmul.f32 %v1694, %v1693
  %v1696 = vmul.f32 0.5, %v1695
  %v1697 = vsub.f32 1.5, %v1696
  %v1698 = vmul.f32 %v1693, %v1697
  %vm1699 = vweird.f32 %v1671
  %vm1700 = vweird.f32 %v1693
  %vm1701 = vmor %vm1699, %vm1700
  %v1702 = vsel %vm1701, %v1693, %v1698
  %v1703 = vrsqrt.pop %v1672
  %v1704 = vmul.f32 %v1703, %v1672
  %v1705 = vmul.f32 %v1704, %v1703
  %v1706 = vmul.f32 0.5, %v1705
  %v1707 = vsub.f32 1.5, %v1706
  %v1708 = vmul.f32 %v1703, %v1707
  %vm1709 = vweird.f32 %v1672
  %vm1710 = vweird.f32 %v1703
  %vm1711 = vmor %vm1709, %vm1710
  %v1712 = vsel %vm1711, %v1703, %v1708
  %v1713 = vmul.f32 %v1645, %v1682
  %v1714 = vmul.f32 %v1646, %v1692
  %v1715 = vmul.f32 %v1647, %v1702
  %v1716 = vmul.f32 %v1648, %v1712
  %v1718 = vperm.slane %v1627, 0
  %v1720 = vmul.f32 %v1713, %v1718
  %v1721 = vmul.f32 %v1714, %v1718
  %v1722 = vmul.f32 %v1715, %v1718
  %v1723 = vmul.f32 %v1716, %v1718
  %v1725 = vperm.slane %v1628, 0
  %v1727 = vadd.f32 %v1720, %v1725
  %v1728 = vadd.f32 %v1721, %v1725
  %v1729 = vadd.f32 %v1722, %v1725
  %v1730 = vadd.f32 %v1723, %v1725
  %v1731 = vld [vmem:[%s17] sm:$0xff]
  %v1732 = vld [vmem:[%s17 + $0x8] sm:$0xff]
  %v1733 = vld [vmem:[%s17 + $0x10] sm:$0xff]
  %v1734 = vld [vmem:[%s17 + $0x18] sm:$0xff]
  %v1735 = vld [vmem:[%s18] sm:$0x1]
  %v1737 = vperm.slane %v1735, 0
  %v1740 = vsel %vm207, %v1727, 0
  %v1743 = vsel %vm207, %v1728, 0
  %v1746 = vsel %vm207, %v1729, 0
  %v1749 = vsel %vm207, %v1730, 0
  %1751 = vmatpush.msra.mxu0 0.0
  %1752 = vmatpush.msra.mxu0 0.0
  %1753 = vmatpush.msra.mxu0 0.0
  %1754 = vmatpush.msra.mxu0 0.0
  %1755 = vmatpush.msra.mxu0 0.0
  %1756 = vmatpush.msra.mxu0 0.0
  %1757 = vmatpush.msra.mxu0 0.0
  %1758 = vmatpush.msra.mxu0 0.0
  %1759 = vmatpush.msra.mxu0 0.0
  %1760 = vmatpush.msra.mxu0 0.0
  %1761 = vmatpush.msra.mxu0 0.0
  %1762 = vmatpush.msra.mxu0 0.0
  %1763 = vmatpush.msra.mxu0 %v1734
  %1764 = vmatpush.msra.mxu0 %v1733
  %1765 = vmatpush.msra.mxu0 %v1732
  %1766 = vmatpush.msra.mxu0 %v1731
  %1767 = vmatmul.f32.gmra.mxu0 %v1740
  %v1768 = vpop.f32.mrf.mxu0
  %v1769 = vadd.f32 %v1737, %v1768
  %1770 = vmatmul.f32.gmra.mxu0 %v1743
  %v1771 = vpop.f32.mrf.mxu0
  %v1772 = vadd.f32 %v1737, %v1771
  %1773 = vmatmul.f32.gmra.mxu0 %v1746
  %v1774 = vpop.f32.mrf.mxu0
  %v1775 = vadd.f32 %v1737, %v1774
  %1776 = vmatmul.f32.gmra.mxu0 %v1749
  %v1777 = vpop.f32.mrf.mxu0
  %v1778 = vadd.f32 %v1737, %v1777
  %1779 = vdwg.mxu0
  %v1780 = vmul.f32 %v1769, 0.5
  %v1781 = vmul.f32 %v1772, 0.5
  %v1782 = vmul.f32 %v1775, 0.5
  %v1783 = vmul.f32 %v1778, 0.5
  %v1784 = vmul.f32 %v1769, 0.044715
  %v1785 = vmul.f32 %v1772, 0.044715
  %v1786 = vmul.f32 %v1775, 0.044715
  %v1787 = vmul.f32 %v1778, 0.044715
  %v1788 = vmul.f32 %v1784, %v1769
  %v1789 = vmul.f32 %v1785, %v1772
  %v1790 = vmul.f32 %v1786, %v1775
  %v1791 = vmul.f32 %v1787, %v1778
  %v1792 = vmul.f32 %v1788, %v1769
  %v1793 = vmul.f32 %v1789, %v1772
  %v1794 = vmul.f32 %v1790, %v1775
  %v1795 = vmul.f32 %v1791, %v1778
  %v1796 = vadd.f32 %v1769, %v1792
  %v1797 = vadd.f32 %v1772, %v1793
  %v1798 = vadd.f32 %v1775, %v1794
  %v1799 = vadd.f32 %v1778, %v1795
  %v1800 = vmul.f32 %v1796, 0.7978846
  %v1801 = vmul.f32 %v1797, 0.7978846
  %v1802 = vmul.f32 %v1798, 0.7978846
  %v1803 = vmul.f32 %v1799, 0.7978846
  %v1804 = vtanh.pop %v1800
  %v1805 = vtanh.pop %v1801
  %v1806 = vtanh.pop %v1802
  %v1807 = vtanh.pop %v1803
  %v1808 = vadd.f32 %v1804, 1.0
  %v1809 = vadd.f32 %v1805, 1.0
  %v1810 = vadd.f32 %v1806, 1.0
  %v1811 = vadd.f32 %v1807, 1.0
  %v1812 = vmul.f32 %v1780, %v1808
  %v1813 = vmul.f32 %v1781, %v1809
  %v1814 = vmul.f32 %v1782, %v1810
  %v1815 = vmul.f32 %v1783, %v1811
  %v1816 = vld [vmem:[%s19] sm:$0xff]
  %v1817 = vld [vmem:[%s19 + $0x8] sm:$0xff]
  %v1818 = vld [vmem:[%s19 + $0x10] sm:$0xff]
  %v1819 = vld [vmem:[%s19 + $0x18] sm:$0xff]
  %v1820 = vld [vmem:[%s19 + $0x20] sm:$0xff]
  %v1821 = vld [vmem:[%s19 + $0x28] sm:$0xff]
  %v1822 = vld [vmem:[%s19 + $0x30] sm:$0xff]
  %v1823 = vld [vmem:[%s19 + $0x38] sm:$0xff]
  %v1824 = vld [vmem:[%s19 + $0x40] sm:$0xff]
  %v1825 = vld [vmem:[%s19 + $0x48] sm:$0xff]
  %v1826 = vld [vmem:[%s19 + $0x50] sm:$0xff]
  %v1827 = vld [vmem:[%s19 + $0x58] sm:$0xff]
  %v1828 = vld [vmem:[%s19 + $0x60] sm:$0xff]
  %v1829 = vld [vmem:[%s19 + $0x68] sm:$0xff]
  %v1830 = vld [vmem:[%s19 + $0x70] sm:$0xff]
  %v1831 = vld [vmem:[%s19 + $0x78] sm:$0xff]
  %v1832 = vld [vmem:[%s20] sm:$0x1]
  %v1834 = vperm.slane %v1832, 0
  %1836 = vmatpush.msra.mxu0 %v1831
  %1837 = vmatpush.msra.mxu0 %v1830
  %1838 = vmatpush.msra.mxu0 %v1829
  %1839 = vmatpush.msra.mxu0 %v1828
  %1840 = vmatpush.msra.mxu0 %v1827
  %1841 = vmatpush.msra.mxu0 %v1826
  %1842 = vmatpush.msra.mxu0 %v1825
  %1843 = vmatpush.msra.mxu0 %v1824
  %1844 = vmatpush.msra.mxu0 %v1823
  %1845 = vmatpush.msra.mxu0 %v1822
  %1846 = vmatpush.msra.mxu0 %v1821
  %1847 = vmatpush.msra.mxu0 %v1820
  %1848 = vmatpush.msra.mxu0 %v1819
  %1849 = vmatpush.msra.mxu0 %v1818
  %1850 = vmatpush.msra.mxu0 %v1817
  %1851 = vmatpush.msra.mxu0 %v1816
  %1852 = vmatmul.f32.gmra.mxu0 %v1812
  %v1853 = vpop.f32.mrf.mxu0
  %v1854 = vadd.f32 %v1834, %v1853
  %1855 = vmatmul.f32.gmra.mxu0 %v1813
  %v1856 = vpop.f32.mrf.mxu0
  %v1857 = vadd.f32 %v1834, %v1856
  %1858 = vmatmul.f32.gmra.mxu0 %v1814
  %v1859 = vpop.f32.mrf.mxu0
  %v1860 = vadd.f32 %v1834, %v1859
  %1861 = vmatmul.f32.gmra.mxu0 %v1815
  %v1862 = vpop.f32.mrf.mxu0
  %v1863 = vadd.f32 %v1834, %v1862
  %1864 = vdwg.mxu0
  %v1865 = vadd.f32 %v1623, %v1854
  %v1866 = vadd.f32 %v1624, %v1857
  %v1867 = vadd.f32 %v1625, %v1860
  %v1868 = vadd.f32 %v1626, %v1863
  %s1869 = scalar_lea.vmem %s9, 1
  %v1870 = vld [vmem:[%s1869] sm:$0x1]
  %s1871 = scalar_lea.vmem %s10, 1
  %v1872 = vld [vmem:[%s1871] sm:$0x1]
  %v1873 = vsel %vm207, %v1865, 0.0
  %1874 = vadd.xlane.f32.xlu0 %v1873
  %v1875 = vpop.xlane.xlu0 %1874
  %v1876 = vsel %vm207, %v1866, 0.0
  %1877 = vadd.xlane.f32.xlu0 %v1876
  %v1878 = vpop.xlane.xlu0 %1877
  %v1879 = vsel %vm207, %v1867, 0.0
  %1880 = vadd.xlane.f32.xlu0 %v1879
  %v1881 = vpop.xlane.xlu0 %1880
  %v1882 = vsel %vm207, %v1868, 0.0
  %1883 = vadd.xlane.f32.xlu0 %v1882
  %v1884 = vpop.xlane.xlu0 %1883
  %v1885 = vmul.f32 %v1875, %v226
  %v1886 = vmul.f32 %v1878, %v226
  %v1887 = vmul.f32 %v1881, %v226
  %v1888 = vmul.f32 %v1884, %v226
  %v1889 = vsub.f32 %v1865, %v1885
  %v1890 = vsub.f32 %v1866, %v1886
  %v1891 = vsub.f32 %v1867, %v1887
  %v1892 = vsub.f32 %v1868, %v1888
  %v1893 = vmul.f32 %v1889, %v1889
  %v1894 = vmul.f32 %v1890, %v1890
  %v1895 = vmul.f32 %v1891, %v1891
  %v1896 = vmul.f32 %v1892, %v1892
  %v1897 = vsel %vm207, %v1893, 0.0
  %1898 = vadd.xlane.f32.xlu0 %v1897
  %v1899 = vpop.xlane.xlu0 %1898
  %v1900 = vsel %vm207, %v1894, 0.0
  %1901 = vadd.xlane.f32.xlu0 %v1900
  %v1902 = vpop.xlane.xlu0 %1901
  %v1903 = vsel %vm207, %v1895, 0.0
  %1904 = vadd.xlane.f32.xlu0 %v1903
  %v1905 = vpop.xlane.xlu0 %1904
  %v1906 = vsel %vm207, %v1896, 0.0
  %1907 = vadd.xlane.f32.xlu0 %v1906
  %v1908 = vpop.xlane.xlu0 %1907
  %v1909 = vmul.f32 %v1899, %v226
  %v1910 = vmul.f32 %v1902, %v226
  %v1911 = vmul.f32 %v1905, %v226
  %v1912 = vmul.f32 %v1908, %v226
  %v1913 = vadd.f32 %v1909, 1e-05
  %v1914 = vadd.f32 %v1910, 1e-05
  %v1915 = vadd.f32 %v1911, 1e-05
  %v1916 = vadd.f32 %v1912, 1e-05
  %v1917 = vrsqrt.pop %v1913
  %v1918 = vmul.f32 %v1917, %v1913
  %v1919 = vmul.f32 %v1918, %v1917
  %v1920 = vmul.f32 0.5, %v1919
  %v1921 = vsub.f32 1.5, %v1920
  %v1922 = vmul.f32 %v1917, %v1921
  %vm1923 = vweird.f32 %v1913
  %vm1924 = vweird.f32 %v1917
  %vm1925 = vmor %vm1923, %vm1924
  %v1926 = vsel %vm1925, %v1917, %v1922
  %v1927 = vrsqrt.pop %v1914
  %v1928 = vmul.f32 %v1927, %v1914
  %v1929 = vmul.f32 %v1928, %v1927
  %v1930 = vmul.f32 0.5, %v1929
  %v1931 = vsub.f32 1.5, %v1930
  %v1932 = vmul.f32 %v1927, %v1931
  %vm1933 = vweird.f32 %v1914
  %vm1934 = vweird.f32 %v1927
  %vm1935 = vmor %vm1933, %vm1934
  %v1936 = vsel %vm1935, %v1927, %v1932
  %v1937 = vrsqrt.pop %v1915
  %v1938 = vmul.f32 %v1937, %v1915
  %v1939 = vmul.f32 %v1938, %v1937
  %v1940 = vmul.f32 0.5, %v1939
  %v1941 = vsub.f32 1.5, %v1940
  %v1942 = vmul.f32 %v1937, %v1941
  %vm1943 = vweird.f32 %v1915
  %vm1944 = vweird.f32 %v1937
  %vm1945 = vmor %vm1943, %vm1944
  %v1946 = vsel %vm1945, %v1937, %v1942
  %v1947 = vrsqrt.pop %v1916
  %v1948 = vmul.f32 %v1947, %v1916
  %v1949 = vmul.f32 %v1948, %v1947
  %v1950 = vmul.f32 0.5, %v1949
  %v1951 = vsub.f32 1.5, %v1950
  %v1952 = vmul.f32 %v1947, %v1951
  %vm1953 = vweird.f32 %v1916
  %vm1954 = vweird.f32 %v1947
  %vm1955 = vmor %vm1953, %vm1954
  %v1956 = vsel %vm1955, %v1947, %v1952
  %v1957 = vmul.f32 %v1889, %v1926
  %v1958 = vmul.f32 %v1890, %v1936
  %v1959 = vmul.f32 %v1891, %v1946
  %v1960 = vmul.f32 %v1892, %v1956
  %v1962 = vperm.slane %v1870, 0
  %v1964 = vmul.f32 %v1957, %v1962
  %v1965 = vmul.f32 %v1958, %v1962
  %v1966 = vmul.f32 %v1959, %v1962
  %v1967 = vmul.f32 %v1960, %v1962
  %v1969 = vperm.slane %v1872, 0
  %v1971 = vadd.f32 %v1964, %v1969
  %v1972 = vadd.f32 %v1965, %v1969
  %v1973 = vadd.f32 %v1966, %v1969
  %v1974 = vadd.f32 %v1967, %v1969
  %s1975 = scalar_lea.vmem %s11, 32
  %v1976 = vld [vmem:[%s1975] sm:$0xff]
  %v1977 = vld [vmem:[%s1975 + $0x8] sm:$0xff]
  %v1978 = vld [vmem:[%s1975 + $0x10] sm:$0xff]
  %v1979 = vld [vmem:[%s1975 + $0x18] sm:$0xff]
  %s1980 = scalar_lea.vmem %s12, 1
  %v1981 = vld [vmem:[%s1980] sm:$0x1]
  %v1983 = vperm.slane %v1981, 0
  %v1986 = vsel %vm207, %v1971, 0
  %v1989 = vsel %vm207, %v1972, 0
  %v1992 = vsel %vm207, %v1973, 0
  %v1995 = vsel %vm207, %v1974, 0
  %1997 = vmatpush.msra.mxu0 0.0
  %1998 = vmatpush.msra.mxu0 0.0
  %1999 = vmatpush.msra.mxu0 0.0
  %2000 = vmatpush.msra.mxu0 0.0
  %2001 = vmatpush.msra.mxu0 0.0
  %2002 = vmatpush.msra.mxu0 0.0
  %2003 = vmatpush.msra.mxu0 0.0
  %2004 = vmatpush.msra.mxu0 0.0
  %2005 = vmatpush.msra.mxu0 0.0
  %2006 = vmatpush.msra.mxu0 0.0
  %2007 = vmatpush.msra.mxu0 0.0
  %2008 = vmatpush.msra.mxu0 0.0
  %2009 = vmatpush.msra.mxu0 %v1979
  %2010 = vmatpush.msra.mxu0 %v1978
  %2011 = vmatpush.msra.mxu0 %v1977
  %2012 = vmatpush.msra.mxu0 %v1976
  %2013 = vmatmul.f32.gmra.mxu0 %v1986
  %v2014 = vpop.f32.mrf.mxu0
  %v2015 = vadd.f32 %v1983, %v2014
  %2016 = vmatmul.f32.gmra.mxu0 %v1989
  %v2017 = vpop.f32.mrf.mxu0
  %v2018 = vadd.f32 %v1983, %v2017
  %2019 = vmatmul.f32.gmra.mxu0 %v1992
  %v2020 = vpop.f32.mrf.mxu0
  %v2021 = vadd.f32 %v1983, %v2020
  %2022 = vmatmul.f32.gmra.mxu0 %v1995
  %v2023 = vpop.f32.mrf.mxu0
  %v2024 = vadd.f32 %v1983, %v2023
  %2025 = vdwg.mxu0
  %s2026 = scalar_lea.vmem %s13, 32
  %v2027 = vld [vmem:[%s2026] sm:$0xff]
  %v2028 = vld [vmem:[%s2026 + $0x8] sm:$0xff]
  %v2029 = vld [vmem:[%s2026 + $0x10] sm:$0xff]
  %v2030 = vld [vmem:[%s2026 + $0x18] sm:$0xff]
  %2033 = vrot.lane.b32.xlu0 %v2015, 96
  %v2034 = vpop.permute.xlu0 %2033
  %2035 = vrot.lane.b32.xlu0 %v2018, 96
  %v2036 = vpop.permute.xlu0 %2035
  %v2037 = vsel %vm376, %v2015, 0
  %v2039 = vsel %vm376, %v2018, 0
  %v2041 = vsel %vm376, %v2034, 0
  %v2043 = vsel %vm376, %v2036, 0
  %2045 = vmatpush.xpose.msra.mxu0 0.0
  %2046 = vmatpush.xpose.msra.mxu0 0.0
  %2047 = vmatpush.xpose.msra.mxu0 0.0
  %2048 = vmatpush.xpose.msra.mxu0 0.0
  %2049 = vmatpush.xpose.msra.mxu0 0.0
  %2050 = vmatpush.xpose.msra.mxu0 0.0
  %2051 = vmatpush.xpose.msra.mxu0 0.0
  %2052 = vmatpush.xpose.msra.mxu0 0.0
  %2053 = vmatpush.xpose.msra.mxu0 0.0
  %2054 = vmatpush.xpose.msra.mxu0 0.0
  %2055 = vmatpush.xpose.msra.mxu0 0.0
  %2056 = vmatpush.xpose.msra.mxu0 0.0
  %2057 = vmatpush.xpose.msra.mxu0 0.0
  %2058 = vmatpush.xpose.msra.mxu0 0.0
  %2059 = vmatpush.xpose.msra.mxu0 %v2043
  %2060 = vmatpush.xpose.msra.mxu0 %v2041
  %2061 = vmatmul.f32.gmra.mxu0 %v2037
  %v2062 = vpop.f32.mrf.mxu0
  %v2063 = vadd.f32 0.0, %v2062
  %2064 = vmatmul.f32.gmra.mxu0 %v2039
  %v2065 = vpop.f32.mrf.mxu0
  %v2066 = vadd.f32 0.0, %v2065
  %2067 = vdwg.mxu0
  %v2068 = vmul.f32 %v2063, 0.35355338
  %v2069 = vmul.f32 %v2066, 0.35355338
  %v2070 = vadd.f32 %v2068, %v197
  %v2071 = vadd.f32 %v2069, %v198
  %v2072 = vsel %vm95, %v2070, -inf
  %2073 = vmax.xlane.f32.xlu0 %v2072
  %v2074 = vpop.xlane.xlu0 %2073
  %v2075 = vsel %vm95, %v2071, -inf
  %2076 = vmax.xlane.f32.xlu0 %v2075
  %v2077 = vpop.xlane.xlu0 %2076
  %v2078 = vsub.f32 %v2070, %v2074
  %v2079 = vsub.f32 %v2071, %v2077
  %v2080 = vmul.f32 %v2078, 1.442695
  %v2081 = vpow.pop %v2080
  %v2082 = vmul.f32 %v2079, 1.442695
  %v2083 = vpow.pop %v2082
  %v2084 = vsel %vm95, %v2081, 0.0
  %2085 = vadd.xlane.f32.xlu0 %v2084
  %v2086 = vpop.xlane.xlu0 %2085
  %v2087 = vsel %vm95, %v2083, 0.0
  %2088 = vadd.xlane.f32.xlu0 %v2087
  %v2089 = vpop.xlane.xlu0 %2088
  %v2090 = vrcp.pop %v2086
  %v2091 = vmul.f32 %v2086, %v2090
  %v2092 = vsub.f32 1.0, %v2091
  %v2093 = vmul.f32 %v2090, %v2092
  %v2094 = vadd.f32 %v2090, %v2093
  %vm2095 = vweird.f32 %v2086
  %vm2096 = vweird.f32 %v2090
  %vm2097 = vmor %vm2095, %vm2096
  %v2098 = vsel %vm2097, %v2090, %v2094
  %v2099 = vand.u32 2147483647, %v2086
  %vm2100 = vcmp.eq.f32.partialorder %v2099, 8.507059e+37
  %v2101 = vand.u32 %v2086, 2147483648
  %v2102 = vor.u32 1.1754944e-38, %v2101
  %v2103 = vsel %vm2100, %v2102, %v2098
  %v2104 = vmul.f32 %v2081, %v2103
  %v2105 = vrcp.pop %v2089
  %v2106 = vmul.f32 %v2089, %v2105
  %v2107 = vsub.f32 1.0, %v2106
  %v2108 = vmul.f32 %v2105, %v2107
  %v2109 = vadd.f32 %v2105, %v2108
  %vm2110 = vweird.f32 %v2089
  %vm2111 = vweird.f32 %v2105
  %vm2112 = vmor %vm2110, %vm2111
  %v2113 = vsel %vm2112, %v2105, %v2109
  %v2114 = vand.u32 2147483647, %v2089
  %vm2115 = vcmp.eq.f32.partialorder %v2114, 8.507059e+37
  %v2116 = vand.u32 %v2089, 2147483648
  %v2117 = vor.u32 1.1754944e-38, %v2116
  %v2118 = vsel %vm2115, %v2117, %v2113
  %v2119 = vmul.f32 %v2083, %v2118
  %2120 = vrot.lane.b32.xlu0 %v2015, 64
  %v2121 = vpop.permute.xlu0 %2120
  %2122 = vrot.lane.b32.xlu0 %v2018, 64
  %v2123 = vpop.permute.xlu0 %2122
  %v2127 = vsel %vm95, %v2104, 0
  %v2130 = vsel %vm95, %v2119, 0
  %2132 = vmatpush.msra.mxu0 0.0
  %2133 = vmatpush.msra.mxu0 0.0
  %2134 = vmatpush.msra.mxu0 0.0
  %2135 = vmatpush.msra.mxu0 0.0
  %2136 = vmatpush.msra.mxu0 0.0
  %2137 = vmatpush.msra.mxu0 0.0
  %2138 = vmatpush.msra.mxu0 0.0
  %2139 = vmatpush.msra.mxu0 0.0
  %2140 = vmatpush.msra.mxu0 0.0
  %2141 = vmatpush.msra.mxu0 0.0
  %2142 = vmatpush.msra.mxu0 0.0
  %2143 = vmatpush.msra.mxu0 0.0
  %2144 = vmatpush.msra.mxu0 0.0
  %2145 = vmatpush.msra.mxu0 0.0
  %2146 = vmatpush.msra.mxu0 %v2123
  %2147 = vmatpush.msra.mxu0 %v2121
  %2148 = vmatmul.f32.gmra.mxu0 %v2127
  %v2149 = vpop.f32.mrf.mxu0
  %v2150 = vadd.f32 0.0, %v2149
  %2151 = vmatmul.f32.gmra.mxu0 %v2130
  %v2152 = vpop.f32.mrf.mxu0
  %v2153 = vadd.f32 0.0, %v2152
  %2154 = vdwg.mxu0
  %2155 = vrot.lane.b32.xlu0 %v2015, 120
  %v2156 = vpop.permute.xlu0 %2155
  %2157 = vrot.lane.b32.xlu0 %v2018, 120
  %v2158 = vpop.permute.xlu0 %2157
  %2159 = vrot.lane.b32.xlu0 %v2015, 88
  %v2160 = vpop.permute.xlu0 %2159
  %2161 = vrot.lane.b32.xlu0 %v2018, 88
  %v2162 = vpop.permute.xlu0 %2161
  %v2163 = vsel %vm376, %v2156, 0
  %v2165 = vsel %vm376, %v2158, 0
  %v2167 = vsel %vm376, %v2160, 0
  %v2169 = vsel %vm376, %v2162, 0
  %2171 = vmatpush.xpose.msra.mxu0 0.0
  %2172 = vmatpush.xpose.msra.mxu0 0.0
  %2173 = vmatpush.xpose.msra.mxu0 0.0
  %2174 = vmatpush.xpose.msra.mxu0 0.0
  %2175 = vmatpush.xpose.msra.mxu0 0.0
  %2176 = vmatpush.xpose.msra.mxu0 0.0
  %2177 = vmatpush.xpose.msra.mxu0 0.0
  %2178 = vmatpush.xpose.msra.mxu0 0.0
  %2179 = vmatpush.xpose.msra.mxu0 0.0
  %2180 = vmatpush.xpose.msra.mxu0 0.0
  %2181 = vmatpush.xpose.msra.mxu0 0.0
  %2182 = vmatpush.xpose.msra.mxu0 0.0
  %2183 = vmatpush.xpose.msra.mxu0 0.0
  %2184 = vmatpush.xpose.msra.mxu0 0.0
  %2185 = vmatpush.xpose.msra.mxu0 %v2169
  %2186 = vmatpush.xpose.msra.mxu0 %v2167
  %2187 = vmatmul.f32.gmra.mxu0 %v2163
  %v2188 = vpop.f32.mrf.mxu0
  %v2189 = vadd.f32 0.0, %v2188
  %2190 = vmatmul.f32.gmra.mxu0 %v2165
  %v2191 = vpop.f32.mrf.mxu0
  %v2192 = vadd.f32 0.0, %v2191
  %2193 = vdwg.mxu0
  %v2194 = vmul.f32 %v2189, 0.35355338
  %v2195 = vmul.f32 %v2192, 0.35355338
  %v2196 = vadd.f32 %v2194, %v197
  %v2197 = vadd.f32 %v2195, %v198
  %v2198 = vsel %vm95, %v2196, -inf
  %2199 = vmax.xlane.f32.xlu0 %v2198
  %v2200 = vpop.xlane.xlu0 %2199
  %v2201 = vsel %vm95, %v2197, -inf
  %2202 = vmax.xlane.f32.xlu0 %v2201
  %v2203 = vpop.xlane.xlu0 %2202
  %v2204 = vsub.f32 %v2196, %v2200
  %v2205 = vsub.f32 %v2197, %v2203
  %v2206 = vmul.f32 %v2204, 1.442695
  %v2207 = vpow.pop %v2206
  %v2208 = vmul.f32 %v2205, 1.442695
  %v2209 = vpow.pop %v2208
  %v2210 = vsel %vm95, %v2207, 0.0
  %2211 = vadd.xlane.f32.xlu0 %v2210
  %v2212 = vpop.xlane.xlu0 %2211
  %v2213 = vsel %vm95, %v2209, 0.0
  %2214 = vadd.xlane.f32.xlu0 %v2213
  %v2215 = vpop.xlane.xlu0 %2214
  %v2216 = vrcp.pop %v2212
  %v2217 = vmul.f32 %v2212, %v2216
  %v2218 = vsub.f32 1.0, %v2217
  %v2219 = vmul.f32 %v2216, %v2218
  %v2220 = vadd.f32 %v2216, %v2219
  %vm2221 = vweird.f32 %v2212
  %vm2222 = vweird.f32 %v2216
  %vm2223 = vmor %vm2221, %vm2222
  %v2224 = vsel %vm2223, %v2216, %v2220
  %v2225 = vand.u32 2147483647, %v2212
  %vm2226 = vcmp.eq.f32.partialorder %v2225, 8.507059e+37
  %v2227 = vand.u32 %v2212, 2147483648
  %v2228 = vor.u32 1.1754944e-38, %v2227
  %v2229 = vsel %vm2226, %v2228, %v2224
  %v2230 = vmul.f32 %v2207, %v2229
  %v2231 = vrcp.pop %v2215
  %v2232 = vmul.f32 %v2215, %v2231
  %v2233 = vsub.f32 1.0, %v2232
  %v2234 = vmul.f32 %v2231, %v2233
  %v2235 = vadd.f32 %v2231, %v2234
  %vm2236 = vweird.f32 %v2215
  %vm2237 = vweird.f32 %v2231
  %vm2238 = vmor %vm2236, %vm2237
  %v2239 = vsel %vm2238, %v2231, %v2235
  %v2240 = vand.u32 2147483647, %v2215
  %vm2241 = vcmp.eq.f32.partialorder %v2240, 8.507059e+37
  %v2242 = vand.u32 %v2215, 2147483648
  %v2243 = vor.u32 1.1754944e-38, %v2242
  %v2244 = vsel %vm2241, %v2243, %v2239
  %v2245 = vmul.f32 %v2209, %v2244
  %2246 = vrot.lane.b32.xlu0 %v2015, 56
  %v2247 = vpop.permute.xlu0 %2246
  %2248 = vrot.lane.b32.xlu0 %v2018, 56
  %v2249 = vpop.permute.xlu0 %2248
  %v2253 = vsel %vm95, %v2230, 0
  %v2256 = vsel %vm95, %v2245, 0
  %2258 = vmatpush.msra.mxu0 0.0
  %2259 = vmatpush.msra.mxu0 0.0
  %2260 = vmatpush.msra.mxu0 0.0
  %2261 = vmatpush.msra.mxu0 0.0
  %2262 = vmatpush.msra.mxu0 0.0
  %2263 = vmatpush.msra.mxu0 0.0
  %2264 = vmatpush.msra.mxu0 0.0
  %2265 = vmatpush.msra.mxu0 0.0
  %2266 = vmatpush.msra.mxu0 0.0
  %2267 = vmatpush.msra.mxu0 0.0
  %2268 = vmatpush.msra.mxu0 0.0
  %2269 = vmatpush.msra.mxu0 0.0
  %2270 = vmatpush.msra.mxu0 0.0
  %2271 = vmatpush.msra.mxu0 0.0
  %2272 = vmatpush.msra.mxu0 %v2249
  %2273 = vmatpush.msra.mxu0 %v2247
  %2274 = vmatmul.f32.gmra.mxu0 %v2253
  %v2275 = vpop.f32.mrf.mxu0
  %v2276 = vadd.f32 0.0, %v2275
  %2277 = vmatmul.f32.gmra.mxu0 %v2256
  %v2278 = vpop.f32.mrf.mxu0
  %v2279 = vadd.f32 0.0, %v2278
  %2280 = vdwg.mxu0
  %v2282 = vsel %vm376, %v2276, 0
  %v2285 = vsel %vm376, %v2279, 0
  %2287 = vmatpush.msra.mxu0 0.0
  %2288 = vmatpush.msra.mxu0 0.0
  %2289 = vmatpush.msra.mxu0 0.0
  %2290 = vmatpush.msra.mxu0 0.0
  %2291 = vmatpush.msra.mxu0 0.0
  %2292 = vmatpush.msra.mxu0 0.0
  %2293 = vmatpush.msra.mxu0 0.0
  %2294 = vmatpush.msra.mxu0 0.0
  %2295 = vmatpush.msra.mxu0 0.0
  %2296 = vmatpush.msra.mxu0 0.0
  %2297 = vmatpush.msra.mxu0 0.0
  %2298 = vmatpush.msra.mxu0 0.0
  %2299 = vmatpush.msra.mxu0 0.0
  %2300 = vmatpush.msra.mxu0 0.0
  %2301 = vmatpush.msra.mxu0 0.0
  %2302 = vmatpush.msra.mxu0 %v2028
  %2303 = vmatmul.f32.gmra.mxu0 %v2282
  %v2304 = vpop.f32.mrf.mxu0
  %v2305 = vadd.f32 0.0, %v2304
  %2306 = vmatmul.f32.gmra.mxu0 %v2285
  %v2307 = vpop.f32.mrf.mxu0
  %v2308 = vadd.f32 0.0, %v2307
  %2309 = vdwg.mxu0
  %v2311 = vsel %vm376, %v2150, 0
  %v2314 = vsel %vm376, %v2153, 0
  %2316 = vmatpush.msra.mxu0 0.0
  %2317 = vmatpush.msra.mxu0 0.0
  %2318 = vmatpush.msra.mxu0 0.0
  %2319 = vmatpush.msra.mxu0 0.0
  %2320 = vmatpush.msra.mxu0 0.0
  %2321 = vmatpush.msra.mxu0 0.0
  %2322 = vmatpush.msra.mxu0 0.0
  %2323 = vmatpush.msra.mxu0 0.0
  %2324 = vmatpush.msra.mxu0 0.0
  %2325 = vmatpush.msra.mxu0 0.0
  %2326 = vmatpush.msra.mxu0 0.0
  %2327 = vmatpush.msra.mxu0 0.0
  %2328 = vmatpush.msra.mxu0 0.0
  %2329 = vmatpush.msra.mxu0 0.0
  %2330 = vmatpush.msra.mxu0 0.0
  %2331 = vmatpush.msra.mxu0 %v2027
  %2332 = vmatmul.f32.gmra.mxu0 %v2311
  %v2333 = vpop.f32.mrf.mxu0
  %v2334 = vadd.f32 %v2305, %v2333
  %2335 = vmatmul.f32.gmra.mxu0 %v2314
  %v2336 = vpop.f32.mrf.mxu0
  %v2337 = vadd.f32 %v2308, %v2336
  %2338 = vdwg.mxu0
  %2339 = vrot.lane.b32.xlu0 %v2015, 112
  %v2340 = vpop.permute.xlu0 %2339
  %2341 = vrot.lane.b32.xlu0 %v2018, 112
  %v2342 = vpop.permute.xlu0 %2341
  %2343 = vrot.lane.b32.xlu0 %v2015, 80
  %v2344 = vpop.permute.xlu0 %2343
  %2345 = vrot.lane.b32.xlu0 %v2018, 80
  %v2346 = vpop.permute.xlu0 %2345
  %v2347 = vsel %vm376, %v2340, 0
  %v2349 = vsel %vm376, %v2342, 0
  %v2351 = vsel %vm376, %v2344, 0
  %v2353 = vsel %vm376, %v2346, 0
  %2355 = vmatpush.xpose.msra.mxu0 0.0
  %2356 = vmatpush.xpose.msra.mxu0 0.0
  %2357 = vmatpush.xpose.msra.mxu0 0.0
  %2358 = vmatpush.xpose.msra.mxu0 0.0
  %2359 = vmatpush.xpose.msra.mxu0 0.0
  %2360 = vmatpush.xpose.msra.mxu0 0.0
  %2361 = vmatpush.xpose.msra.mxu0 0.0
  %2362 = vmatpush.xpose.msra.mxu0 0.0
  %2363 = vmatpush.xpose.msra.mxu0 0.0
  %2364 = vmatpush.xpose.msra.mxu0 0.0
  %2365 = vmatpush.xpose.msra.mxu0 0.0
  %2366 = vmatpush.xpose.msra.mxu0 0.0
  %2367 = vmatpush.xpose.msra.mxu0 0.0
  %2368 = vmatpush.xpose.msra.mxu0 0.0
  %2369 = vmatpush.xpose.msra.mxu0 %v2353
  %2370 = vmatpush.xpose.msra.mxu0 %v2351
  %2371 = vmatmul.f32.gmra.mxu0 %v2347
  %v2372 = vpop.f32.mrf.mxu0
  %v2373 = vadd.f32 0.0, %v2372
  %2374 = vmatmul.f32.gmra.mxu0 %v2349
  %v2375 = vpop.f32.mrf.mxu0
  %v2376 = vadd.f32 0.0, %v2375
  %2377 = vdwg.mxu0
  %v2378 = vmul.f32 %v2373, 0.35355338
  %v2379 = vmul.f32 %v2376, 0.35355338
  %v2380 = vadd.f32 %v2378, %v197
  %v2381 = vadd.f32 %v2379, %v198
  %v2382 = vsel %vm95, %v2380, -inf
  %2383 = vmax.xlane.f32.xlu0 %v2382
  %v2384 = vpop.xlane.xlu0 %2383
  %v2385 = vsel %vm95, %v2381, -inf
  %2386 = vmax.xlane.f32.xlu0 %v2385
  %v2387 = vpop.xlane.xlu0 %2386
  %v2388 = vsub.f32 %v2380, %v2384
  %v2389 = vsub.f32 %v2381, %v2387
  %v2390 = vmul.f32 %v2388, 1.442695
  %v2391 = vpow.pop %v2390
  %v2392 = vmul.f32 %v2389, 1.442695
  %v2393 = vpow.pop %v2392
  %v2394 = vsel %vm95, %v2391, 0.0
  %2395 = vadd.xlane.f32.xlu0 %v2394
  %v2396 = vpop.xlane.xlu0 %2395
  %v2397 = vsel %vm95, %v2393, 0.0
  %2398 = vadd.xlane.f32.xlu0 %v2397
  %v2399 = vpop.xlane.xlu0 %2398
  %v2400 = vrcp.pop %v2396
  %v2401 = vmul.f32 %v2396, %v2400
  %v2402 = vsub.f32 1.0, %v2401
  %v2403 = vmul.f32 %v2400, %v2402
  %v2404 = vadd.f32 %v2400, %v2403
  %vm2405 = vweird.f32 %v2396
  %vm2406 = vweird.f32 %v2400
  %vm2407 = vmor %vm2405, %vm2406
  %v2408 = vsel %vm2407, %v2400, %v2404
  %v2409 = vand.u32 2147483647, %v2396
  %vm2410 = vcmp.eq.f32.partialorder %v2409, 8.507059e+37
  %v2411 = vand.u32 %v2396, 2147483648
  %v2412 = vor.u32 1.1754944e-38, %v2411
  %v2413 = vsel %vm2410, %v2412, %v2408
  %v2414 = vmul.f32 %v2391, %v2413
  %v2415 = vrcp.pop %v2399
  %v2416 = vmul.f32 %v2399, %v2415
  %v2417 = vsub.f32 1.0, %v2416
  %v2418 = vmul.f32 %v2415, %v2417
  %v2419 = vadd.f32 %v2415, %v2418
  %vm2420 = vweird.f32 %v2399
  %vm2421 = vweird.f32 %v2415
  %vm2422 = vmor %vm2420, %vm2421
  %v2423 = vsel %vm2422, %v2415, %v2419
  %v2424 = vand.u32 2147483647, %v2399
  %vm2425 = vcmp.eq.f32.partialorder %v2424, 8.507059e+37
  %v2426 = vand.u32 %v2399, 2147483648
  %v2427 = vor.u32 1.1754944e-38, %v2426
  %v2428 = vsel %vm2425, %v2427, %v2423
  %v2429 = vmul.f32 %v2393, %v2428
  %2430 = vrot.lane.b32.xlu0 %v2015, 48
  %v2431 = vpop.permute.xlu0 %2430
  %2432 = vrot.lane.b32.xlu0 %v2018, 48
  %v2433 = vpop.permute.xlu0 %2432
  %v2437 = vsel %vm95, %v2414, 0
  %v2440 = vsel %vm95, %v2429, 0
  %2442 = vmatpush.msra.mxu0 0.0
  %2443 = vmatpush.msra.mxu0 0.0
  %2444 = vmatpush.msra.mxu0 0.0
  %2445 = vmatpush.msra.mxu0 0.0
  %2446 = vmatpush.msra.mxu0 0.0
  %2447 = vmatpush.msra.mxu0 0.0
  %2448 = vmatpush.msra.mxu0 0.0
  %2449 = vmatpush.msra.mxu0 0.0
  %2450 = vmatpush.msra.mxu0 0.0
  %2451 = vmatpush.msra.mxu0 0.0
  %2452 = vmatpush.msra.mxu0 0.0
  %2453 = vmatpush.msra.mxu0 0.0
  %2454 = vmatpush.msra.mxu0 0.0
  %2455 = vmatpush.msra.mxu0 0.0
  %2456 = vmatpush.msra.mxu0 %v2433
  %2457 = vmatpush.msra.mxu0 %v2431
  %2458 = vmatmul.f32.gmra.mxu0 %v2437
  %v2459 = vpop.f32.mrf.mxu0
  %v2460 = vadd.f32 0.0, %v2459
  %2461 = vmatmul.f32.gmra.mxu0 %v2440
  %v2462 = vpop.f32.mrf.mxu0
  %v2463 = vadd.f32 0.0, %v2462
  %2464 = vdwg.mxu0
  %v2466 = vsel %vm376, %v2460, 0
  %v2469 = vsel %vm376, %v2463, 0
  %2471 = vmatpush.msra.mxu0 0.0
  %2472 = vmatpush.msra.mxu0 0.0
  %2473 = vmatpush.msra.mxu0 0.0
  %2474 = vmatpush.msra.mxu0 0.0
  %2475 = vmatpush.msra.mxu0 0.0
  %2476 = vmatpush.msra.mxu0 0.0
  %2477 = vmatpush.msra.mxu0 0.0
  %2478 = vmatpush.msra.mxu0 0.0
  %2479 = vmatpush.msra.mxu0 0.0
  %2480 = vmatpush.msra.mxu0 0.0
  %2481 = vmatpush.msra.mxu0 0.0
  %2482 = vmatpush.msra.mxu0 0.0
  %2483 = vmatpush.msra.mxu0 0.0
  %2484 = vmatpush.msra.mxu0 0.0
  %2485 = vmatpush.msra.mxu0 0.0
  %2486 = vmatpush.msra.mxu0 %v2029
  %2487 = vmatmul.f32.gmra.mxu0 %v2466
  %v2488 = vpop.f32.mrf.mxu0
  %v2489 = vadd.f32 0.0, %v2488
  %2490 = vmatmul.f32.gmra.mxu0 %v2469
  %v2491 = vpop.f32.mrf.mxu0
  %v2492 = vadd.f32 0.0, %v2491
  %2493 = vdwg.mxu0
  %v2494 = vadd.f32 %v2334, %v2489
  %v2495 = vadd.f32 %v2337, %v2492
  %2496 = vrot.lane.b32.xlu0 %v2015, 104
  %v2497 = vpop.permute.xlu0 %2496
  %2498 = vrot.lane.b32.xlu0 %v2018, 104
  %v2499 = vpop.permute.xlu0 %2498
  %2500 = vrot.lane.b32.xlu0 %v2015, 72
  %v2501 = vpop.permute.xlu0 %2500
  %2502 = vrot.lane.b32.xlu0 %v2018, 72
  %v2503 = vpop.permute.xlu0 %2502
  %v2504 = vsel %vm376, %v2497, 0
  %v2506 = vsel %vm376, %v2499, 0
  %v2508 = vsel %vm376, %v2501, 0
  %v2510 = vsel %vm376, %v2503, 0
  %2512 = vmatpush.xpose.msra.mxu0 0.0
  %2513 = vmatpush.xpose.msra.mxu0 0.0
  %2514 = vmatpush.xpose.msra.mxu0 0.0
  %2515 = vmatpush.xpose.msra.mxu0 0.0
  %2516 = vmatpush.xpose.msra.mxu0 0.0
  %2517 = vmatpush.xpose.msra.mxu0 0.0
  %2518 = vmatpush.xpose.msra.mxu0 0.0
  %2519 = vmatpush.xpose.msra.mxu0 0.0
  %2520 = vmatpush.xpose.msra.mxu0 0.0
  %2521 = vmatpush.xpose.msra.mxu0 0.0
  %2522 = vmatpush.xpose.msra.mxu0 0.0
  %2523 = vmatpush.xpose.msra.mxu0 0.0
  %2524 = vmatpush.xpose.msra.mxu0 0.0
  %2525 = vmatpush.xpose.msra.mxu0 0.0
  %2526 = vmatpush.xpose.msra.mxu0 %v2510
  %2527 = vmatpush.xpose.msra.mxu0 %v2508
  %2528 = vmatmul.f32.gmra.mxu0 %v2504
  %v2529 = vpop.f32.mrf.mxu0
  %v2530 = vadd.f32 0.0, %v2529
  %2531 = vmatmul.f32.gmra.mxu0 %v2506
  %v2532 = vpop.f32.mrf.mxu0
  %v2533 = vadd.f32 0.0, %v2532
  %2534 = vdwg.mxu0
  %v2535 = vmul.f32 %v2530, 0.35355338
  %v2536 = vmul.f32 %v2533, 0.35355338
  %v2537 = vadd.f32 %v2535, %v197
  %v2538 = vadd.f32 %v2536, %v198
  %v2539 = vsel %vm95, %v2537, -inf
  %2540 = vmax.xlane.f32.xlu0 %v2539
  %v2541 = vpop.xlane.xlu0 %2540
  %v2542 = vsel %vm95, %v2538, -inf
  %2543 = vmax.xlane.f32.xlu0 %v2542
  %v2544 = vpop.xlane.xlu0 %2543
  %v2545 = vsub.f32 %v2537, %v2541
  %v2546 = vsub.f32 %v2538, %v2544
  %v2547 = vmul.f32 %v2545, 1.442695
  %v2548 = vpow.pop %v2547
  %v2549 = vmul.f32 %v2546, 1.442695
  %v2550 = vpow.pop %v2549
  %v2551 = vsel %vm95, %v2548, 0.0
  %2552 = vadd.xlane.f32.xlu0 %v2551
  %v2553 = vpop.xlane.xlu0 %2552
  %v2554 = vsel %vm95, %v2550, 0.0
  %2555 = vadd.xlane.f32.xlu0 %v2554
  %v2556 = vpop.xlane.xlu0 %2555
  %v2557 = vrcp.pop %v2553
  %v2558 = vmul.f32 %v2553, %v2557
  %v2559 = vsub.f32 1.0, %v2558
  %v2560 = vmul.f32 %v2557, %v2559
  %v2561 = vadd.f32 %v2557, %v2560
  %vm2562 = vweird.f32 %v2553
  %vm2563 = vweird.f32 %v2557
  %vm2564 = vmor %vm2562, %vm2563
  %v2565 = vsel %vm2564, %v2557, %v2561
  %v2566 = vand.u32 2147483647, %v2553
  %vm2567 = vcmp.eq.f32.partialorder %v2566, 8.507059e+37
  %v2568 = vand.u32 %v2553, 2147483648
  %v2569 = vor.u32 1.1754944e-38, %v2568
  %v2570 = vsel %vm2567, %v2569, %v2565
  %v2571 = vmul.f32 %v2548, %v2570
  %v2572 = vrcp.pop %v2556
  %v2573 = vmul.f32 %v2556, %v2572
  %v2574 = vsub.f32 1.0, %v2573
  %v2575 = vmul.f32 %v2572, %v2574
  %v2576 = vadd.f32 %v2572, %v2575
  %vm2577 = vweird.f32 %v2556
  %vm2578 = vweird.f32 %v2572
  %vm2579 = vmor %vm2577, %vm2578
  %v2580 = vsel %vm2579, %v2572, %v2576
  %v2581 = vand.u32 2147483647, %v2556
  %vm2582 = vcmp.eq.f32.partialorder %v2581, 8.507059e+37
  %v2583 = vand.u32 %v2556, 2147483648
  %v2584 = vor.u32 1.1754944e-38, %v2583
  %v2585 = vsel %vm2582, %v2584, %v2580
  %v2586 = vmul.f32 %v2550, %v2585
  %2587 = vrot.lane.b32.xlu0 %v2015, 40
  %v2588 = vpop.permute.xlu0 %2587
  %2589 = vrot.lane.b32.xlu0 %v2018, 40
  %v2590 = vpop.permute.xlu0 %2589
  %v2594 = vsel %vm95, %v2571, 0
  %v2597 = vsel %vm95, %v2586, 0
  %2599 = vmatpush.msra.mxu0 0.0
  %2600 = vmatpush.msra.mxu0 0.0
  %2601 = vmatpush.msra.mxu0 0.0
  %2602 = vmatpush.msra.mxu0 0.0
  %2603 = vmatpush.msra.mxu0 0.0
  %2604 = vmatpush.msra.mxu0 0.0
  %2605 = vmatpush.msra.mxu0 0.0
  %2606 = vmatpush.msra.mxu0 0.0
  %2607 = vmatpush.msra.mxu0 0.0
  %2608 = vmatpush.msra.mxu0 0.0
  %2609 = vmatpush.msra.mxu0 0.0
  %2610 = vmatpush.msra.mxu0 0.0
  %2611 = vmatpush.msra.mxu0 0.0
  %2612 = vmatpush.msra.mxu0 0.0
  %2613 = vmatpush.msra.mxu0 %v2590
  %2614 = vmatpush.msra.mxu0 %v2588
  %2615 = vmatmul.f32.gmra.mxu0 %v2594
  %v2616 = vpop.f32.mrf.mxu0
  %v2617 = vadd.f32 0.0, %v2616
  %2618 = vmatmul.f32.gmra.mxu0 %v2597
  %v2619 = vpop.f32.mrf.mxu0
  %v2620 = vadd.f32 0.0, %v2619
  %2621 = vdwg.mxu0
  %v2623 = vsel %vm376, %v2617, 0
  %v2626 = vsel %vm376, %v2620, 0
  %2628 = vmatpush.msra.mxu0 0.0
  %2629 = vmatpush.msra.mxu0 0.0
  %2630 = vmatpush.msra.mxu0 0.0
  %2631 = vmatpush.msra.mxu0 0.0
  %2632 = vmatpush.msra.mxu0 0.0
  %2633 = vmatpush.msra.mxu0 0.0
  %2634 = vmatpush.msra.mxu0 0.0
  %2635 = vmatpush.msra.mxu0 0.0
  %2636 = vmatpush.msra.mxu0 0.0
  %2637 = vmatpush.msra.mxu0 0.0
  %2638 = vmatpush.msra.mxu0 0.0
  %2639 = vmatpush.msra.mxu0 0.0
  %2640 = vmatpush.msra.mxu0 0.0
  %2641 = vmatpush.msra.mxu0 0.0
  %2642 = vmatpush.msra.mxu0 0.0
  %2643 = vmatpush.msra.mxu0 %v2030
  %2644 = vmatmul.f32.gmra.mxu0 %v2623
  %v2645 = vpop.f32.mrf.mxu0
  %v2646 = vadd.f32 0.0, %v2645
  %2647 = vmatmul.f32.gmra.mxu0 %v2626
  %v2648 = vpop.f32.mrf.mxu0
  %v2649 = vadd.f32 0.0, %v2648
  %2650 = vdwg.mxu0
  %v2651 = vadd.f32 %v2494, %v2646
  %v2652 = vadd.f32 %v2495, %v2649
  %2655 = vrot.lane.b32.xlu0 %v2021, 96
  %v2656 = vpop.permute.xlu0 %2655
  %2657 = vrot.lane.b32.xlu0 %v2024, 96
  %v2658 = vpop.permute.xlu0 %2657
  %v2659 = vsel %vm376, %v2021, 0
  %v2661 = vsel %vm376, %v2024, 0
  %v2663 = vsel %vm376, %v2656, 0
  %v2665 = vsel %vm376, %v2658, 0
  %2667 = vmatpush.xpose.msra.mxu0 0.0
  %2668 = vmatpush.xpose.msra.mxu0 0.0
  %2669 = vmatpush.xpose.msra.mxu0 0.0
  %2670 = vmatpush.xpose.msra.mxu0 0.0
  %2671 = vmatpush.xpose.msra.mxu0 0.0
  %2672 = vmatpush.xpose.msra.mxu0 0.0
  %2673 = vmatpush.xpose.msra.mxu0 0.0
  %2674 = vmatpush.xpose.msra.mxu0 0.0
  %2675 = vmatpush.xpose.msra.mxu0 0.0
  %2676 = vmatpush.xpose.msra.mxu0 0.0
  %2677 = vmatpush.xpose.msra.mxu0 0.0
  %2678 = vmatpush.xpose.msra.mxu0 0.0
  %2679 = vmatpush.xpose.msra.mxu0 0.0
  %2680 = vmatpush.xpose.msra.mxu0 0.0
  %2681 = vmatpush.xpose.msra.mxu0 %v2665
  %2682 = vmatpush.xpose.msra.mxu0 %v2663
  %2683 = vmatmul.f32.gmra.mxu0 %v2659
  %v2684 = vpop.f32.mrf.mxu0
  %v2685 = vadd.f32 0.0, %v2684
  %2686 = vmatmul.f32.gmra.mxu0 %v2661
  %v2687 = vpop.f32.mrf.mxu0
  %v2688 = vadd.f32 0.0, %v2687
  %2689 = vdwg.mxu0
  %v2690 = vmul.f32 %v2685, 0.35355338
  %v2691 = vmul.f32 %v2688, 0.35355338
  %v2692 = vadd.f32 %v2690, %v203
  %v2693 = vadd.f32 %v2691, %v204
  %v2694 = vsel %vm95, %v2692, -inf
  %2695 = vmax.xlane.f32.xlu0 %v2694
  %v2696 = vpop.xlane.xlu0 %2695
  %v2697 = vsel %vm95, %v2693, -inf
  %2698 = vmax.xlane.f32.xlu0 %v2697
  %v2699 = vpop.xlane.xlu0 %2698
  %v2700 = vsub.f32 %v2692, %v2696
  %v2701 = vsub.f32 %v2693, %v2699
  %v2702 = vmul.f32 %v2700, 1.442695
  %v2703 = vpow.pop %v2702
  %v2704 = vmul.f32 %v2701, 1.442695
  %v2705 = vpow.pop %v2704
  %v2706 = vsel %vm95, %v2703, 0.0
  %2707 = vadd.xlane.f32.xlu0 %v2706
  %v2708 = vpop.xlane.xlu0 %2707
  %v2709 = vsel %vm95, %v2705, 0.0
  %2710 = vadd.xlane.f32.xlu0 %v2709
  %v2711 = vpop.xlane.xlu0 %2710
  %v2712 = vrcp.pop %v2708
  %v2713 = vmul.f32 %v2708, %v2712
  %v2714 = vsub.f32 1.0, %v2713
  %v2715 = vmul.f32 %v2712, %v2714
  %v2716 = vadd.f32 %v2712, %v2715
  %vm2717 = vweird.f32 %v2708
  %vm2718 = vweird.f32 %v2712
  %vm2719 = vmor %vm2717, %vm2718
  %v2720 = vsel %vm2719, %v2712, %v2716
  %v2721 = vand.u32 2147483647, %v2708
  %vm2722 = vcmp.eq.f32.partialorder %v2721, 8.507059e+37
  %v2723 = vand.u32 %v2708, 2147483648
  %v2724 = vor.u32 1.1754944e-38, %v2723
  %v2725 = vsel %vm2722, %v2724, %v2720
  %v2726 = vmul.f32 %v2703, %v2725
  %v2727 = vrcp.pop %v2711
  %v2728 = vmul.f32 %v2711, %v2727
  %v2729 = vsub.f32 1.0, %v2728
  %v2730 = vmul.f32 %v2727, %v2729
  %v2731 = vadd.f32 %v2727, %v2730
  %vm2732 = vweird.f32 %v2711
  %vm2733 = vweird.f32 %v2727
  %vm2734 = vmor %vm2732, %vm2733
  %v2735 = vsel %vm2734, %v2727, %v2731
  %v2736 = vand.u32 2147483647, %v2711
  %vm2737 = vcmp.eq.f32.partialorder %v2736, 8.507059e+37
  %v2738 = vand.u32 %v2711, 2147483648
  %v2739 = vor.u32 1.1754944e-38, %v2738
  %v2740 = vsel %vm2737, %v2739, %v2735
  %v2741 = vmul.f32 %v2705, %v2740
  %2742 = vrot.lane.b32.xlu0 %v2021, 64
  %v2743 = vpop.permute.xlu0 %2742
  %2744 = vrot.lane.b32.xlu0 %v2024, 64
  %v2745 = vpop.permute.xlu0 %2744
  %v2749 = vsel %vm95, %v2726, 0
  %v2752 = vsel %vm95, %v2741, 0
  %2754 = vmatpush.msra.mxu0 0.0
  %2755 = vmatpush.msra.mxu0 0.0
  %2756 = vmatpush.msra.mxu0 0.0
  %2757 = vmatpush.msra.mxu0 0.0
  %2758 = vmatpush.msra.mxu0 0.0
  %2759 = vmatpush.msra.mxu0 0.0
  %2760 = vmatpush.msra.mxu0 0.0
  %2761 = vmatpush.msra.mxu0 0.0
  %2762 = vmatpush.msra.mxu0 0.0
  %2763 = vmatpush.msra.mxu0 0.0
  %2764 = vmatpush.msra.mxu0 0.0
  %2765 = vmatpush.msra.mxu0 0.0
  %2766 = vmatpush.msra.mxu0 0.0
  %2767 = vmatpush.msra.mxu0 0.0
  %2768 = vmatpush.msra.mxu0 %v2745
  %2769 = vmatpush.msra.mxu0 %v2743
  %2770 = vmatmul.f32.gmra.mxu0 %v2749
  %v2771 = vpop.f32.mrf.mxu0
  %v2772 = vadd.f32 0.0, %v2771
  %2773 = vmatmul.f32.gmra.mxu0 %v2752
  %v2774 = vpop.f32.mrf.mxu0
  %v2775 = vadd.f32 0.0, %v2774
  %2776 = vdwg.mxu0
  %2777 = vrot.lane.b32.xlu0 %v2021, 120
  %v2778 = vpop.permute.xlu0 %2777
  %2779 = vrot.lane.b32.xlu0 %v2024, 120
  %v2780 = vpop.permute.xlu0 %2779
  %2781 = vrot.lane.b32.xlu0 %v2021, 88
  %v2782 = vpop.permute.xlu0 %2781
  %2783 = vrot.lane.b32.xlu0 %v2024, 88
  %v2784 = vpop.permute.xlu0 %2783
  %v2785 = vsel %vm376, %v2778, 0
  %v2787 = vsel %vm376, %v2780, 0
  %v2789 = vsel %vm376, %v2782, 0
  %v2791 = vsel %vm376, %v2784, 0
  %2793 = vmatpush.xpose.msra.mxu0 0.0
  %2794 = vmatpush.xpose.msra.mxu0 0.0
  %2795 = vmatpush.xpose.msra.mxu0 0.0
  %2796 = vmatpush.xpose.msra.mxu0 0.0
  %2797 = vmatpush.xpose.msra.mxu0 0.0
  %2798 = vmatpush.xpose.msra.mxu0 0.0
  %2799 = vmatpush.xpose.msra.mxu0 0.0
  %2800 = vmatpush.xpose.msra.mxu0 0.0
  %2801 = vmatpush.xpose.msra.mxu0 0.0
  %2802 = vmatpush.xpose.msra.mxu0 0.0
  %2803 = vmatpush.xpose.msra.mxu0 0.0
  %2804 = vmatpush.xpose.msra.mxu0 0.0
  %2805 = vmatpush.xpose.msra.mxu0 0.0
  %2806 = vmatpush.xpose.msra.mxu0 0.0
  %2807 = vmatpush.xpose.msra.mxu0 %v2791
  %2808 = vmatpush.xpose.msra.mxu0 %v2789
  %2809 = vmatmul.f32.gmra.mxu0 %v2785
  %v2810 = vpop.f32.mrf.mxu0
  %v2811 = vadd.f32 0.0, %v2810
  %2812 = vmatmul.f32.gmra.mxu0 %v2787
  %v2813 = vpop.f32.mrf.mxu0
  %v2814 = vadd.f32 0.0, %v2813
  %2815 = vdwg.mxu0
  %v2816 = vmul.f32 %v2811, 0.35355338
  %v2817 = vmul.f32 %v2814, 0.35355338
  %v2818 = vadd.f32 %v2816, %v203
  %v2819 = vadd.f32 %v2817, %v204
  %v2820 = vsel %vm95, %v2818, -inf
  %2821 = vmax.xlane.f32.xlu0 %v2820
  %v2822 = vpop.xlane.xlu0 %2821
  %v2823 = vsel %vm95, %v2819, -inf
  %2824 = vmax.xlane.f32.xlu0 %v2823
  %v2825 = vpop.xlane.xlu0 %2824
  %v2826 = vsub.f32 %v2818, %v2822
  %v2827 = vsub.f32 %v2819, %v2825
  %v2828 = vmul.f32 %v2826, 1.442695
  %v2829 = vpow.pop %v2828
  %v2830 = vmul.f32 %v2827, 1.442695
  %v2831 = vpow.pop %v2830
  %v2832 = vsel %vm95, %v2829, 0.0
  %2833 = vadd.xlane.f32.xlu0 %v2832
  %v2834 = vpop.xlane.xlu0 %2833
  %v2835 = vsel %vm95, %v2831, 0.0
  %2836 = vadd.xlane.f32.xlu0 %v2835
  %v2837 = vpop.xlane.xlu0 %2836
  %v2838 = vrcp.pop %v2834
  %v2839 = vmul.f32 %v2834, %v2838
  %v2840 = vsub.f32 1.0, %v2839
  %v2841 = vmul.f32 %v2838, %v2840
  %v2842 = vadd.f32 %v2838, %v2841
  %vm2843 = vweird.f32 %v2834
  %vm2844 = vweird.f32 %v2838
  %vm2845 = vmor %vm2843, %vm2844
  %v2846 = vsel %vm2845, %v2838, %v2842
  %v2847 = vand.u32 2147483647, %v2834
  %vm2848 = vcmp.eq.f32.partialorder %v2847, 8.507059e+37
  %v2849 = vand.u32 %v2834, 2147483648
  %v2850 = vor.u32 1.1754944e-38, %v2849
  %v2851 = vsel %vm2848, %v2850, %v2846
  %v2852 = vmul.f32 %v2829, %v2851
  %v2853 = vrcp.pop %v2837
  %v2854 = vmul.f32 %v2837, %v2853
  %v2855 = vsub.f32 1.0, %v2854
  %v2856 = vmul.f32 %v2853, %v2855
  %v2857 = vadd.f32 %v2853, %v2856
  %vm2858 = vweird.f32 %v2837
  %vm2859 = vweird.f32 %v2853
  %vm2860 = vmor %vm2858, %vm2859
  %v2861 = vsel %vm2860, %v2853, %v2857
  %v2862 = vand.u32 2147483647, %v2837
  %vm2863 = vcmp.eq.f32.partialorder %v2862, 8.507059e+37
  %v2864 = vand.u32 %v2837, 2147483648
  %v2865 = vor.u32 1.1754944e-38, %v2864
  %v2866 = vsel %vm2863, %v2865, %v2861
  %v2867 = vmul.f32 %v2831, %v2866
  %2868 = vrot.lane.b32.xlu0 %v2021, 56
  %v2869 = vpop.permute.xlu0 %2868
  %2870 = vrot.lane.b32.xlu0 %v2024, 56
  %v2871 = vpop.permute.xlu0 %2870
  %v2875 = vsel %vm95, %v2852, 0
  %v2878 = vsel %vm95, %v2867, 0
  %2880 = vmatpush.msra.mxu0 0.0
  %2881 = vmatpush.msra.mxu0 0.0
  %2882 = vmatpush.msra.mxu0 0.0
  %2883 = vmatpush.msra.mxu0 0.0
  %2884 = vmatpush.msra.mxu0 0.0
  %2885 = vmatpush.msra.mxu0 0.0
  %2886 = vmatpush.msra.mxu0 0.0
  %2887 = vmatpush.msra.mxu0 0.0
  %2888 = vmatpush.msra.mxu0 0.0
  %2889 = vmatpush.msra.mxu0 0.0
  %2890 = vmatpush.msra.mxu0 0.0
  %2891 = vmatpush.msra.mxu0 0.0
  %2892 = vmatpush.msra.mxu0 0.0
  %2893 = vmatpush.msra.mxu0 0.0
  %2894 = vmatpush.msra.mxu0 %v2871
  %2895 = vmatpush.msra.mxu0 %v2869
  %2896 = vmatmul.f32.gmra.mxu0 %v2875
  %v2897 = vpop.f32.mrf.mxu0
  %v2898 = vadd.f32 0.0, %v2897
  %2899 = vmatmul.f32.gmra.mxu0 %v2878
  %v2900 = vpop.f32.mrf.mxu0
  %v2901 = vadd.f32 0.0, %v2900
  %2902 = vdwg.mxu0
  %v2904 = vsel %vm376, %v2898, 0
  %v2907 = vsel %vm376, %v2901, 0
  %2909 = vmatpush.msra.mxu0 0.0
  %2910 = vmatpush.msra.mxu0 0.0
  %2911 = vmatpush.msra.mxu0 0.0
  %2912 = vmatpush.msra.mxu0 0.0
  %2913 = vmatpush.msra.mxu0 0.0
  %2914 = vmatpush.msra.mxu0 0.0
  %2915 = vmatpush.msra.mxu0 0.0
  %2916 = vmatpush.msra.mxu0 0.0
  %2917 = vmatpush.msra.mxu0 0.0
  %2918 = vmatpush.msra.mxu0 0.0
  %2919 = vmatpush.msra.mxu0 0.0
  %2920 = vmatpush.msra.mxu0 0.0
  %2921 = vmatpush.msra.mxu0 0.0
  %2922 = vmatpush.msra.mxu0 0.0
  %2923 = vmatpush.msra.mxu0 0.0
  %2924 = vmatpush.msra.mxu0 %v2028
  %2925 = vmatmul.f32.gmra.mxu0 %v2904
  %v2926 = vpop.f32.mrf.mxu0
  %v2927 = vadd.f32 0.0, %v2926
  %2928 = vmatmul.f32.gmra.mxu0 %v2907
  %v2929 = vpop.f32.mrf.mxu0
  %v2930 = vadd.f32 0.0, %v2929
  %2931 = vdwg.mxu0
  %v2933 = vsel %vm376, %v2772, 0
  %v2936 = vsel %vm376, %v2775, 0
  %2938 = vmatpush.msra.mxu0 0.0
  %2939 = vmatpush.msra.mxu0 0.0
  %2940 = vmatpush.msra.mxu0 0.0
  %2941 = vmatpush.msra.mxu0 0.0
  %2942 = vmatpush.msra.mxu0 0.0
  %2943 = vmatpush.msra.mxu0 0.0
  %2944 = vmatpush.msra.mxu0 0.0
  %2945 = vmatpush.msra.mxu0 0.0
  %2946 = vmatpush.msra.mxu0 0.0
  %2947 = vmatpush.msra.mxu0 0.0
  %2948 = vmatpush.msra.mxu0 0.0
  %2949 = vmatpush.msra.mxu0 0.0
  %2950 = vmatpush.msra.mxu0 0.0
  %2951 = vmatpush.msra.mxu0 0.0
  %2952 = vmatpush.msra.mxu0 0.0
  %2953 = vmatpush.msra.mxu0 %v2027
  %2954 = vmatmul.f32.gmra.mxu0 %v2933
  %v2955 = vpop.f32.mrf.mxu0
  %v2956 = vadd.f32 %v2927, %v2955
  %2957 = vmatmul.f32.gmra.mxu0 %v2936
  %v2958 = vpop.f32.mrf.mxu0
  %v2959 = vadd.f32 %v2930, %v2958
  %2960 = vdwg.mxu0
  %2961 = vrot.lane.b32.xlu0 %v2021, 112
  %v2962 = vpop.permute.xlu0 %2961
  %2963 = vrot.lane.b32.xlu0 %v2024, 112
  %v2964 = vpop.permute.xlu0 %2963
  %2965 = vrot.lane.b32.xlu0 %v2021, 80
  %v2966 = vpop.permute.xlu0 %2965
  %2967 = vrot.lane.b32.xlu0 %v2024, 80
  %v2968 = vpop.permute.xlu0 %2967
  %v2969 = vsel %vm376, %v2962, 0
  %v2971 = vsel %vm376, %v2964, 0
  %v2973 = vsel %vm376, %v2966, 0
  %v2975 = vsel %vm376, %v2968, 0
  %2977 = vmatpush.xpose.msra.mxu0 0.0
  %2978 = vmatpush.xpose.msra.mxu0 0.0
  %2979 = vmatpush.xpose.msra.mxu0 0.0
  %2980 = vmatpush.xpose.msra.mxu0 0.0
  %2981 = vmatpush.xpose.msra.mxu0 0.0
  %2982 = vmatpush.xpose.msra.mxu0 0.0
  %2983 = vmatpush.xpose.msra.mxu0 0.0
  %2984 = vmatpush.xpose.msra.mxu0 0.0
  %2985 = vmatpush.xpose.msra.mxu0 0.0
  %2986 = vmatpush.xpose.msra.mxu0 0.0
  %2987 = vmatpush.xpose.msra.mxu0 0.0
  %2988 = vmatpush.xpose.msra.mxu0 0.0
  %2989 = vmatpush.xpose.msra.mxu0 0.0
  %2990 = vmatpush.xpose.msra.mxu0 0.0
  %2991 = vmatpush.xpose.msra.mxu0 %v2975
  %2992 = vmatpush.xpose.msra.mxu0 %v2973
  %2993 = vmatmul.f32.gmra.mxu0 %v2969
  %v2994 = vpop.f32.mrf.mxu0
  %v2995 = vadd.f32 0.0, %v2994
  %2996 = vmatmul.f32.gmra.mxu0 %v2971
  %v2997 = vpop.f32.mrf.mxu0
  %v2998 = vadd.f32 0.0, %v2997
  %2999 = vdwg.mxu0
  %v3000 = vmul.f32 %v2995, 0.35355338
  %v3001 = vmul.f32 %v2998, 0.35355338
  %v3002 = vadd.f32 %v3000, %v203
  %v3003 = vadd.f32 %v3001, %v204
  %v3004 = vsel %vm95, %v3002, -inf
  %3005 = vmax.xlane.f32.xlu0 %v3004
  %v3006 = vpop.xlane.xlu0 %3005
  %v3007 = vsel %vm95, %v3003, -inf
  %3008 = vmax.xlane.f32.xlu0 %v3007
  %v3009 = vpop.xlane.xlu0 %3008
  %v3010 = vsub.f32 %v3002, %v3006
  %v3011 = vsub.f32 %v3003, %v3009
  %v3012 = vmul.f32 %v3010, 1.442695
  %v3013 = vpow.pop %v3012
  %v3014 = vmul.f32 %v3011, 1.442695
  %v3015 = vpow.pop %v3014
  %v3016 = vsel %vm95, %v3013, 0.0
  %3017 = vadd.xlane.f32.xlu0 %v3016
  %v3018 = vpop.xlane.xlu0 %3017
  %v3019 = vsel %vm95, %v3015, 0.0
  %3020 = vadd.xlane.f32.xlu0 %v3019
  %v3021 = vpop.xlane.xlu0 %3020
  %v3022 = vrcp.pop %v3018
  %v3023 = vmul.f32 %v3018, %v3022
  %v3024 = vsub.f32 1.0, %v3023
  %v3025 = vmul.f32 %v3022, %v3024
  %v3026 = vadd.f32 %v3022, %v3025
  %vm3027 = vweird.f32 %v3018
  %vm3028 = vweird.f32 %v3022
  %vm3029 = vmor %vm3027, %vm3028
  %v3030 = vsel %vm3029, %v3022, %v3026
  %v3031 = vand.u32 2147483647, %v3018
  %vm3032 = vcmp.eq.f32.partialorder %v3031, 8.507059e+37
  %v3033 = vand.u32 %v3018, 2147483648
  %v3034 = vor.u32 1.1754944e-38, %v3033
  %v3035 = vsel %vm3032, %v3034, %v3030
  %v3036 = vmul.f32 %v3013, %v3035
  %v3037 = vrcp.pop %v3021
  %v3038 = vmul.f32 %v3021, %v3037
  %v3039 = vsub.f32 1.0, %v3038
  %v3040 = vmul.f32 %v3037, %v3039
  %v3041 = vadd.f32 %v3037, %v3040
  %vm3042 = vweird.f32 %v3021
  %vm3043 = vweird.f32 %v3037
  %vm3044 = vmor %vm3042, %vm3043
  %v3045 = vsel %vm3044, %v3037, %v3041
  %v3046 = vand.u32 2147483647, %v3021
  %vm3047 = vcmp.eq.f32.partialorder %v3046, 8.507059e+37
  %v3048 = vand.u32 %v3021, 2147483648
  %v3049 = vor.u32 1.1754944e-38, %v3048
  %v3050 = vsel %vm3047, %v3049, %v3045
  %v3051 = vmul.f32 %v3015, %v3050
  %3052 = vrot.lane.b32.xlu0 %v2021, 48
  %v3053 = vpop.permute.xlu0 %3052
  %3054 = vrot.lane.b32.xlu0 %v2024, 48
  %v3055 = vpop.permute.xlu0 %3054
  %v3059 = vsel %vm95, %v3036, 0
  %v3062 = vsel %vm95, %v3051, 0
  %3064 = vmatpush.msra.mxu0 0.0
  %3065 = vmatpush.msra.mxu0 0.0
  %3066 = vmatpush.msra.mxu0 0.0
  %3067 = vmatpush.msra.mxu0 0.0
  %3068 = vmatpush.msra.mxu0 0.0
  %3069 = vmatpush.msra.mxu0 0.0
  %3070 = vmatpush.msra.mxu0 0.0
  %3071 = vmatpush.msra.mxu0 0.0
  %3072 = vmatpush.msra.mxu0 0.0
  %3073 = vmatpush.msra.mxu0 0.0
  %3074 = vmatpush.msra.mxu0 0.0
  %3075 = vmatpush.msra.mxu0 0.0
  %3076 = vmatpush.msra.mxu0 0.0
  %3077 = vmatpush.msra.mxu0 0.0
  %3078 = vmatpush.msra.mxu0 %v3055
  %3079 = vmatpush.msra.mxu0 %v3053
  %3080 = vmatmul.f32.gmra.mxu0 %v3059
  %v3081 = vpop.f32.mrf.mxu0
  %v3082 = vadd.f32 0.0, %v3081
  %3083 = vmatmul.f32.gmra.mxu0 %v3062
  %v3084 = vpop.f32.mrf.mxu0
  %v3085 = vadd.f32 0.0, %v3084
  %3086 = vdwg.mxu0
  %v3088 = vsel %vm376, %v3082, 0
  %v3091 = vsel %vm376, %v3085, 0
  %3093 = vmatpush.msra.mxu0 0.0
  %3094 = vmatpush.msra.mxu0 0.0
  %3095 = vmatpush.msra.mxu0 0.0
  %3096 = vmatpush.msra.mxu0 0.0
  %3097 = vmatpush.msra.mxu0 0.0
  %3098 = vmatpush.msra.mxu0 0.0
  %3099 = vmatpush.msra.mxu0 0.0
  %3100 = vmatpush.msra.mxu0 0.0
  %3101 = vmatpush.msra.mxu0 0.0
  %3102 = vmatpush.msra.mxu0 0.0
  %3103 = vmatpush.msra.mxu0 0.0
  %3104 = vmatpush.msra.mxu0 0.0
  %3105 = vmatpush.msra.mxu0 0.0
  %3106 = vmatpush.msra.mxu0 0.0
  %3107 = vmatpush.msra.mxu0 0.0
  %3108 = vmatpush.msra.mxu0 %v2029
  %3109 = vmatmul.f32.gmra.mxu0 %v3088
  %v3110 = vpop.f32.mrf.mxu0
  %v3111 = vadd.f32 0.0, %v3110
  %3112 = vmatmul.f32.gmra.mxu0 %v3091
  %v3113 = vpop.f32.mrf.mxu0
  %v3114 = vadd.f32 0.0, %v3113
  %3115 = vdwg.mxu0
  %v3116 = vadd.f32 %v2956, %v3111
  %v3117 = vadd.f32 %v2959, %v3114
  %3118 = vrot.lane.b32.xlu0 %v2021, 104
  %v3119 = vpop.permute.xlu0 %3118
  %3120 = vrot.lane.b32.xlu0 %v2024, 104
  %v3121 = vpop.permute.xlu0 %3120
  %3122 = vrot.lane.b32.xlu0 %v2021, 72
  %v3123 = vpop.permute.xlu0 %3122
  %3124 = vrot.lane.b32.xlu0 %v2024, 72
  %v3125 = vpop.permute.xlu0 %3124
  %v3126 = vsel %vm376, %v3119, 0
  %v3128 = vsel %vm376, %v3121, 0
  %v3130 = vsel %vm376, %v3123, 0
  %v3132 = vsel %vm376, %v3125, 0
  %3134 = vmatpush.xpose.msra.mxu0 0.0
  %3135 = vmatpush.xpose.msra.mxu0 0.0
  %3136 = vmatpush.xpose.msra.mxu0 0.0
  %3137 = vmatpush.xpose.msra.mxu0 0.0
  %3138 = vmatpush.xpose.msra.mxu0 0.0
  %3139 = vmatpush.xpose.msra.mxu0 0.0
  %3140 = vmatpush.xpose.msra.mxu0 0.0
  %3141 = vmatpush.xpose.msra.mxu0 0.0
  %3142 = vmatpush.xpose.msra.mxu0 0.0
  %3143 = vmatpush.xpose.msra.mxu0 0.0
  %3144 = vmatpush.xpose.msra.mxu0 0.0
  %3145 = vmatpush.xpose.msra.mxu0 0.0
  %3146 = vmatpush.xpose.msra.mxu0 0.0
  %3147 = vmatpush.xpose.msra.mxu0 0.0
  %3148 = vmatpush.xpose.msra.mxu0 %v3132
  %3149 = vmatpush.xpose.msra.mxu0 %v3130
  %3150 = vmatmul.f32.gmra.mxu0 %v3126
  %v3151 = vpop.f32.mrf.mxu0
  %v3152 = vadd.f32 0.0, %v3151
  %3153 = vmatmul.f32.gmra.mxu0 %v3128
  %v3154 = vpop.f32.mrf.mxu0
  %v3155 = vadd.f32 0.0, %v3154
  %3156 = vdwg.mxu0
  %v3157 = vmul.f32 %v3152, 0.35355338
  %v3158 = vmul.f32 %v3155, 0.35355338
  %v3159 = vadd.f32 %v3157, %v203
  %v3160 = vadd.f32 %v3158, %v204
  %v3161 = vsel %vm95, %v3159, -inf
  %3162 = vmax.xlane.f32.xlu0 %v3161
  %v3163 = vpop.xlane.xlu0 %3162
  %v3164 = vsel %vm95, %v3160, -inf
  %3165 = vmax.xlane.f32.xlu0 %v3164
  %v3166 = vpop.xlane.xlu0 %3165
  %v3167 = vsub.f32 %v3159, %v3163
  %v3168 = vsub.f32 %v3160, %v3166
  %v3169 = vmul.f32 %v3167, 1.442695
  %v3170 = vpow.pop %v3169
  %v3171 = vmul.f32 %v3168, 1.442695
  %v3172 = vpow.pop %v3171
  %v3173 = vsel %vm95, %v3170, 0.0
  %3174 = vadd.xlane.f32.xlu0 %v3173
  %v3175 = vpop.xlane.xlu0 %3174
  %v3176 = vsel %vm95, %v3172, 0.0
  %3177 = vadd.xlane.f32.xlu0 %v3176
  %v3178 = vpop.xlane.xlu0 %3177
  %v3179 = vrcp.pop %v3175
  %v3180 = vmul.f32 %v3175, %v3179
  %v3181 = vsub.f32 1.0, %v3180
  %v3182 = vmul.f32 %v3179, %v3181
  %v3183 = vadd.f32 %v3179, %v3182
  %vm3184 = vweird.f32 %v3175
  %vm3185 = vweird.f32 %v3179
  %vm3186 = vmor %vm3184, %vm3185
  %v3187 = vsel %vm3186, %v3179, %v3183
  %v3188 = vand.u32 2147483647, %v3175
  %vm3189 = vcmp.eq.f32.partialorder %v3188, 8.507059e+37
  %v3190 = vand.u32 %v3175, 2147483648
  %v3191 = vor.u32 1.1754944e-38, %v3190
  %v3192 = vsel %vm3189, %v3191, %v3187
  %v3193 = vmul.f32 %v3170, %v3192
  %v3194 = vrcp.pop %v3178
  %v3195 = vmul.f32 %v3178, %v3194
  %v3196 = vsub.f32 1.0, %v3195
  %v3197 = vmul.f32 %v3194, %v3196
  %v3198 = vadd.f32 %v3194, %v3197
  %vm3199 = vweird.f32 %v3178
  %vm3200 = vweird.f32 %v3194
  %vm3201 = vmor %vm3199, %vm3200
  %v3202 = vsel %vm3201, %v3194, %v3198
  %v3203 = vand.u32 2147483647, %v3178
  %vm3204 = vcmp.eq.f32.partialorder %v3203, 8.507059e+37
  %v3205 = vand.u32 %v3178, 2147483648
  %v3206 = vor.u32 1.1754944e-38, %v3205
  %v3207 = vsel %vm3204, %v3206, %v3202
  %v3208 = vmul.f32 %v3172, %v3207
  %3209 = vrot.lane.b32.xlu0 %v2021, 40
  %v3210 = vpop.permute.xlu0 %3209
  %3211 = vrot.lane.b32.xlu0 %v2024, 40
  %v3212 = vpop.permute.xlu0 %3211
  %v3216 = vsel %vm95, %v3193, 0
  %v3219 = vsel %vm95, %v3208, 0
  %3221 = vmatpush.msra.mxu0 0.0
  %3222 = vmatpush.msra.mxu0 0.0
  %3223 = vmatpush.msra.mxu0 0.0
  %3224 = vmatpush.msra.mxu0 0.0
  %3225 = vmatpush.msra.mxu0 0.0
  %3226 = vmatpush.msra.mxu0 0.0
  %3227 = vmatpush.msra.mxu0 0.0
  %3228 = vmatpush.msra.mxu0 0.0
  %3229 = vmatpush.msra.mxu0 0.0
  %3230 = vmatpush.msra.mxu0 0.0
  %3231 = vmatpush.msra.mxu0 0.0
  %3232 = vmatpush.msra.mxu0 0.0
  %3233 = vmatpush.msra.mxu0 0.0
  %3234 = vmatpush.msra.mxu0 0.0
  %3235 = vmatpush.msra.mxu0 %v3212
  %3236 = vmatpush.msra.mxu0 %v3210
  %3237 = vmatmul.f32.gmra.mxu0 %v3216
  %v3238 = vpop.f32.mrf.mxu0
  %v3239 = vadd.f32 0.0, %v3238
  %3240 = vmatmul.f32.gmra.mxu0 %v3219
  %v3241 = vpop.f32.mrf.mxu0
  %v3242 = vadd.f32 0.0, %v3241
  %3243 = vdwg.mxu0
  %v3245 = vsel %vm376, %v3239, 0
  %v3248 = vsel %vm376, %v3242, 0
  %3250 = vmatpush.msra.mxu0 0.0
  %3251 = vmatpush.msra.mxu0 0.0
  %3252 = vmatpush.msra.mxu0 0.0
  %3253 = vmatpush.msra.mxu0 0.0
  %3254 = vmatpush.msra.mxu0 0.0
  %3255 = vmatpush.msra.mxu0 0.0
  %3256 = vmatpush.msra.mxu0 0.0
  %3257 = vmatpush.msra.mxu0 0.0
  %3258 = vmatpush.msra.mxu0 0.0
  %3259 = vmatpush.msra.mxu0 0.0
  %3260 = vmatpush.msra.mxu0 0.0
  %3261 = vmatpush.msra.mxu0 0.0
  %3262 = vmatpush.msra.mxu0 0.0
  %3263 = vmatpush.msra.mxu0 0.0
  %3264 = vmatpush.msra.mxu0 0.0
  %3265 = vmatpush.msra.mxu0 %v2030
  %3266 = vmatmul.f32.gmra.mxu0 %v3245
  %v3267 = vpop.f32.mrf.mxu0
  %v3268 = vadd.f32 0.0, %v3267
  %3269 = vmatmul.f32.gmra.mxu0 %v3248
  %v3270 = vpop.f32.mrf.mxu0
  %v3271 = vadd.f32 0.0, %v3270
  %3272 = vdwg.mxu0
  %v3273 = vadd.f32 %v3116, %v3268
  %v3274 = vadd.f32 %v3117, %v3271
  %v3275 = vadd.f32 %v1865, %v2651
  %v3276 = vadd.f32 %v1866, %v2652
  %v3277 = vadd.f32 %v1867, %v3273
  %v3278 = vadd.f32 %v1868, %v3274
  %s3279 = scalar_lea.vmem %s14, 1
  %v3280 = vld [vmem:[%s3279] sm:$0x1]
  %v3282 = vperm.slane %v3280, 0
  %v3284 = vadd.f32 %v3275, %v3282
  %v3285 = vadd.f32 %v3276, %v3282
  %v3286 = vadd.f32 %v3277, %v3282
  %v3287 = vadd.f32 %v3278, %v3282
  %s3288 = scalar_lea.vmem %s15, 1
  %v3289 = vld [vmem:[%s3288] sm:$0x1]
  %s3290 = scalar_lea.vmem %s16, 1
  %v3291 = vld [vmem:[%s3290] sm:$0x1]
  %v3292 = vsel %vm207, %v3284, 0.0
  %3293 = vadd.xlane.f32.xlu0 %v3292
  %v3294 = vpop.xlane.xlu0 %3293
  %v3295 = vsel %vm207, %v3285, 0.0
  %3296 = vadd.xlane.f32.xlu0 %v3295
  %v3297 = vpop.xlane.xlu0 %3296
  %v3298 = vsel %vm207, %v3286, 0.0
  %3299 = vadd.xlane.f32.xlu0 %v3298
  %v3300 = vpop.xlane.xlu0 %3299
  %v3301 = vsel %vm207, %v3287, 0.0
  %3302 = vadd.xlane.f32.xlu0 %v3301
  %v3303 = vpop.xlane.xlu0 %3302
  %v3304 = vmul.f32 %v3294, %v226
  %v3305 = vmul.f32 %v3297, %v226
  %v3306 = vmul.f32 %v3300, %v226
  %v3307 = vmul.f32 %v3303, %v226
  %v3308 = vsub.f32 %v3284, %v3304
  %v3309 = vsub.f32 %v3285, %v3305
  %v3310 = vsub.f32 %v3286, %v3306
  %v3311 = vsub.f32 %v3287, %v3307
  %v3312 = vmul.f32 %v3308, %v3308
  %v3313 = vmul.f32 %v3309, %v3309
  %v3314 = vmul.f32 %v3310, %v3310
  %v3315 = vmul.f32 %v3311, %v3311
  %v3316 = vsel %vm207, %v3312, 0.0
  %3317 = vadd.xlane.f32.xlu0 %v3316
  %v3318 = vpop.xlane.xlu0 %3317
  %v3319 = vsel %vm207, %v3313, 0.0
  %3320 = vadd.xlane.f32.xlu0 %v3319
  %v3321 = vpop.xlane.xlu0 %3320
  %v3322 = vsel %vm207, %v3314, 0.0
  %3323 = vadd.xlane.f32.xlu0 %v3322
  %v3324 = vpop.xlane.xlu0 %3323
  %v3325 = vsel %vm207, %v3315, 0.0
  %3326 = vadd.xlane.f32.xlu0 %v3325
  %v3327 = vpop.xlane.xlu0 %3326
  %v3328 = vmul.f32 %v3318, %v226
  %v3329 = vmul.f32 %v3321, %v226
  %v3330 = vmul.f32 %v3324, %v226
  %v3331 = vmul.f32 %v3327, %v226
  %v3332 = vadd.f32 %v3328, 1e-05
  %v3333 = vadd.f32 %v3329, 1e-05
  %v3334 = vadd.f32 %v3330, 1e-05
  %v3335 = vadd.f32 %v3331, 1e-05
  %v3336 = vrsqrt.pop %v3332
  %v3337 = vmul.f32 %v3336, %v3332
  %v3338 = vmul.f32 %v3337, %v3336
  %v3339 = vmul.f32 0.5, %v3338
  %v3340 = vsub.f32 1.5, %v3339
  %v3341 = vmul.f32 %v3336, %v3340
  %vm3342 = vweird.f32 %v3332
  %vm3343 = vweird.f32 %v3336
  %vm3344 = vmor %vm3342, %vm3343
  %v3345 = vsel %vm3344, %v3336, %v3341
  %v3346 = vrsqrt.pop %v3333
  %v3347 = vmul.f32 %v3346, %v3333
  %v3348 = vmul.f32 %v3347, %v3346
  %v3349 = vmul.f32 0.5, %v3348
  %v3350 = vsub.f32 1.5, %v3349
  %v3351 = vmul.f32 %v3346, %v3350
  %vm3352 = vweird.f32 %v3333
  %vm3353 = vweird.f32 %v3346
  %vm3354 = vmor %vm3352, %vm3353
  %v3355 = vsel %vm3354, %v3346, %v3351
  %v3356 = vrsqrt.pop %v3334
  %v3357 = vmul.f32 %v3356, %v3334
  %v3358 = vmul.f32 %v3357, %v3356
  %v3359 = vmul.f32 0.5, %v3358
  %v3360 = vsub.f32 1.5, %v3359
  %v3361 = vmul.f32 %v3356, %v3360
  %vm3362 = vweird.f32 %v3334
  %vm3363 = vweird.f32 %v3356
  %vm3364 = vmor %vm3362, %vm3363
  %v3365 = vsel %vm3364, %v3356, %v3361
  %v3366 = vrsqrt.pop %v3335
  %v3367 = vmul.f32 %v3366, %v3335
  %v3368 = vmul.f32 %v3367, %v3366
  %v3369 = vmul.f32 0.5, %v3368
  %v3370 = vsub.f32 1.5, %v3369
  %v3371 = vmul.f32 %v3366, %v3370
  %vm3372 = vweird.f32 %v3335
  %vm3373 = vweird.f32 %v3366
  %vm3374 = vmor %vm3372, %vm3373
  %v3375 = vsel %vm3374, %v3366, %v3371
  %v3376 = vmul.f32 %v3308, %v3345
  %v3377 = vmul.f32 %v3309, %v3355
  %v3378 = vmul.f32 %v3310, %v3365
  %v3379 = vmul.f32 %v3311, %v3375
  %v3381 = vperm.slane %v3289, 0
  %v3383 = vmul.f32 %v3376, %v3381
  %v3384 = vmul.f32 %v3377, %v3381
  %v3385 = vmul.f32 %v3378, %v3381
  %v3386 = vmul.f32 %v3379, %v3381
  %v3388 = vperm.slane %v3291, 0
  %v3390 = vadd.f32 %v3383, %v3388
  %v3391 = vadd.f32 %v3384, %v3388
  %v3392 = vadd.f32 %v3385, %v3388
  %v3393 = vadd.f32 %v3386, %v3388
  %s3394 = scalar_lea.vmem %s17, 32
  %v3395 = vld [vmem:[%s3394] sm:$0xff]
  %v3396 = vld [vmem:[%s3394 + $0x8] sm:$0xff]
  %v3397 = vld [vmem:[%s3394 + $0x10] sm:$0xff]
  %v3398 = vld [vmem:[%s3394 + $0x18] sm:$0xff]
  %s3399 = scalar_lea.vmem %s18, 1
  %v3400 = vld [vmem:[%s3399] sm:$0x1]
  %v3402 = vperm.slane %v3400, 0
  %v3405 = vsel %vm207, %v3390, 0
  %v3408 = vsel %vm207, %v3391, 0
  %v3411 = vsel %vm207, %v3392, 0
  %v3414 = vsel %vm207, %v3393, 0
  %3416 = vmatpush.msra.mxu0 0.0
  %3417 = vmatpush.msra.mxu0 0.0
  %3418 = vmatpush.msra.mxu0 0.0
  %3419 = vmatpush.msra.mxu0 0.0
  %3420 = vmatpush.msra.mxu0 0.0
  %3421 = vmatpush.msra.mxu0 0.0
  %3422 = vmatpush.msra.mxu0 0.0
  %3423 = vmatpush.msra.mxu0 0.0
  %3424 = vmatpush.msra.mxu0 0.0
  %3425 = vmatpush.msra.mxu0 0.0
  %3426 = vmatpush.msra.mxu0 0.0
  %3427 = vmatpush.msra.mxu0 0.0
  %3428 = vmatpush.msra.mxu0 %v3398
  %3429 = vmatpush.msra.mxu0 %v3397
  %3430 = vmatpush.msra.mxu0 %v3396
  %3431 = vmatpush.msra.mxu0 %v3395
  %3432 = vmatmul.f32.gmra.mxu0 %v3405
  %v3433 = vpop.f32.mrf.mxu0
  %v3434 = vadd.f32 %v3402, %v3433
  %3435 = vmatmul.f32.gmra.mxu0 %v3408
  %v3436 = vpop.f32.mrf.mxu0
  %v3437 = vadd.f32 %v3402, %v3436
  %3438 = vmatmul.f32.gmra.mxu0 %v3411
  %v3439 = vpop.f32.mrf.mxu0
  %v3440 = vadd.f32 %v3402, %v3439
  %3441 = vmatmul.f32.gmra.mxu0 %v3414
  %v3442 = vpop.f32.mrf.mxu0
  %v3443 = vadd.f32 %v3402, %v3442
  %3444 = vdwg.mxu0
  %v3445 = vmul.f32 %v3434, 0.5
  %v3446 = vmul.f32 %v3437, 0.5
  %v3447 = vmul.f32 %v3440, 0.5
  %v3448 = vmul.f32 %v3443, 0.5
  %v3449 = vmul.f32 %v3434, 0.044715
  %v3450 = vmul.f32 %v3437, 0.044715
  %v3451 = vmul.f32 %v3440, 0.044715
  %v3452 = vmul.f32 %v3443, 0.044715
  %v3453 = vmul.f32 %v3449, %v3434
  %v3454 = vmul.f32 %v3450, %v3437
  %v3455 = vmul.f32 %v3451, %v3440
  %v3456 = vmul.f32 %v3452, %v3443
  %v3457 = vmul.f32 %v3453, %v3434
  %v3458 = vmul.f32 %v3454, %v3437
  %v3459 = vmul.f32 %v3455, %v3440
  %v3460 = vmul.f32 %v3456, %v3443
  %v3461 = vadd.f32 %v3434, %v3457
  %v3462 = vadd.f32 %v3437, %v3458
  %v3463 = vadd.f32 %v3440, %v3459
  %v3464 = vadd.f32 %v3443, %v3460
  %v3465 = vmul.f32 %v3461, 0.7978846
  %v3466 = vmul.f32 %v3462, 0.7978846
  %v3467 = vmul.f32 %v3463, 0.7978846
  %v3468 = vmul.f32 %v3464, 0.7978846
  %v3469 = vtanh.pop %v3465
  %v3470 = vtanh.pop %v3466
  %v3471 = vtanh.pop %v3467
  %v3472 = vtanh.pop %v3468
  %v3473 = vadd.f32 %v3469, 1.0
  %v3474 = vadd.f32 %v3470, 1.0
  %v3475 = vadd.f32 %v3471, 1.0
  %v3476 = vadd.f32 %v3472, 1.0
  %v3477 = vmul.f32 %v3445, %v3473
  %v3478 = vmul.f32 %v3446, %v3474
  %v3479 = vmul.f32 %v3447, %v3475
  %v3480 = vmul.f32 %v3448, %v3476
  %s3481 = scalar_lea.vmem %s19, 128
  %v3482 = vld [vmem:[%s3481] sm:$0xff]
  %v3483 = vld [vmem:[%s3481 + $0x8] sm:$0xff]
  %v3484 = vld [vmem:[%s3481 + $0x10] sm:$0xff]
  %v3485 = vld [vmem:[%s3481 + $0x18] sm:$0xff]
  %v3486 = vld [vmem:[%s3481 + $0x20] sm:$0xff]
  %v3487 = vld [vmem:[%s3481 + $0x28] sm:$0xff]
  %v3488 = vld [vmem:[%s3481 + $0x30] sm:$0xff]
  %v3489 = vld [vmem:[%s3481 + $0x38] sm:$0xff]
  %v3490 = vld [vmem:[%s3481 + $0x40] sm:$0xff]
  %v3491 = vld [vmem:[%s3481 + $0x48] sm:$0xff]
  %v3492 = vld [vmem:[%s3481 + $0x50] sm:$0xff]
  %v3493 = vld [vmem:[%s3481 + $0x58] sm:$0xff]
  %v3494 = vld [vmem:[%s3481 + $0x60] sm:$0xff]
  %v3495 = vld [vmem:[%s3481 + $0x68] sm:$0xff]
  %v3496 = vld [vmem:[%s3481 + $0x70] sm:$0xff]
  %v3497 = vld [vmem:[%s3481 + $0x78] sm:$0xff]
  %s3498 = scalar_lea.vmem %s20, 1
  %v3499 = vld [vmem:[%s3498] sm:$0x1]
  %v3501 = vperm.slane %v3499, 0
  %3503 = vmatpush.msra.mxu0 %v3497
  %3504 = vmatpush.msra.mxu0 %v3496
  %3505 = vmatpush.msra.mxu0 %v3495
  %3506 = vmatpush.msra.mxu0 %v3494
  %3507 = vmatpush.msra.mxu0 %v3493
  %3508 = vmatpush.msra.mxu0 %v3492
  %3509 = vmatpush.msra.mxu0 %v3491
  %3510 = vmatpush.msra.mxu0 %v3490
  %3511 = vmatpush.msra.mxu0 %v3489
  %3512 = vmatpush.msra.mxu0 %v3488
  %3513 = vmatpush.msra.mxu0 %v3487
  %3514 = vmatpush.msra.mxu0 %v3486
  %3515 = vmatpush.msra.mxu0 %v3485
  %3516 = vmatpush.msra.mxu0 %v3484
  %3517 = vmatpush.msra.mxu0 %v3483
  %3518 = vmatpush.msra.mxu0 %v3482
  %3519 = vmatmul.f32.gmra.mxu0 %v3477
  %v3520 = vpop.f32.mrf.mxu0
  %v3521 = vadd.f32 %v3501, %v3520
  %3522 = vmatmul.f32.gmra.mxu0 %v3478
  %v3523 = vpop.f32.mrf.mxu0
  %v3524 = vadd.f32 %v3501, %v3523
  %3525 = vmatmul.f32.gmra.mxu0 %v3479
  %v3526 = vpop.f32.mrf.mxu0
  %v3527 = vadd.f32 %v3501, %v3526
  %3528 = vmatmul.f32.gmra.mxu0 %v3480
  %v3529 = vpop.f32.mrf.mxu0
  %v3530 = vadd.f32 %v3501, %v3529
  %3531 = vdwg.mxu0
  %v3532 = vadd.f32 %v3284, %v3521
  %v3533 = vadd.f32 %v3285, %v3524
  %v3534 = vadd.f32 %v3286, %v3527
  %v3535 = vadd.f32 %v3287, %v3530
  %3536 = vst.msk [vmem:[#allocation2] sm:$0xff] %vm207, %v3532
  %3537 = vst.msk [vmem:[#allocation2 + $0x8] sm:$0xff] %vm207, %v3533
  %3538 = vst.msk [vmem:[#allocation2 + $0x10] sm:$0xff] %vm207, %v3534
  %3539 = vst.msk [vmem:[#allocation2 + $0x18] sm:$0xff] %vm207, %v3535
  %s3540 = sld [smem:[#allocation4]]
  %p3541 = scmp.gt.s32.totalorder %s3540, 0
  %s3542 = scalar_select %p3541, %s3540, 0
  %p3543 = scmp.lt.s32.totalorder %s3542, 8
  %s3544 = scalar_select %p3543, %s3542, 8
  %s3545 = scalar_lea.vmem [#allocation2], %s3544
  %v3546 = vld [vmem:[%s3545] sm:$0x1]
  %s3547 = sld [smem:[#allocation4 + $0x1]]
  %p3548 = scmp.gt.s32.totalorder %s3547, 0
  %s3549 = scalar_select %p3548, %s3547, 0
  %p3550 = scmp.lt.s32.totalorder %s3549, 8
  %s3551 = scalar_select %p3550, %s3549, 8
  %s3552 = sadd.s32 %s3551, 16
  %s3553 = scalar_lea.vmem [#allocation2], %s3552
  %v3554 = vld [vmem:[%s3553] sm:$0x1]
  %v3556 = vrot.slane %v3554, 7
  %v3558 = vsel %vm174, %v3546, %v3556
  %v3559 = vld [vmem:[%s21] sm:$0x1]
  %v3560 = vld [vmem:[%s22] sm:$0x1]
  %vm3561 = vcmask 254976
  %v3562 = vsel %vm3561, %v3558, 0.0
  %3563 = vadd.xlane.f32.xlu0 %v3562
  %v3564 = vpop.xlane.xlu0 %3563
  %v3565 = vmul.f32 %v3564, %v226
  %v3566 = vsub.f32 %v3558, %v3565
  %v3567 = vmul.f32 %v3566, %v3566
  %v3568 = vsel %vm3561, %v3567, 0.0
  %3569 = vadd.xlane.f32.xlu0 %v3568
  %v3570 = vpop.xlane.xlu0 %3569
  %v3571 = vmul.f32 %v3570, %v226
  %v3572 = vadd.f32 %v3571, 1e-05
  %v3573 = vrsqrt.pop %v3572
  %v3574 = vmul.f32 %v3573, %v3572
  %v3575 = vmul.f32 %v3574, %v3573
  %v3576 = vmul.f32 0.5, %v3575
  %v3577 = vsub.f32 1.5, %v3576
  %v3578 = vmul.f32 %v3573, %v3577
  %vm3579 = vweird.f32 %v3572
  %vm3580 = vweird.f32 %v3573
  %vm3581 = vmor %vm3579, %vm3580
  %v3582 = vsel %vm3581, %v3573, %v3578
  %v3583 = vmul.f32 %v3566, %v3582
  %v3585 = vperm.slane %v3559, 0
  %v3587 = vmul.f32 %v3583, %v3585
  %v3589 = vperm.slane %v3560, 0
  %v3591 = vadd.f32 %v3587, %v3589
  %v3592 = vld [vmem:[%s23] sm:$0xff]
  %v3593 = vld [vmem:[%s23 + $0x8] sm:$0xff]
  %v3594 = vld [vmem:[%s23 + $0x10] sm:$0xff]
  %v3595 = vld [vmem:[%s23 + $0x18] sm:$0xff]
  %v3596 = vld [vmem:[#allocation5] sm:$0x1]
  %v3598 = vperm.slane %v3596, 0
  %v3601 = vsel %vm207, %v3591, 0
  %3603 = vmatpush.msra.mxu0 0.0
  %3604 = vmatpush.msra.mxu0 0.0
  %3605 = vmatpush.msra.mxu0 0.0
  %3606 = vmatpush.msra.mxu0 0.0
  %3607 = vmatpush.msra.mxu0 0.0
  %3608 = vmatpush.msra.mxu0 0.0
  %3609 = vmatpush.msra.mxu0 0.0
  %3610 = vmatpush.msra.mxu0 0.0
  %3611 = vmatpush.msra.mxu0 0.0
  %3612 = vmatpush.msra.mxu0 0.0
  %3613 = vmatpush.msra.mxu0 0.0
  %3614 = vmatpush.msra.mxu0 0.0
  %3615 = vmatpush.msra.mxu0 %v3595
  %3616 = vmatpush.msra.mxu0 %v3594
  %3617 = vmatpush.msra.mxu0 %v3593
  %3618 = vmatpush.msra.mxu0 %v3592
  %3619 = vmatmul.f32.gmra.mxu0 %v3601
  %v3620 = vpop.f32.mrf.mxu0
  %v3621 = vadd.f32 %v3598, %v3620
  %3622 = vdwg.mxu0
  %v3623 = vmax.f32 %v3621, 0.0
  %vm3624 = vcmask 1024
  %3625 = vst.msk [vmem:[%s25] sm:$0x3] %vm3624, %v3623
  // Predicated region
  $region98: #{tpu_custom_call.1} parent=0 // pred_check
    _
  $region99: #{tpu_custom_call.1} parent=0 // pred_check_branch
    %3627 = sbr.rel (0) target = $region101
  $region100: #{tpu_custom_call.1} parent=0 // pred_region
    _
  $region101: #{tpu_custom_call.1} parent=0 // pred_fallthru
    _
  // Predicated region
  $region102: #{tpu_custom_call.1} parent=0 // pred_check
    _
  $region103: #{tpu_custom_call.1} parent=0 // pred_check_branch
    %3629 = sbr.rel (0) target = $region105
  $region104: #{tpu_custom_call.1} parent=0 // pred_region
    _
  $region105: #{tpu_custom_call.1} parent=0 // pred_fallthru
    _

</llo_original>
